<compile_context>
chip_gen: v5e
topology: v5e:2x2
jax: 0.10.0
libtpu: 0.0.40
codegen_flags: <defaults>
</compile_context>

<pallas_src>
import functools

import jax
import jax.numpy as jnp
import numpy as np
from jax import lax
from jax.experimental import pallas as pl
from jax.experimental.pallas import tpu as pltpu

NEG_INF = float("-inf")


# ----------------------------- static helpers -------------------------------

def _to_pair(v):
    return (v, v) if isinstance(v, int) else tuple(v)


def _pool_out_size(L, k, s, p, d, ceil_mode):
    """PyTorch MaxPool2d output-size formula (incl. ceil-mode window drop)."""
    num = L + 2 * p - d * (k - 1) - 1
    if ceil_mode:
        num += s - 1
    o = num // s + 1
    if ceil_mode and (o - 1) * s >= L + p:
        o -= 1
    return o


_POOL_CFGS = [
    dict(kernel_size=3),
    dict(kernel_size=4, stride=2, padding=2, dilation=1),
    dict(kernel_size=(1, 3), stride=1, padding=(0, 1), dilation=1),
    dict(kernel_size=(4, 5), stride=(1, 2), padding=(1, 2), dilation=1, ceil_mode=True),
    dict(kernel_size=(2, 3), stride=1, padding=1, dilation=(1, 2)),
    dict(kernel_size=2, stride=1, padding=0, dilation=1, ceil_mode=True),
    dict(kernel_size=(5, 4), stride=1, padding=2, dilation=1, return_indices=True),
]


def _pool_geom(cfg, H, W):
    """All static geometry for one pool whose input is (H, W)."""
    kh, kw = _to_pair(cfg["kernel_size"])
    stride = cfg.get("stride")
    sh, sw = _to_pair(stride if stride is not None else cfg["kernel_size"])
    ph, pw = _to_pair(cfg.get("padding", 0))
    dh, dw = _to_pair(cfg.get("dilation", 1))
    ceil = cfg.get("ceil_mode", False)
    Ho = _pool_out_size(H, kh, sh, ph, dh, ceil)
    Wo = _pool_out_size(W, kw, sw, pw, dw, ceil)
    # padded extents (cover both symmetric padding and ceil-mode overhang)
    Hp = max(H + 2 * ph, (Ho - 1) * sh + dh * (kh - 1) + 1)
    Wp = max(W + 2 * pw, (Wo - 1) * sw + dw * (kw - 1) + 1)
    # stride-1 ("full resolution") extents actually needed before subsampling
    Hf = (Ho - 1) * sh + 1
    Wf = (Wo - 1) * sw + 1
    return dict(kh=kh, kw=kw, sh=sh, sw=sw, ph=ph, pw=pw, dh=dh, dw=dw,
                H=H, W=W, Ho=Ho, Wo=Wo, Hp=Hp, Wp=Wp, Hf=Hf, Wf=Wf,
                ret_idx=cfg.get("return_indices", False))


# ----------------------------- fused Pallas kernel ---------------------------

def _subsample(v, axis, n_out, stride):
    """Exact stride-`stride` subsample along `axis`, done fully in registers
    (static contiguous slices + one concatenate; no VMEM temp, no masked stores)."""
    parts = [lax.slice_in_dim(v, i * stride, i * stride + 1, axis=axis)
             for i in range(n_out)]
    return jnp.concatenate(parts, axis=axis)


def _fused_pool_kernel(x_ref, out_v_ref, out_i_ref, *bufs, geoms, NC):
    # buffer feeding each pool: pool 0 reads the input ref directly (it needs no
    # padding); pools 1..6 read the -inf bordered VMEM scratch written by the
    # previous pool.
    srcs = (x_ref,) + bufs

    for p, g in enumerate(geoms):
        src = srcs[p]
        kh, kw = g["kh"], g["kw"]
        dh, dw = g["dh"], g["dw"]
        sh, sw = g["sh"], g["sw"]
        Ho, Wo, Hf, Wf = g["Ho"], g["Wo"], g["Hf"], g["Wf"]

        if not g["ret_idx"]:
            # --- running max over window taps at stride-1 resolution -----------
            # every tap is a static, contiguous 3-D slice of the (padded) ref.
            full = None
            for ki in range(kh):
                r = ki * dh
                for kj in range(kw):
                    c = kj * dw
                    win = src[:, r:r + Hf, c:c + Wf]
                    full = win if full is None else jnp.maximum(full, win)

            # --- exact stride subsample, in registers ---------------------------
            res = _subsample(full, 1, Ho, sh) if sh > 1 else full
            res = _subsample(res, 2, Wo, sw) if sw > 1 else res

            # --- write into next pool's buffer: interior once, border-only -inf -
            nxt = srcs[p + 1]
            gn = geoms[p + 1]
            r0, c0 = gn["ph"], gn["pw"]
            Hp, Wp = gn["Hp"], gn["Wp"]
            dt = nxt.dtype
            if r0 > 0:
                nxt[:, 0:r0, :] = jnp.full((NC, r0, Wp), NEG_INF, dtype=dt)
            if Hp > r0 + Ho:
                nxt[:, r0 + Ho:Hp, :] = jnp.full((NC, Hp - r0 - Ho, Wp), NEG_INF, dtype=dt)
            if c0 > 0:
                nxt[:, r0:r0 + Ho, 0:c0] = jnp.full((NC, Ho, c0), NEG_INF, dtype=dt)
            if Wp > c0 + Wo:
                nxt[:, r0:r0 + Ho, c0 + Wo:Wp] = jnp.full((NC, Ho, Wp - c0 - Wo), NEG_INF, dtype=dt)
            nxt[:, r0:r0 + Ho, c0:c0 + Wo] = res
        else:
            # --- final pool: stride 1, track argmax flat index (PyTorch layout) --
            W_in, ph, pw = g["W"], g["ph"], g["pw"]
            oh = lax.broadcasted_iota(jnp.int32, (NC, Ho, Wo), 1)
            ow = lax.broadcasted_iota(jnp.int32, (NC, Ho, Wo), 2)
            base = oh * W_in + ow                         # built in-kernel, no DMA
            best = jnp.full((NC, Ho, Wo), NEG_INF, dtype=out_v_ref.dtype)
            best_idx = jnp.zeros((NC, Ho, Wo), dtype=jnp.int32)
            # TODO(synk): strict `>` (first-max-wins) diverges from PyTorch only for
            # NaN inputs; not reproduced here.
            for ki in range(kh):
                for kj in range(kw):
                    win = src[:, ki * dh:ki * dh + Ho, kj * dw:kj * dw + Wo]
                    off = (ki * dh - ph) * W_in + (kj * dw - pw)   # compile-time scalar
                    better = win > best
                    best_idx = jnp.where(better, base + off, best_idx)
                    best = jnp.where(better, win, best)
            out_v_ref[...] = best
            out_i_ref[...] = best_idx


# ----------------------------- wrapper (= Model.forward) ---------------------

def model_forward(x):
    """x: (N, C, H, W) float32 -> (values, indices) like the PyTorch Model."""
    N, C, H, W = x.shape
    NC = N * C

    geoms = []
    h, w = H, W
    for cfg in _POOL_CFGS:
        g = _pool_geom(cfg, h, w)
        assert g["Ho"] > 0 and g["Wo"] > 0, "input too small for this pool chain"
        geoms.append(g)
        h, w = g["Ho"], g["Wo"]

    g0, gl = geoms[0], geoms[-1]
    # pool_0 has padding=0 (and no ceil overhang) so the raw input ref is its buffer
    assert g0["ph"] == 0 and g0["pw"] == 0 and g0["Hp"] == H and g0["Wp"] == W
    assert gl["ret_idx"] and gl["sh"] == 1 and gl["sw"] == 1
    assert not any(g["ret_idx"] for g in geoms[:-1])

    # pure reshape (no transpose): N*C rides the untiled major axis, W on lanes.
    xr = x.reshape(NC, H, W)

    # VMEM scratch: one -inf bordered buffer per intermediate (no subsample temp).
    scratch = [pltpu.VMEM((NC, g["Hp"], g["Wp"]), x.dtype) for g in geoms[1:]]

    kernel = functools.partial(_fused_pool_kernel, geoms=geoms, NC=NC)
    vmem = pl.BlockSpec(memory_space=pltpu.MemorySpace.VMEM)
    HoL, WoL = gl["Ho"], gl["Wo"]
    out_v, out_i = pl.pallas_call(
        kernel,
        out_shape=(jax.ShapeDtypeStruct((NC, HoL, WoL), x.dtype),
                   jax.ShapeDtypeStruct((NC, HoL, WoL), jnp.int32)),
        in_specs=[vmem],
        out_specs=(vmem, vmem),
        scratch_shapes=scratch,
        # TODO(synk): single grid point on purpose — at N*C=6 a grid is pure per-step
        # overhead; for much larger N*C add a leading "parallel" grid axis over channel
        # blocks so both v7x TensorCores are used.
    )(xr)

    y = out_v.reshape(N, C, HoL, WoL)
    idx = out_i.reshape(N, C, HoL, WoL)
    if jax.config.jax_enable_x64:   # PyTorch returns int64 indices; cast only if x64 is on
        idx = idx.astype(jnp.int64)
    return y, idx


# ----------------------------- numpy reference (PyTorch semantics) ----------

def _ref_maxpool(x, kernel_size, stride=None, padding=0, dilation=1,
                 ceil_mode=False, return_indices=False):
    kh, kw = _to_pair(kernel_size)
    sh, sw = _to_pair(stride if stride is not None else kernel_size)
    ph, pw = _to_pair(padding)
    dh, dw = _to_pair(dilation)
    N, C, H, W = x.shape
    Ho = _pool_out_size(H, kh, sh, ph, dh, ceil_mode)
    Wo = _pool_out_size(W, kw, sw, pw, dw, ceil_mode)
    y = np.zeros((N, C, Ho, Wo), dtype=x.dtype)
    idx = np.zeros((N, C, Ho, Wo), dtype=np.int64)
    for n in range(N):
        for c in range(C):
            for oh in range(Ho):
                for ow in range(Wo):
                    best, bi = -np.inf, 0
                    for ki in range(kh):
                        for kj in range(kw):
                            ih = oh * sh - ph + ki * dh
                            iw = ow * sw - pw + kj * dw
                            if 0 <= ih < H and 0 <= iw < W:
                                v = x[n, c, ih, iw]
                                if v > best:
                                    best, bi = v, ih * W + iw
                    y[n, c, oh, ow] = best
                    idx[n, c, oh, ow] = bi
    return (y, idx) if return_indices else y


# ----------------------------- main ------------------------------------------

if __name__ == "__main__":
    key = jax.random.PRNGKey(0)
    x = jax.random.normal(key, (2, 3, 48, 48), dtype=jnp.float32)

    y, indices = jax.jit(model_forward)(x)
    jax.block_until_ready((y, indices))

    # reference chain
    xr = np.asarray(x)
    for cfg in _POOL_CFGS[:-1]:
        xr = _ref_maxpool(xr, **cfg)
    y_ref, idx_ref = _ref_maxpool(xr, **_POOL_CFGS[-1])

    assert y.shape == y_ref.shape, (y.shape, y_ref.shape)
    assert indices.shape == idx_ref.shape, (indices.shape, idx_ref.shape)
    np.testing.assert_allclose(np.asarray(y), y_ref, rtol=1e-6, atol=1e-6)
    np.testing.assert_array_equal(np.asarray(indices), idx_ref)

    print("KERNEL_OK")
</pallas_src>

<mosaic_0001>
module attributes {stable_mosaic.version = 11 : i64} {
  func.func @_fused_pool_kernel(%arg0: memref<6x48x48xf32, #tpu.memory_space<vmem>>, %arg1: memref<6x8x3xf32, #tpu.memory_space<vmem>>, %arg2: memref<6x8x3xi32, #tpu.memory_space<vmem>>, %arg3: memref<6x20x20xf32, #tpu.memory_space<vmem>>, %arg4: memref<6x9x11xf32, #tpu.memory_space<vmem>>, %arg5: memref<6x11x13xf32, #tpu.memory_space<vmem>>, %arg6: memref<6x10x7xf32, #tpu.memory_space<vmem>>, %arg7: memref<6x9x3xf32, #tpu.memory_space<vmem>>, %arg8: memref<6x12x6xf32, #tpu.memory_space<vmem>>) attributes {dimension_semantics = [], scalar_prefetch = 0 : i64, scratch_operands = 6 : i64, tpu.core_type = #tpu.core_type<tc>} {
    %c0 = arith.constant 0 : index
    %c0_0 = arith.constant 0 : index
    %c0_1 = arith.constant 0 : index
    %0 = vector.load %arg0[%c0, %c0_0, %c0_1] : memref<6x48x48xf32, #tpu.memory_space<vmem>>, vector<6x46x46xf32>
    %c0_2 = arith.constant 0 : index
    %c0_3 = arith.constant 0 : index
    %c1 = arith.constant 1 : index
    %1 = vector.load %arg0[%c0_2, %c0_3, %c1] : memref<6x48x48xf32, #tpu.memory_space<vmem>>, vector<6x46x46xf32>
    %2 = arith.maximumf %0, %1 : vector<6x46x46xf32>
    %c0_4 = arith.constant 0 : index
    %c0_5 = arith.constant 0 : index
    %c2 = arith.constant 2 : index
    %3 = vector.load %arg0[%c0_4, %c0_5, %c2] : memref<6x48x48xf32, #tpu.memory_space<vmem>>, vector<6x46x46xf32>
    %4 = arith.maximumf %2, %3 : vector<6x46x46xf32>
    %c0_6 = arith.constant 0 : index
    %c1_7 = arith.constant 1 : index
    %c0_8 = arith.constant 0 : index
    %5 = vector.load %arg0[%c0_6, %c1_7, %c0_8] : memref<6x48x48xf32, #tpu.memory_space<vmem>>, vector<6x46x46xf32>
    %6 = arith.maximumf %4, %5 : vector<6x46x46xf32>
    %c0_9 = arith.constant 0 : index
    %c1_10 = arith.constant 1 : index
    %c1_11 = arith.constant 1 : index
    %7 = vector.load %arg0[%c0_9, %c1_10, %c1_11] : memref<6x48x48xf32, #tpu.memory_space<vmem>>, vector<6x46x46xf32>
    %8 = arith.maximumf %6, %7 : vector<6x46x46xf32>
    %c0_12 = arith.constant 0 : index
    %c1_13 = arith.constant 1 : index
    %c2_14 = arith.constant 2 : index
    %9 = vector.load %arg0[%c0_12, %c1_13, %c2_14] : memref<6x48x48xf32, #tpu.memory_space<vmem>>, vector<6x46x46xf32>
    %10 = arith.maximumf %8, %9 : vector<6x46x46xf32>
    %c0_15 = arith.constant 0 : index
    %c2_16 = arith.constant 2 : index
    %c0_17 = arith.constant 0 : index
    %11 = vector.load %arg0[%c0_15, %c2_16, %c0_17] : memref<6x48x48xf32, #tpu.memory_space<vmem>>, vector<6x46x46xf32>
    %12 = arith.maximumf %10, %11 : vector<6x46x46xf32>
    %c0_18 = arith.constant 0 : index
    %c2_19 = arith.constant 2 : index
    %c1_20 = arith.constant 1 : index
    %13 = vector.load %arg0[%c0_18, %c2_19, %c1_20] : memref<6x48x48xf32, #tpu.memory_space<vmem>>, vector<6x46x46xf32>
    %14 = arith.maximumf %12, %13 : vector<6x46x46xf32>
    %c0_21 = arith.constant 0 : index
    %c2_22 = arith.constant 2 : index
    %c2_23 = arith.constant 2 : index
    %15 = vector.load %arg0[%c0_21, %c2_22, %c2_23] : memref<6x48x48xf32, #tpu.memory_space<vmem>>, vector<6x46x46xf32>
    %16 = arith.maximumf %14, %15 : vector<6x46x46xf32>
    %17 = vector.extract_strided_slice %16 {offsets = [0, 0, 0], sizes = [6, 1, 46], strides = [1, 1, 1]} : vector<6x46x46xf32> to vector<6x1x46xf32>
    %18 = vector.extract_strided_slice %16 {offsets = [0, 3, 0], sizes = [6, 1, 46], strides = [1, 1, 1]} : vector<6x46x46xf32> to vector<6x1x46xf32>
    %19 = vector.extract_strided_slice %16 {offsets = [0, 6, 0], sizes = [6, 1, 46], strides = [1, 1, 1]} : vector<6x46x46xf32> to vector<6x1x46xf32>
    %20 = vector.extract_strided_slice %16 {offsets = [0, 9, 0], sizes = [6, 1, 46], strides = [1, 1, 1]} : vector<6x46x46xf32> to vector<6x1x46xf32>
    %21 = vector.extract_strided_slice %16 {offsets = [0, 12, 0], sizes = [6, 1, 46], strides = [1, 1, 1]} : vector<6x46x46xf32> to vector<6x1x46xf32>
    %22 = vector.extract_strided_slice %16 {offsets = [0, 15, 0], sizes = [6, 1, 46], strides = [1, 1, 1]} : vector<6x46x46xf32> to vector<6x1x46xf32>
    %23 = vector.extract_strided_slice %16 {offsets = [0, 18, 0], sizes = [6, 1, 46], strides = [1, 1, 1]} : vector<6x46x46xf32> to vector<6x1x46xf32>
    %24 = vector.extract_strided_slice %16 {offsets = [0, 21, 0], sizes = [6, 1, 46], strides = [1, 1, 1]} : vector<6x46x46xf32> to vector<6x1x46xf32>
    %25 = vector.extract_strided_slice %16 {offsets = [0, 24, 0], sizes = [6, 1, 46], strides = [1, 1, 1]} : vector<6x46x46xf32> to vector<6x1x46xf32>
    %26 = vector.extract_strided_slice %16 {offsets = [0, 27, 0], sizes = [6, 1, 46], strides = [1, 1, 1]} : vector<6x46x46xf32> to vector<6x1x46xf32>
    %27 = vector.extract_strided_slice %16 {offsets = [0, 30, 0], sizes = [6, 1, 46], strides = [1, 1, 1]} : vector<6x46x46xf32> to vector<6x1x46xf32>
    %28 = vector.extract_strided_slice %16 {offsets = [0, 33, 0], sizes = [6, 1, 46], strides = [1, 1, 1]} : vector<6x46x46xf32> to vector<6x1x46xf32>
    %29 = vector.extract_strided_slice %16 {offsets = [0, 36, 0], sizes = [6, 1, 46], strides = [1, 1, 1]} : vector<6x46x46xf32> to vector<6x1x46xf32>
    %30 = vector.extract_strided_slice %16 {offsets = [0, 39, 0], sizes = [6, 1, 46], strides = [1, 1, 1]} : vector<6x46x46xf32> to vector<6x1x46xf32>
    %31 = vector.extract_strided_slice %16 {offsets = [0, 42, 0], sizes = [6, 1, 46], strides = [1, 1, 1]} : vector<6x46x46xf32> to vector<6x1x46xf32>
    %32 = vector.extract_strided_slice %16 {offsets = [0, 45, 0], sizes = [6, 1, 46], strides = [1, 1, 1]} : vector<6x46x46xf32> to vector<6x1x46xf32>
    %33 = tpu.concatenate %17, %18, %19, %20, %21, %22, %23, %24, %25, %26, %27, %28, %29, %30, %31, %32 in 1 : vector<6x1x46xf32>, vector<6x1x46xf32>, vector<6x1x46xf32>, vector<6x1x46xf32>, vector<6x1x46xf32>, vector<6x1x46xf32>, vector<6x1x46xf32>, vector<6x1x46xf32>, vector<6x1x46xf32>, vector<6x1x46xf32>, vector<6x1x46xf32>, vector<6x1x46xf32>, vector<6x1x46xf32>, vector<6x1x46xf32>, vector<6x1x46xf32>, vector<6x1x46xf32> -> vector<6x16x46xf32>
    %34 = vector.extract_strided_slice %33 {offsets = [0, 0, 0], sizes = [6, 16, 1], strides = [1, 1, 1]} : vector<6x16x46xf32> to vector<6x16x1xf32>
    %35 = vector.extract_strided_slice %33 {offsets = [0, 0, 3], sizes = [6, 16, 1], strides = [1, 1, 1]} : vector<6x16x46xf32> to vector<6x16x1xf32>
    %36 = vector.extract_strided_slice %33 {offsets = [0, 0, 6], sizes = [6, 16, 1], strides = [1, 1, 1]} : vector<6x16x46xf32> to vector<6x16x1xf32>
    %37 = vector.extract_strided_slice %33 {offsets = [0, 0, 9], sizes = [6, 16, 1], strides = [1, 1, 1]} : vector<6x16x46xf32> to vector<6x16x1xf32>
    %38 = vector.extract_strided_slice %33 {offsets = [0, 0, 12], sizes = [6, 16, 1], strides = [1, 1, 1]} : vector<6x16x46xf32> to vector<6x16x1xf32>
    %39 = vector.extract_strided_slice %33 {offsets = [0, 0, 15], sizes = [6, 16, 1], strides = [1, 1, 1]} : vector<6x16x46xf32> to vector<6x16x1xf32>
    %40 = vector.extract_strided_slice %33 {offsets = [0, 0, 18], sizes = [6, 16, 1], strides = [1, 1, 1]} : vector<6x16x46xf32> to vector<6x16x1xf32>
    %41 = vector.extract_strided_slice %33 {offsets = [0, 0, 21], sizes = [6, 16, 1], strides = [1, 1, 1]} : vector<6x16x46xf32> to vector<6x16x1xf32>
    %42 = vector.extract_strided_slice %33 {offsets = [0, 0, 24], sizes = [6, 16, 1], strides = [1, 1, 1]} : vector<6x16x46xf32> to vector<6x16x1xf32>
    %43 = vector.extract_strided_slice %33 {offsets = [0, 0, 27], sizes = [6, 16, 1], strides = [1, 1, 1]} : vector<6x16x46xf32> to vector<6x16x1xf32>
    %44 = vector.extract_strided_slice %33 {offsets = [0, 0, 30], sizes = [6, 16, 1], strides = [1, 1, 1]} : vector<6x16x46xf32> to vector<6x16x1xf32>
    %45 = vector.extract_strided_slice %33 {offsets = [0, 0, 33], sizes = [6, 16, 1], strides = [1, 1, 1]} : vector<6x16x46xf32> to vector<6x16x1xf32>
    %46 = vector.extract_strided_slice %33 {offsets = [0, 0, 36], sizes = [6, 16, 1], strides = [1, 1, 1]} : vector<6x16x46xf32> to vector<6x16x1xf32>
    %47 = vector.extract_strided_slice %33 {offsets = [0, 0, 39], sizes = [6, 16, 1], strides = [1, 1, 1]} : vector<6x16x46xf32> to vector<6x16x1xf32>
    %48 = vector.extract_strided_slice %33 {offsets = [0, 0, 42], sizes = [6, 16, 1], strides = [1, 1, 1]} : vector<6x16x46xf32> to vector<6x16x1xf32>
    %49 = vector.extract_strided_slice %33 {offsets = [0, 0, 45], sizes = [6, 16, 1], strides = [1, 1, 1]} : vector<6x16x46xf32> to vector<6x16x1xf32>
    %50 = tpu.concatenate %34, %35, %36, %37, %38, %39, %40, %41, %42, %43, %44, %45, %46, %47, %48, %49 in 2 : vector<6x16x1xf32>, vector<6x16x1xf32>, vector<6x16x1xf32>, vector<6x16x1xf32>, vector<6x16x1xf32>, vector<6x16x1xf32>, vector<6x16x1xf32>, vector<6x16x1xf32>, vector<6x16x1xf32>, vector<6x16x1xf32>, vector<6x16x1xf32>, vector<6x16x1xf32>, vector<6x16x1xf32>, vector<6x16x1xf32>, vector<6x16x1xf32>, vector<6x16x1xf32> -> vector<6x16x16xf32>
    %cst = arith.constant 0xFF800000 : f32
    %51 = vector.broadcast %cst : f32 to vector<6x2x20xf32>
    %c0_24 = arith.constant 0 : index
    %c0_25 = arith.constant 0 : index
    %c0_26 = arith.constant 0 : index
    %52 = vector.load %arg3[%c0_24, %c0_25, %c0_26] : memref<6x20x20xf32, #tpu.memory_space<vmem>>, vector<6x2x20xf32>
    tpu.vector_store %arg3[%c0_24, %c0_25, %c0_26], %51 {strides = array<i32>} : memref<6x20x20xf32, #tpu.memory_space<vmem>>, vector<6x2x20xf32>,
    %cst_27 = arith.constant 0xFF800000 : f32
    %53 = vector.broadcast %cst_27 : f32 to vector<6x2x20xf32>
    %c0_28 = arith.constant 0 : index
    %c18 = arith.constant 18 : index
    %c0_29 = arith.constant 0 : index
    %54 = vector.load %arg3[%c0_28, %c18, %c0_29] : memref<6x20x20xf32, #tpu.memory_space<vmem>>, vector<6x2x20xf32>
    tpu.vector_store %arg3[%c0_28, %c18, %c0_29], %53 {strides = array<i32>} : memref<6x20x20xf32, #tpu.memory_space<vmem>>, vector<6x2x20xf32>,
    %cst_30 = arith.constant 0xFF800000 : f32
    %55 = vector.broadcast %cst_30 : f32 to vector<6x16x2xf32>
    %c0_31 = arith.constant 0 : index
    %c2_32 = arith.constant 2 : index
    %c0_33 = arith.constant 0 : index
    %56 = vector.load %arg3[%c0_31, %c2_32, %c0_33] : memref<6x20x20xf32, #tpu.memory_space<vmem>>, vector<6x16x2xf32>
    tpu.vector_store %arg3[%c0_31, %c2_32, %c0_33], %55 {strides = array<i32>} : memref<6x20x20xf32, #tpu.memory_space<vmem>>, vector<6x16x2xf32>,
    %cst_34 = arith.constant 0xFF800000 : f32
    %57 = vector.broadcast %cst_34 : f32 to vector<6x16x2xf32>
    %c0_35 = arith.constant 0 : index
    %c2_36 = arith.constant 2 : index
    %c18_37 = arith.constant 18 : index
    %58 = vector.load %arg3[%c0_35, %c2_36, %c18_37] : memref<6x20x20xf32, #tpu.memory_space<vmem>>, vector<6x16x2xf32>
    tpu.vector_store %arg3[%c0_35, %c2_36, %c18_37], %57 {strides = array<i32>} : memref<6x20x20xf32, #tpu.memory_space<vmem>>, vector<6x16x2xf32>,
    %c0_38 = arith.constant 0 : index
    %c2_39 = arith.constant 2 : index
    %c2_40 = arith.constant 2 : index
    %59 = vector.load %arg3[%c0_38, %c2_39, %c2_40] : memref<6x20x20xf32, #tpu.memory_space<vmem>>, vector<6x16x16xf32>
    tpu.vector_store %arg3[%c0_38, %c2_39, %c2_40], %50 {strides = array<i32>} : memref<6x20x20xf32, #tpu.memory_space<vmem>>, vector<6x16x16xf32>,
    %c0_41 = arith.constant 0 : index
    %c0_42 = arith.constant 0 : index
    %c0_43 = arith.constant 0 : index
    %60 = vector.load %arg3[%c0_41, %c0_42, %c0_43] : memref<6x20x20xf32, #tpu.memory_space<vmem>>, vector<6x17x17xf32>
    %c0_44 = arith.constant 0 : index
    %c0_45 = arith.constant 0 : index
    %c1_46 = arith.constant 1 : index
    %61 = vector.load %arg3[%c0_44, %c0_45, %c1_46] : memref<6x20x20xf32, #tpu.memory_space<vmem>>, vector<6x17x17xf32>
    %62 = arith.maximumf %60, %61 : vector<6x17x17xf32>
    %c0_47 = arith.constant 0 : index
    %c0_48 = arith.constant 0 : index
    %c2_49 = arith.constant 2 : index
    %63 = vector.load %arg3[%c0_47, %c0_48, %c2_49] : memref<6x20x20xf32, #tpu.memory_space<vmem>>, vector<6x17x17xf32>
    %64 = arith.maximumf %62, %63 : vector<6x17x17xf32>
    %c0_50 = arith.constant 0 : index
    %c0_51 = arith.constant 0 : index
    %c3 = arith.constant 3 : index
    %65 = vector.load %arg3[%c0_50, %c0_51, %c3] : memref<6x20x20xf32, #tpu.memory_space<vmem>>, vector<6x17x17xf32>
    %66 = arith.maximumf %64, %65 : vector<6x17x17xf32>
    %c0_52 = arith.constant 0 : index
    %c1_53 = arith.constant 1 : index
    %c0_54 = arith.constant 0 : index
    %67 = vector.load %arg3[%c0_52, %c1_53, %c0_54] : memref<6x20x20xf32, #tpu.memory_space<vmem>>, vector<6x17x17xf32>
    %68 = arith.maximumf %66, %67 : vector<6x17x17xf32>
    %c0_55 = arith.constant 0 : index
    %c1_56 = arith.constant 1 : index
    %c1_57 = arith.constant 1 : index
    %69 = vector.load %arg3[%c0_55, %c1_56, %c1_57] : memref<6x20x20xf32, #tpu.memory_space<vmem>>, vector<6x17x17xf32>
    %70 = arith.maximumf %68, %69 : vector<6x17x17xf32>
    %c0_58 = arith.constant 0 : index
    %c1_59 = arith.constant 1 : index
    %c2_60 = arith.constant 2 : index
    %71 = vector.load %arg3[%c0_58, %c1_59, %c2_60] : memref<6x20x20xf32, #tpu.memory_space<vmem>>, vector<6x17x17xf32>
    %72 = arith.maximumf %70, %71 : vector<6x17x17xf32>
    %c0_61 = arith.constant 0 : index
    %c1_62 = arith.constant 1 : index
    %c3_63 = arith.constant 3 : index
    %73 = vector.load %arg3[%c0_61, %c1_62, %c3_63] : memref<6x20x20xf32, #tpu.memory_space<vmem>>, vector<6x17x17xf32>
    %74 = arith.maximumf %72, %73 : vector<6x17x17xf32>
    %c0_64 = arith.constant 0 : index
    %c2_65 = arith.constant 2 : index
    %c0_66 = arith.constant 0 : index
    %75 = vector.load %arg3[%c0_64, %c2_65, %c0_66] : memref<6x20x20xf32, #tpu.memory_space<vmem>>, vector<6x17x17xf32>
    %76 = arith.maximumf %74, %75 : vector<6x17x17xf32>
    %c0_67 = arith.constant 0 : index
    %c2_68 = arith.constant 2 : index
    %c1_69 = arith.constant 1 : index
    %77 = vector.load %arg3[%c0_67, %c2_68, %c1_69] : memref<6x20x20xf32, #tpu.memory_space<vmem>>, vector<6x17x17xf32>
    %78 = arith.maximumf %76, %77 : vector<6x17x17xf32>
    %c0_70 = arith.constant 0 : index
    %c2_71 = arith.constant 2 : index
    %c2_72 = arith.constant 2 : index
    %79 = vector.load %arg3[%c0_70, %c2_71, %c2_72] : memref<6x20x20xf32, #tpu.memory_space<vmem>>, vector<6x17x17xf32>
    %80 = arith.maximumf %78, %79 : vector<6x17x17xf32>
    %c0_73 = arith.constant 0 : index
    %c2_74 = arith.constant 2 : index
    %c3_75 = arith.constant 3 : index
    %81 = vector.load %arg3[%c0_73, %c2_74, %c3_75] : memref<6x20x20xf32, #tpu.memory_space<vmem>>, vector<6x17x17xf32>
    %82 = arith.maximumf %80, %81 : vector<6x17x17xf32>
    %c0_76 = arith.constant 0 : index
    %c3_77 = arith.constant 3 : index
    %c0_78 = arith.constant 0 : index
    %83 = vector.load %arg3[%c0_76, %c3_77, %c0_78] : memref<6x20x20xf32, #tpu.memory_space<vmem>>, vector<6x17x17xf32>
    %84 = arith.maximumf %82, %83 : vector<6x17x17xf32>
    %c0_79 = arith.constant 0 : index
    %c3_80 = arith.constant 3 : index
    %c1_81 = arith.constant 1 : index
    %85 = vector.load %arg3[%c0_79, %c3_80, %c1_81] : memref<6x20x20xf32, #tpu.memory_space<vmem>>, vector<6x17x17xf32>
    %86 = arith.maximumf %84, %85 : vector<6x17x17xf32>
    %c0_82 = arith.constant 0 : index
    %c3_83 = arith.constant 3 : index
    %c2_84 = arith.constant 2 : index
    %87 = vector.load %arg3[%c0_82, %c3_83, %c2_84] : memref<6x20x20xf32, #tpu.memory_space<vmem>>, vector<6x17x17xf32>
    %88 = arith.maximumf %86, %87 : vector<6x17x17xf32>
    %c0_85 = arith.constant 0 : index
    %c3_86 = arith.constant 3 : index
    %c3_87 = arith.constant 3 : index
    %89 = vector.load %arg3[%c0_85, %c3_86, %c3_87] : memref<6x20x20xf32, #tpu.memory_space<vmem>>, vector<6x17x17xf32>
    %90 = arith.maximumf %88, %89 : vector<6x17x17xf32>
    %91 = vector.extract_strided_slice %90 {offsets = [0, 0, 0], sizes = [6, 1, 17], strides = [1, 1, 1]} : vector<6x17x17xf32> to vector<6x1x17xf32>
    %92 = vector.extract_strided_slice %90 {offsets = [0, 2, 0], sizes = [6, 1, 17], strides = [1, 1, 1]} : vector<6x17x17xf32> to vector<6x1x17xf32>
    %93 = vector.extract_strided_slice %90 {offsets = [0, 4, 0], sizes = [6, 1, 17], strides = [1, 1, 1]} : vector<6x17x17xf32> to vector<6x1x17xf32>
    %94 = vector.extract_strided_slice %90 {offsets = [0, 6, 0], sizes = [6, 1, 17], strides = [1, 1, 1]} : vector<6x17x17xf32> to vector<6x1x17xf32>
    %95 = vector.extract_strided_slice %90 {offsets = [0, 8, 0], sizes = [6, 1, 17], strides = [1, 1, 1]} : vector<6x17x17xf32> to vector<6x1x17xf32>
    %96 = vector.extract_strided_slice %90 {offsets = [0, 10, 0], sizes = [6, 1, 17], strides = [1, 1, 1]} : vector<6x17x17xf32> to vector<6x1x17xf32>
    %97 = vector.extract_strided_slice %90 {offsets = [0, 12, 0], sizes = [6, 1, 17], strides = [1, 1, 1]} : vector<6x17x17xf32> to vector<6x1x17xf32>
    %98 = vector.extract_strided_slice %90 {offsets = [0, 14, 0], sizes = [6, 1, 17], strides = [1, 1, 1]} : vector<6x17x17xf32> to vector<6x1x17xf32>
    %99 = vector.extract_strided_slice %90 {offsets = [0, 16, 0], sizes = [6, 1, 17], strides = [1, 1, 1]} : vector<6x17x17xf32> to vector<6x1x17xf32>
    %100 = tpu.concatenate %91, %92, %93, %94, %95, %96, %97, %98, %99 in 1 : vector<6x1x17xf32>, vector<6x1x17xf32>, vector<6x1x17xf32>, vector<6x1x17xf32>, vector<6x1x17xf32>, vector<6x1x17xf32>, vector<6x1x17xf32>, vector<6x1x17xf32>, vector<6x1x17xf32> -> vector<6x9x17xf32>
    %101 = vector.extract_strided_slice %100 {offsets = [0, 0, 0], sizes = [6, 9, 1], strides = [1, 1, 1]} : vector<6x9x17xf32> to vector<6x9x1xf32>
    %102 = vector.extract_strided_slice %100 {offsets = [0, 0, 2], sizes = [6, 9, 1], strides = [1, 1, 1]} : vector<6x9x17xf32> to vector<6x9x1xf32>
    %103 = vector.extract_strided_slice %100 {offsets = [0, 0, 4], sizes = [6, 9, 1], strides = [1, 1, 1]} : vector<6x9x17xf32> to vector<6x9x1xf32>
    %104 = vector.extract_strided_slice %100 {offsets = [0, 0, 6], sizes = [6, 9, 1], strides = [1, 1, 1]} : vector<6x9x17xf32> to vector<6x9x1xf32>
    %105 = vector.extract_strided_slice %100 {offsets = [0, 0, 8], sizes = [6, 9, 1], strides = [1, 1, 1]} : vector<6x9x17xf32> to vector<6x9x1xf32>
    %106 = vector.extract_strided_slice %100 {offsets = [0, 0, 10], sizes = [6, 9, 1], strides = [1, 1, 1]} : vector<6x9x17xf32> to vector<6x9x1xf32>
    %107 = vector.extract_strided_slice %100 {offsets = [0, 0, 12], sizes = [6, 9, 1], strides = [1, 1, 1]} : vector<6x9x17xf32> to vector<6x9x1xf32>
    %108 = vector.extract_strided_slice %100 {offsets = [0, 0, 14], sizes = [6, 9, 1], strides = [1, 1, 1]} : vector<6x9x17xf32> to vector<6x9x1xf32>
    %109 = vector.extract_strided_slice %100 {offsets = [0, 0, 16], sizes = [6, 9, 1], strides = [1, 1, 1]} : vector<6x9x17xf32> to vector<6x9x1xf32>
    %110 = tpu.concatenate %101, %102, %103, %104, %105, %106, %107, %108, %109 in 2 : vector<6x9x1xf32>, vector<6x9x1xf32>, vector<6x9x1xf32>, vector<6x9x1xf32>, vector<6x9x1xf32>, vector<6x9x1xf32>, vector<6x9x1xf32>, vector<6x9x1xf32>, vector<6x9x1xf32> -> vector<6x9x9xf32>
    %cst_88 = arith.constant 0xFF800000 : f32
    %111 = vector.broadcast %cst_88 : f32 to vector<6x9x1xf32>
    %c0_89 = arith.constant 0 : index
    %c0_90 = arith.constant 0 : index
    %c0_91 = arith.constant 0 : index
    %112 = vector.load %arg4[%c0_89, %c0_90, %c0_91] : memref<6x9x11xf32, #tpu.memory_space<vmem>>, vector<6x9x1xf32>
    tpu.vector_store %arg4[%c0_89, %c0_90, %c0_91], %111 {strides = array<i32>} : memref<6x9x11xf32, #tpu.memory_space<vmem>>, vector<6x9x1xf32>,
    %cst_92 = arith.constant 0xFF800000 : f32
    %113 = vector.broadcast %cst_92 : f32 to vector<6x9x1xf32>
    %c0_93 = arith.constant 0 : index
    %c0_94 = arith.constant 0 : index
    %c10 = arith.constant 10 : index
    %114 = vector.load %arg4[%c0_93, %c0_94, %c10] : memref<6x9x11xf32, #tpu.memory_space<vmem>>, vector<6x9x1xf32>
    tpu.vector_store %arg4[%c0_93, %c0_94, %c10], %113 {strides = array<i32>} : memref<6x9x11xf32, #tpu.memory_space<vmem>>, vector<6x9x1xf32>,
    %c0_95 = arith.constant 0 : index
    %c0_96 = arith.constant 0 : index
    %c1_97 = arith.constant 1 : index
    %115 = vector.load %arg4[%c0_95, %c0_96, %c1_97] : memref<6x9x11xf32, #tpu.memory_space<vmem>>, vector<6x9x9xf32>
    tpu.vector_store %arg4[%c0_95, %c0_96, %c1_97], %110 {strides = array<i32>} : memref<6x9x11xf32, #tpu.memory_space<vmem>>, vector<6x9x9xf32>,
    %c0_98 = arith.constant 0 : index
    %c0_99 = arith.constant 0 : index
    %c0_100 = arith.constant 0 : index
    %116 = vector.load %arg4[%c0_98, %c0_99, %c0_100] : memref<6x9x11xf32, #tpu.memory_space<vmem>>, vector<6x9x9xf32>
    %c0_101 = arith.constant 0 : index
    %c0_102 = arith.constant 0 : index
    %c1_103 = arith.constant 1 : index
    %117 = vector.load %arg4[%c0_101, %c0_102, %c1_103] : memref<6x9x11xf32, #tpu.memory_space<vmem>>, vector<6x9x9xf32>
    %118 = arith.maximumf %116, %117 : vector<6x9x9xf32>
    %c0_104 = arith.constant 0 : index
    %c0_105 = arith.constant 0 : index
    %c2_106 = arith.constant 2 : index
    %119 = vector.load %arg4[%c0_104, %c0_105, %c2_106] : memref<6x9x11xf32, #tpu.memory_space<vmem>>, vector<6x9x9xf32>
    %120 = arith.maximumf %118, %119 : vector<6x9x9xf32>
    %cst_107 = arith.constant 0xFF800000 : f32
    %121 = vector.broadcast %cst_107 : f32 to vector<6x1x13xf32>
    %c0_108 = arith.constant 0 : index
    %c0_109 = arith.constant 0 : index
    %c0_110 = arith.constant 0 : index
    %122 = vector.load %arg5[%c0_108, %c0_109, %c0_110] : memref<6x11x13xf32, #tpu.memory_space<vmem>>, vector<6x1x13xf32>
    tpu.vector_store %arg5[%c0_108, %c0_109, %c0_110], %121 {strides = array<i32>} : memref<6x11x13xf32, #tpu.memory_space<vmem>>, vector<6x1x13xf32>,
    %cst_111 = arith.constant 0xFF800000 : f32
    %123 = vector.broadcast %cst_111 : f32 to vector<6x1x13xf32>
    %c0_112 = arith.constant 0 : index
    %c10_113 = arith.constant 10 : index
    %c0_114 = arith.constant 0 : index
    %124 = vector.load %arg5[%c0_112, %c10_113, %c0_114] : memref<6x11x13xf32, #tpu.memory_space<vmem>>, vector<6x1x13xf32>
    tpu.vector_store %arg5[%c0_112, %c10_113, %c0_114], %123 {strides = array<i32>} : memref<6x11x13xf32, #tpu.memory_space<vmem>>, vector<6x1x13xf32>,
    %cst_115 = arith.constant 0xFF800000 : f32
    %125 = vector.broadcast %cst_115 : f32 to vector<6x9x2xf32>
    %c0_116 = arith.constant 0 : index
    %c1_117 = arith.constant 1 : index
    %c0_118 = arith.constant 0 : index
    %126 = vector.load %arg5[%c0_116, %c1_117, %c0_118] : memref<6x11x13xf32, #tpu.memory_space<vmem>>, vector<6x9x2xf32>
    tpu.vector_store %arg5[%c0_116, %c1_117, %c0_118], %125 {strides = array<i32>} : memref<6x11x13xf32, #tpu.memory_space<vmem>>, vector<6x9x2xf32>,
    %cst_119 = arith.constant 0xFF800000 : f32
    %127 = vector.broadcast %cst_119 : f32 to vector<6x9x2xf32>
    %c0_120 = arith.constant 0 : index
    %c1_121 = arith.constant 1 : index
    %c11 = arith.constant 11 : index
    %128 = vector.load %arg5[%c0_120, %c1_121, %c11] : memref<6x11x13xf32, #tpu.memory_space<vmem>>, vector<6x9x2xf32>
    tpu.vector_store %arg5[%c0_120, %c1_121, %c11], %127 {strides = array<i32>} : memref<6x11x13xf32, #tpu.memory_space<vmem>>, vector<6x9x2xf32>,
    %c0_122 = arith.constant 0 : index
    %c1_123 = arith.constant 1 : index
    %c2_124 = arith.constant 2 : index
    %129 = vector.load %arg5[%c0_122, %c1_123, %c2_124] : memref<6x11x13xf32, #tpu.memory_space<vmem>>, vector<6x9x9xf32>
    tpu.vector_store %arg5[%c0_122, %c1_123, %c2_124], %120 {strides = array<i32>} : memref<6x11x13xf32, #tpu.memory_space<vmem>>, vector<6x9x9xf32>,
    %c0_125 = arith.constant 0 : index
    %c0_126 = arith.constant 0 : index
    %c0_127 = arith.constant 0 : index
    %130 = vector.load %arg5[%c0_125, %c0_126, %c0_127] : memref<6x11x13xf32, #tpu.memory_space<vmem>>, vector<6x8x9xf32>
    %c0_128 = arith.constant 0 : index
    %c0_129 = arith.constant 0 : index
    %c1_130 = arith.constant 1 : index
    %131 = vector.load %arg5[%c0_128, %c0_129, %c1_130] : memref<6x11x13xf32, #tpu.memory_space<vmem>>, vector<6x8x9xf32>
    %132 = arith.maximumf %130, %131 : vector<6x8x9xf32>
    %c0_131 = arith.constant 0 : index
    %c0_132 = arith.constant 0 : index
    %c2_133 = arith.constant 2 : index
    %133 = vector.load %arg5[%c0_131, %c0_132, %c2_133] : memref<6x11x13xf32, #tpu.memory_space<vmem>>, vector<6x8x9xf32>
    %134 = arith.maximumf %132, %133 : vector<6x8x9xf32>
    %c0_134 = arith.constant 0 : index
    %c0_135 = arith.constant 0 : index
    %c3_136 = arith.constant 3 : index
    %135 = vector.load %arg5[%c0_134, %c0_135, %c3_136] : memref<6x11x13xf32, #tpu.memory_space<vmem>>, vector<6x8x9xf32>
    %136 = arith.maximumf %134, %135 : vector<6x8x9xf32>
    %c0_137 = arith.constant 0 : index
    %c0_138 = arith.constant 0 : index
    %c4 = arith.constant 4 : index
    %137 = vector.load %arg5[%c0_137, %c0_138, %c4] : memref<6x11x13xf32, #tpu.memory_space<vmem>>, vector<6x8x9xf32>
    %138 = arith.maximumf %136, %137 : vector<6x8x9xf32>
    %c0_139 = arith.constant 0 : index
    %c1_140 = arith.constant 1 : index
    %c0_141 = arith.constant 0 : index
    %139 = vector.load %arg5[%c0_139, %c1_140, %c0_141] : memref<6x11x13xf32, #tpu.memory_space<vmem>>, vector<6x8x9xf32>
    %140 = arith.maximumf %138, %139 : vector<6x8x9xf32>
    %c0_142 = arith.constant 0 : index
    %c1_143 = arith.constant 1 : index
    %c1_144 = arith.constant 1 : index
    %141 = vector.load %arg5[%c0_142, %c1_143, %c1_144] : memref<6x11x13xf32, #tpu.memory_space<vmem>>, vector<6x8x9xf32>
    %142 = arith.maximumf %140, %141 : vector<6x8x9xf32>
    %c0_145 = arith.constant 0 : index
    %c1_146 = arith.constant 1 : index
    %c2_147 = arith.constant 2 : index
    %143 = vector.load %arg5[%c0_145, %c1_146, %c2_147] : memref<6x11x13xf32, #tpu.memory_space<vmem>>, vector<6x8x9xf32>
    %144 = arith.maximumf %142, %143 : vector<6x8x9xf32>
    %c0_148 = arith.constant 0 : index
    %c1_149 = arith.constant 1 : index
    %c3_150 = arith.constant 3 : index
    %145 = vector.load %arg5[%c0_148, %c1_149, %c3_150] : memref<6x11x13xf32, #tpu.memory_space<vmem>>, vector<6x8x9xf32>
    %146 = arith.maximumf %144, %145 : vector<6x8x9xf32>
    %c0_151 = arith.constant 0 : index
    %c1_152 = arith.constant 1 : index
    %c4_153 = arith.constant 4 : index
    %147 = vector.load %arg5[%c0_151, %c1_152, %c4_153] : memref<6x11x13xf32, #tpu.memory_space<vmem>>, vector<6x8x9xf32>
    %148 = arith.maximumf %146, %147 : vector<6x8x9xf32>
    %c0_154 = arith.constant 0 : index
    %c2_155 = arith.constant 2 : index
    %c0_156 = arith.constant 0 : index
    %149 = vector.load %arg5[%c0_154, %c2_155, %c0_156] : memref<6x11x13xf32, #tpu.memory_space<vmem>>, vector<6x8x9xf32>
    %150 = arith.maximumf %148, %149 : vector<6x8x9xf32>
    %c0_157 = arith.constant 0 : index
    %c2_158 = arith.constant 2 : index
    %c1_159 = arith.constant 1 : index
    %151 = vector.load %arg5[%c0_157, %c2_158, %c1_159] : memref<6x11x13xf32, #tpu.memory_space<vmem>>, vector<6x8x9xf32>
    %152 = arith.maximumf %150, %151 : vector<6x8x9xf32>
    %c0_160 = arith.constant 0 : index
    %c2_161 = arith.constant 2 : index
    %c2_162 = arith.constant 2 : index
    %153 = vector.load %arg5[%c0_160, %c2_161, %c2_162] : memref<6x11x13xf32, #tpu.memory_space<vmem>>, vector<6x8x9xf32>
    %154 = arith.maximumf %152, %153 : vector<6x8x9xf32>
    %c0_163 = arith.constant 0 : index
    %c2_164 = arith.constant 2 : index
    %c3_165 = arith.constant 3 : index
    %155 = vector.load %arg5[%c0_163, %c2_164, %c3_165] : memref<6x11x13xf32, #tpu.memory_space<vmem>>, vector<6x8x9xf32>
    %156 = arith.maximumf %154, %155 : vector<6x8x9xf32>
    %c0_166 = arith.constant 0 : index
    %c2_167 = arith.constant 2 : index
    %c4_168 = arith.constant 4 : index
    %157 = vector.load %arg5[%c0_166, %c2_167, %c4_168] : memref<6x11x13xf32, #tpu.memory_space<vmem>>, vector<6x8x9xf32>
    %158 = arith.maximumf %156, %157 : vector<6x8x9xf32>
    %c0_169 = arith.constant 0 : index
    %c3_170 = arith.constant 3 : index
    %c0_171 = arith.constant 0 : index
    %159 = vector.load %arg5[%c0_169, %c3_170, %c0_171] : memref<6x11x13xf32, #tpu.memory_space<vmem>>, vector<6x8x9xf32>
    %160 = arith.maximumf %158, %159 : vector<6x8x9xf32>
    %c0_172 = arith.constant 0 : index
    %c3_173 = arith.constant 3 : index
    %c1_174 = arith.constant 1 : index
    %161 = vector.load %arg5[%c0_172, %c3_173, %c1_174] : memref<6x11x13xf32, #tpu.memory_space<vmem>>, vector<6x8x9xf32>
    %162 = arith.maximumf %160, %161 : vector<6x8x9xf32>
    %c0_175 = arith.constant 0 : index
    %c3_176 = arith.constant 3 : index
    %c2_177 = arith.constant 2 : index
    %163 = vector.load %arg5[%c0_175, %c3_176, %c2_177] : memref<6x11x13xf32, #tpu.memory_space<vmem>>, vector<6x8x9xf32>
    %164 = arith.maximumf %162, %163 : vector<6x8x9xf32>
    %c0_178 = arith.constant 0 : index
    %c3_179 = arith.constant 3 : index
    %c3_180 = arith.constant 3 : index
    %165 = vector.load %arg5[%c0_178, %c3_179, %c3_180] : memref<6x11x13xf32, #tpu.memory_space<vmem>>, vector<6x8x9xf32>
    %166 = arith.maximumf %164, %165 : vector<6x8x9xf32>
    %c0_181 = arith.constant 0 : index
    %c3_182 = arith.constant 3 : index
    %c4_183 = arith.constant 4 : index
    %167 = vector.load %arg5[%c0_181, %c3_182, %c4_183] : memref<6x11x13xf32, #tpu.memory_space<vmem>>, vector<6x8x9xf32>
    %168 = arith.maximumf %166, %167 : vector<6x8x9xf32>
    %169 = vector.extract_strided_slice %168 {offsets = [0, 0, 0], sizes = [6, 8, 1], strides = [1, 1, 1]} : vector<6x8x9xf32> to vector<6x8x1xf32>
    %170 = vector.extract_strided_slice %168 {offsets = [0, 0, 2], sizes = [6, 8, 1], strides = [1, 1, 1]} : vector<6x8x9xf32> to vector<6x8x1xf32>
    %171 = vector.extract_strided_slice %168 {offsets = [0, 0, 4], sizes = [6, 8, 1], strides = [1, 1, 1]} : vector<6x8x9xf32> to vector<6x8x1xf32>
    %172 = vector.extract_strided_slice %168 {offsets = [0, 0, 6], sizes = [6, 8, 1], strides = [1, 1, 1]} : vector<6x8x9xf32> to vector<6x8x1xf32>
    %173 = vector.extract_strided_slice %168 {offsets = [0, 0, 8], sizes = [6, 8, 1], strides = [1, 1, 1]} : vector<6x8x9xf32> to vector<6x8x1xf32>
    %174 = tpu.concatenate %169, %170, %171, %172, %173 in 2 : vector<6x8x1xf32>, vector<6x8x1xf32>, vector<6x8x1xf32>, vector<6x8x1xf32>, vector<6x8x1xf32> -> vector<6x8x5xf32>
    %cst_184 = arith.constant 0xFF800000 : f32
    %175 = vector.broadcast %cst_184 : f32 to vector<6x1x7xf32>
    %c0_185 = arith.constant 0 : index
    %c0_186 = arith.constant 0 : index
    %c0_187 = arith.constant 0 : index
    %176 = vector.load %arg6[%c0_185, %c0_186, %c0_187] : memref<6x10x7xf32, #tpu.memory_space<vmem>>, vector<6x1x7xf32>
    tpu.vector_store %arg6[%c0_185, %c0_186, %c0_187], %175 {strides = array<i32>} : memref<6x10x7xf32, #tpu.memory_space<vmem>>, vector<6x1x7xf32>,
    %cst_188 = arith.constant 0xFF800000 : f32
    %177 = vector.broadcast %cst_188 : f32 to vector<6x1x7xf32>
    %c0_189 = arith.constant 0 : index
    %c9 = arith.constant 9 : index
    %c0_190 = arith.constant 0 : index
    %178 = vector.load %arg6[%c0_189, %c9, %c0_190] : memref<6x10x7xf32, #tpu.memory_space<vmem>>, vector<6x1x7xf32>
    tpu.vector_store %arg6[%c0_189, %c9, %c0_190], %177 {strides = array<i32>} : memref<6x10x7xf32, #tpu.memory_space<vmem>>, vector<6x1x7xf32>,
    %cst_191 = arith.constant 0xFF800000 : f32
    %179 = vector.broadcast %cst_191 : f32 to vector<6x8x1xf32>
    %c0_192 = arith.constant 0 : index
    %c1_193 = arith.constant 1 : index
    %c0_194 = arith.constant 0 : index
    %180 = vector.load %arg6[%c0_192, %c1_193, %c0_194] : memref<6x10x7xf32, #tpu.memory_space<vmem>>, vector<6x8x1xf32>
    tpu.vector_store %arg6[%c0_192, %c1_193, %c0_194], %179 {strides = array<i32>} : memref<6x10x7xf32, #tpu.memory_space<vmem>>, vector<6x8x1xf32>,
    %cst_195 = arith.constant 0xFF800000 : f32
    %181 = vector.broadcast %cst_195 : f32 to vector<6x8x1xf32>
    %c0_196 = arith.constant 0 : index
    %c1_197 = arith.constant 1 : index
    %c6 = arith.constant 6 : index
    %182 = vector.load %arg6[%c0_196, %c1_197, %c6] : memref<6x10x7xf32, #tpu.memory_space<vmem>>, vector<6x8x1xf32>
    tpu.vector_store %arg6[%c0_196, %c1_197, %c6], %181 {strides = array<i32>} : memref<6x10x7xf32, #tpu.memory_space<vmem>>, vector<6x8x1xf32>,
    %c0_198 = arith.constant 0 : index
    %c1_199 = arith.constant 1 : index
    %c1_200 = arith.constant 1 : index
    %183 = vector.load %arg6[%c0_198, %c1_199, %c1_200] : memref<6x10x7xf32, #tpu.memory_space<vmem>>, vector<6x8x5xf32>
    tpu.vector_store %arg6[%c0_198, %c1_199, %c1_200], %174 {strides = array<i32>} : memref<6x10x7xf32, #tpu.memory_space<vmem>>, vector<6x8x5xf32>,
    %c0_201 = arith.constant 0 : index
    %c0_202 = arith.constant 0 : index
    %c0_203 = arith.constant 0 : index
    %184 = vector.load %arg6[%c0_201, %c0_202, %c0_203] : memref<6x10x7xf32, #tpu.memory_space<vmem>>, vector<6x9x3xf32>
    %c0_204 = arith.constant 0 : index
    %c0_205 = arith.constant 0 : index
    %c2_206 = arith.constant 2 : index
    %185 = vector.load %arg6[%c0_204, %c0_205, %c2_206] : memref<6x10x7xf32, #tpu.memory_space<vmem>>, vector<6x9x3xf32>
    %186 = arith.maximumf %184, %185 : vector<6x9x3xf32>
    %c0_207 = arith.constant 0 : index
    %c0_208 = arith.constant 0 : index
    %c4_209 = arith.constant 4 : index
    %187 = vector.load %arg6[%c0_207, %c0_208, %c4_209] : memref<6x10x7xf32, #tpu.memory_space<vmem>>, vector<6x9x3xf32>
    %188 = arith.maximumf %186, %187 : vector<6x9x3xf32>
    %c0_210 = arith.constant 0 : index
    %c1_211 = arith.constant 1 : index
    %c0_212 = arith.constant 0 : index
    %189 = vector.load %arg6[%c0_210, %c1_211, %c0_212] : memref<6x10x7xf32, #tpu.memory_space<vmem>>, vector<6x9x3xf32>
    %190 = arith.maximumf %188, %189 : vector<6x9x3xf32>
    %c0_213 = arith.constant 0 : index
    %c1_214 = arith.constant 1 : index
    %c2_215 = arith.constant 2 : index
    %191 = vector.load %arg6[%c0_213, %c1_214, %c2_215] : memref<6x10x7xf32, #tpu.memory_space<vmem>>, vector<6x9x3xf32>
    %192 = arith.maximumf %190, %191 : vector<6x9x3xf32>
    %c0_216 = arith.constant 0 : index
    %c1_217 = arith.constant 1 : index
    %c4_218 = arith.constant 4 : index
    %193 = vector.load %arg6[%c0_216, %c1_217, %c4_218] : memref<6x10x7xf32, #tpu.memory_space<vmem>>, vector<6x9x3xf32>
    %194 = arith.maximumf %192, %193 : vector<6x9x3xf32>
    %c0_219 = arith.constant 0 : index
    %c0_220 = arith.constant 0 : index
    %c0_221 = arith.constant 0 : index
    %195 = vector.load %arg7[%c0_219, %c0_220, %c0_221] : memref<6x9x3xf32, #tpu.memory_space<vmem>>, vector<6x9x3xf32>
    tpu.vector_store %arg7[%c0_219, %c0_220, %c0_221], %194 {strides = array<i32>} : memref<6x9x3xf32, #tpu.memory_space<vmem>>, vector<6x9x3xf32>,
    %c0_222 = arith.constant 0 : index
    %c0_223 = arith.constant 0 : index
    %c0_224 = arith.constant 0 : index
    %196 = vector.load %arg7[%c0_222, %c0_223, %c0_224] : memref<6x9x3xf32, #tpu.memory_space<vmem>>, vector<6x8x2xf32>
    %c0_225 = arith.constant 0 : index
    %c0_226 = arith.constant 0 : index
    %c1_227 = arith.constant 1 : index
    %197 = vector.load %arg7[%c0_225, %c0_226, %c1_227] : memref<6x9x3xf32, #tpu.memory_space<vmem>>, vector<6x8x2xf32>
    %198 = arith.maximumf %196, %197 : vector<6x8x2xf32>
    %c0_228 = arith.constant 0 : index
    %c1_229 = arith.constant 1 : index
    %c0_230 = arith.constant 0 : index
    %199 = vector.load %arg7[%c0_228, %c1_229, %c0_230] : memref<6x9x3xf32, #tpu.memory_space<vmem>>, vector<6x8x2xf32>
    %200 = arith.maximumf %198, %199 : vector<6x8x2xf32>
    %c0_231 = arith.constant 0 : index
    %c1_232 = arith.constant 1 : index
    %c1_233 = arith.constant 1 : index
    %201 = vector.load %arg7[%c0_231, %c1_232, %c1_233] : memref<6x9x3xf32, #tpu.memory_space<vmem>>, vector<6x8x2xf32>
    %202 = arith.maximumf %200, %201 : vector<6x8x2xf32>
    %cst_234 = arith.constant 0xFF800000 : f32
    %203 = vector.broadcast %cst_234 : f32 to vector<6x2x6xf32>
    %c0_235 = arith.constant 0 : index
    %c0_236 = arith.constant 0 : index
    %c0_237 = arith.constant 0 : index
    %204 = vector.load %arg8[%c0_235, %c0_236, %c0_237] : memref<6x12x6xf32, #tpu.memory_space<vmem>>, vector<6x2x6xf32>
    tpu.vector_store %arg8[%c0_235, %c0_236, %c0_237], %203 {strides = array<i32>} : memref<6x12x6xf32, #tpu.memory_space<vmem>>, vector<6x2x6xf32>,
    %cst_238 = arith.constant 0xFF800000 : f32
    %205 = vector.broadcast %cst_238 : f32 to vector<6x2x6xf32>
    %c0_239 = arith.constant 0 : index
    %c10_240 = arith.constant 10 : index
    %c0_241 = arith.constant 0 : index
    %206 = vector.load %arg8[%c0_239, %c10_240, %c0_241] : memref<6x12x6xf32, #tpu.memory_space<vmem>>, vector<6x2x6xf32>
    tpu.vector_store %arg8[%c0_239, %c10_240, %c0_241], %205 {strides = array<i32>} : memref<6x12x6xf32, #tpu.memory_space<vmem>>, vector<6x2x6xf32>,
    %cst_242 = arith.constant 0xFF800000 : f32
    %207 = vector.broadcast %cst_242 : f32 to vector<6x8x2xf32>
    %c0_243 = arith.constant 0 : index
    %c2_244 = arith.constant 2 : index
    %c0_245 = arith.constant 0 : index
    %208 = vector.load %arg8[%c0_243, %c2_244, %c0_245] : memref<6x12x6xf32, #tpu.memory_space<vmem>>, vector<6x8x2xf32>
    tpu.vector_store %arg8[%c0_243, %c2_244, %c0_245], %207 {strides = array<i32>} : memref<6x12x6xf32, #tpu.memory_space<vmem>>, vector<6x8x2xf32>,
    %cst_246 = arith.constant 0xFF800000 : f32
    %209 = vector.broadcast %cst_246 : f32 to vector<6x8x2xf32>
    %c0_247 = arith.constant 0 : index
    %c2_248 = arith.constant 2 : index
    %c4_249 = arith.constant 4 : index
    %210 = vector.load %arg8[%c0_247, %c2_248, %c4_249] : memref<6x12x6xf32, #tpu.memory_space<vmem>>, vector<6x8x2xf32>
    tpu.vector_store %arg8[%c0_247, %c2_248, %c4_249], %209 {strides = array<i32>} : memref<6x12x6xf32, #tpu.memory_space<vmem>>, vector<6x8x2xf32>,
    %c0_250 = arith.constant 0 : index
    %c2_251 = arith.constant 2 : index
    %c2_252 = arith.constant 2 : index
    %211 = vector.load %arg8[%c0_250, %c2_251, %c2_252] : memref<6x12x6xf32, #tpu.memory_space<vmem>>, vector<6x8x2xf32>
    tpu.vector_store %arg8[%c0_250, %c2_251, %c2_252], %202 {strides = array<i32>} : memref<6x12x6xf32, #tpu.memory_space<vmem>>, vector<6x8x2xf32>,
    %212 = tpu.iota {dimensions = array<i32: 1>} : vector<6x8x3xi32>
    %213 = tpu.iota {dimensions = array<i32: 2>} : vector<6x8x3xi32>
    %c2_i32 = arith.constant 2 : i32
    %214 = vector.broadcast %c2_i32 : i32 to vector<6x8x3xi32>
    %215 = arith.muli %212, %214 : vector<6x8x3xi32>
    %216 = arith.addi %215, %213 : vector<6x8x3xi32>
    %cst_253 = arith.constant 0xFF800000 : f32
    %217 = vector.broadcast %cst_253 : f32 to vector<6x8x3xf32>
    %c0_i32 = arith.constant 0 : i32
    %218 = vector.broadcast %c0_i32 : i32 to vector<6x8x3xi32>
    %c0_254 = arith.constant 0 : index
    %c0_255 = arith.constant 0 : index
    %c0_256 = arith.constant 0 : index
    %219 = vector.load %arg8[%c0_254, %c0_255, %c0_256] : memref<6x12x6xf32, #tpu.memory_space<vmem>>, vector<6x8x3xf32>
    %220 = arith.cmpf ogt, %219, %217 : vector<6x8x3xf32>
    %c-6_i32 = arith.constant -6 : i32
    %221 = vector.broadcast %c-6_i32 : i32 to vector<6x8x3xi32>
    %222 = arith.addi %216, %221 : vector<6x8x3xi32>
    %223 = arith.select %220, %222, %218 : vector<6x8x3xi1>, vector<6x8x3xi32>
    %224 = arith.select %220, %219, %217 : vector<6x8x3xi1>, vector<6x8x3xf32>
    %c0_257 = arith.constant 0 : index
    %c0_258 = arith.constant 0 : index
    %c1_259 = arith.constant 1 : index
    %225 = vector.load %arg8[%c0_257, %c0_258, %c1_259] : memref<6x12x6xf32, #tpu.memory_space<vmem>>, vector<6x8x3xf32>
    %226 = arith.cmpf ogt, %225, %224 : vector<6x8x3xf32>
    %c-5_i32 = arith.constant -5 : i32
    %227 = vector.broadcast %c-5_i32 : i32 to vector<6x8x3xi32>
    %228 = arith.addi %216, %227 : vector<6x8x3xi32>
    %229 = arith.select %226, %228, %223 : vector<6x8x3xi1>, vector<6x8x3xi32>
    %230 = arith.select %226, %225, %224 : vector<6x8x3xi1>, vector<6x8x3xf32>
    %c0_260 = arith.constant 0 : index
    %c0_261 = arith.constant 0 : index
    %c2_262 = arith.constant 2 : index
    %231 = vector.load %arg8[%c0_260, %c0_261, %c2_262] : memref<6x12x6xf32, #tpu.memory_space<vmem>>, vector<6x8x3xf32>
    %232 = arith.cmpf ogt, %231, %230 : vector<6x8x3xf32>
    %c-4_i32 = arith.constant -4 : i32
    %233 = vector.broadcast %c-4_i32 : i32 to vector<6x8x3xi32>
    %234 = arith.addi %216, %233 : vector<6x8x3xi32>
    %235 = arith.select %232, %234, %229 : vector<6x8x3xi1>, vector<6x8x3xi32>
    %236 = arith.select %232, %231, %230 : vector<6x8x3xi1>, vector<6x8x3xf32>
    %c0_263 = arith.constant 0 : index
    %c0_264 = arith.constant 0 : index
    %c3_265 = arith.constant 3 : index
    %237 = vector.load %arg8[%c0_263, %c0_264, %c3_265] : memref<6x12x6xf32, #tpu.memory_space<vmem>>, vector<6x8x3xf32>
    %238 = arith.cmpf ogt, %237, %236 : vector<6x8x3xf32>
    %c-3_i32 = arith.constant -3 : i32
    %239 = vector.broadcast %c-3_i32 : i32 to vector<6x8x3xi32>
    %240 = arith.addi %216, %239 : vector<6x8x3xi32>
    %241 = arith.select %238, %240, %235 : vector<6x8x3xi1>, vector<6x8x3xi32>
    %242 = arith.select %238, %237, %236 : vector<6x8x3xi1>, vector<6x8x3xf32>
    %c0_266 = arith.constant 0 : index
    %c1_267 = arith.constant 1 : index
    %c0_268 = arith.constant 0 : index
    %243 = vector.load %arg8[%c0_266, %c1_267, %c0_268] : memref<6x12x6xf32, #tpu.memory_space<vmem>>, vector<6x8x3xf32>
    %244 = arith.cmpf ogt, %243, %242 : vector<6x8x3xf32>
    %c-4_i32_269 = arith.constant -4 : i32
    %245 = vector.broadcast %c-4_i32_269 : i32 to vector<6x8x3xi32>
    %246 = arith.addi %216, %245 : vector<6x8x3xi32>
    %247 = arith.select %244, %246, %241 : vector<6x8x3xi1>, vector<6x8x3xi32>
    %248 = arith.select %244, %243, %242 : vector<6x8x3xi1>, vector<6x8x3xf32>
    %c0_270 = arith.constant 0 : index
    %c1_271 = arith.constant 1 : index
    %c1_272 = arith.constant 1 : index
    %249 = vector.load %arg8[%c0_270, %c1_271, %c1_272] : memref<6x12x6xf32, #tpu.memory_space<vmem>>, vector<6x8x3xf32>
    %250 = arith.cmpf ogt, %249, %248 : vector<6x8x3xf32>
    %c-3_i32_273 = arith.constant -3 : i32
    %251 = vector.broadcast %c-3_i32_273 : i32 to vector<6x8x3xi32>
    %252 = arith.addi %216, %251 : vector<6x8x3xi32>
    %253 = arith.select %250, %252, %247 : vector<6x8x3xi1>, vector<6x8x3xi32>
    %254 = arith.select %250, %249, %248 : vector<6x8x3xi1>, vector<6x8x3xf32>
    %c0_274 = arith.constant 0 : index
    %c1_275 = arith.constant 1 : index
    %c2_276 = arith.constant 2 : index
    %255 = vector.load %arg8[%c0_274, %c1_275, %c2_276] : memref<6x12x6xf32, #tpu.memory_space<vmem>>, vector<6x8x3xf32>
    %256 = arith.cmpf ogt, %255, %254 : vector<6x8x3xf32>
    %c-2_i32 = arith.constant -2 : i32
    %257 = vector.broadcast %c-2_i32 : i32 to vector<6x8x3xi32>
    %258 = arith.addi %216, %257 : vector<6x8x3xi32>
    %259 = arith.select %256, %258, %253 : vector<6x8x3xi1>, vector<6x8x3xi32>
    %260 = arith.select %256, %255, %254 : vector<6x8x3xi1>, vector<6x8x3xf32>
    %c0_277 = arith.constant 0 : index
    %c1_278 = arith.constant 1 : index
    %c3_279 = arith.constant 3 : index
    %261 = vector.load %arg8[%c0_277, %c1_278, %c3_279] : memref<6x12x6xf32, #tpu.memory_space<vmem>>, vector<6x8x3xf32>
    %262 = arith.cmpf ogt, %261, %260 : vector<6x8x3xf32>
    %c-1_i32 = arith.constant -1 : i32
    %263 = vector.broadcast %c-1_i32 : i32 to vector<6x8x3xi32>
    %264 = arith.addi %216, %263 : vector<6x8x3xi32>
    %265 = arith.select %262, %264, %259 : vector<6x8x3xi1>, vector<6x8x3xi32>
    %266 = arith.select %262, %261, %260 : vector<6x8x3xi1>, vector<6x8x3xf32>
    %c0_280 = arith.constant 0 : index
    %c2_281 = arith.constant 2 : index
    %c0_282 = arith.constant 0 : index
    %267 = vector.load %arg8[%c0_280, %c2_281, %c0_282] : memref<6x12x6xf32, #tpu.memory_space<vmem>>, vector<6x8x3xf32>
    %268 = arith.cmpf ogt, %267, %266 : vector<6x8x3xf32>
    %c-2_i32_283 = arith.constant -2 : i32
    %269 = vector.broadcast %c-2_i32_283 : i32 to vector<6x8x3xi32>
    %270 = arith.addi %216, %269 : vector<6x8x3xi32>
    %271 = arith.select %268, %270, %265 : vector<6x8x3xi1>, vector<6x8x3xi32>
    %272 = arith.select %268, %267, %266 : vector<6x8x3xi1>, vector<6x8x3xf32>
    %c0_284 = arith.constant 0 : index
    %c2_285 = arith.constant 2 : index
    %c1_286 = arith.constant 1 : index
    %273 = vector.load %arg8[%c0_284, %c2_285, %c1_286] : memref<6x12x6xf32, #tpu.memory_space<vmem>>, vector<6x8x3xf32>
    %274 = arith.cmpf ogt, %273, %272 : vector<6x8x3xf32>
    %c-1_i32_287 = arith.constant -1 : i32
    %275 = vector.broadcast %c-1_i32_287 : i32 to vector<6x8x3xi32>
    %276 = arith.addi %216, %275 : vector<6x8x3xi32>
    %277 = arith.select %274, %276, %271 : vector<6x8x3xi1>, vector<6x8x3xi32>
    %278 = arith.select %274, %273, %272 : vector<6x8x3xi1>, vector<6x8x3xf32>
    %c0_288 = arith.constant 0 : index
    %c2_289 = arith.constant 2 : index
    %c2_290 = arith.constant 2 : index
    %279 = vector.load %arg8[%c0_288, %c2_289, %c2_290] : memref<6x12x6xf32, #tpu.memory_space<vmem>>, vector<6x8x3xf32>
    %280 = arith.cmpf ogt, %279, %278 : vector<6x8x3xf32>
    %c0_i32_291 = arith.constant 0 : i32
    %281 = vector.broadcast %c0_i32_291 : i32 to vector<6x8x3xi32>
    %282 = arith.addi %216, %281 : vector<6x8x3xi32>
    %283 = arith.select %280, %282, %277 : vector<6x8x3xi1>, vector<6x8x3xi32>
    %284 = arith.select %280, %279, %278 : vector<6x8x3xi1>, vector<6x8x3xf32>
    %c0_292 = arith.constant 0 : index
    %c2_293 = arith.constant 2 : index
    %c3_294 = arith.constant 3 : index
    %285 = vector.load %arg8[%c0_292, %c2_293, %c3_294] : memref<6x12x6xf32, #tpu.memory_space<vmem>>, vector<6x8x3xf32>
    %286 = arith.cmpf ogt, %285, %284 : vector<6x8x3xf32>
    %c1_i32 = arith.constant 1 : i32
    %287 = vector.broadcast %c1_i32 : i32 to vector<6x8x3xi32>
    %288 = arith.addi %216, %287 : vector<6x8x3xi32>
    %289 = arith.select %286, %288, %283 : vector<6x8x3xi1>, vector<6x8x3xi32>
    %290 = arith.select %286, %285, %284 : vector<6x8x3xi1>, vector<6x8x3xf32>
    %c0_295 = arith.constant 0 : index
    %c3_296 = arith.constant 3 : index
    %c0_297 = arith.constant 0 : index
    %291 = vector.load %arg8[%c0_295, %c3_296, %c0_297] : memref<6x12x6xf32, #tpu.memory_space<vmem>>, vector<6x8x3xf32>
    %292 = arith.cmpf ogt, %291, %290 : vector<6x8x3xf32>
    %c0_i32_298 = arith.constant 0 : i32
    %293 = vector.broadcast %c0_i32_298 : i32 to vector<6x8x3xi32>
    %294 = arith.addi %216, %293 : vector<6x8x3xi32>
    %295 = arith.select %292, %294, %289 : vector<6x8x3xi1>, vector<6x8x3xi32>
    %296 = arith.select %292, %291, %290 : vector<6x8x3xi1>, vector<6x8x3xf32>
    %c0_299 = arith.constant 0 : index
    %c3_300 = arith.constant 3 : index
    %c1_301 = arith.constant 1 : index
    %297 = vector.load %arg8[%c0_299, %c3_300, %c1_301] : memref<6x12x6xf32, #tpu.memory_space<vmem>>, vector<6x8x3xf32>
    %298 = arith.cmpf ogt, %297, %296 : vector<6x8x3xf32>
    %c1_i32_302 = arith.constant 1 : i32
    %299 = vector.broadcast %c1_i32_302 : i32 to vector<6x8x3xi32>
    %300 = arith.addi %216, %299 : vector<6x8x3xi32>
    %301 = arith.select %298, %300, %295 : vector<6x8x3xi1>, vector<6x8x3xi32>
    %302 = arith.select %298, %297, %296 : vector<6x8x3xi1>, vector<6x8x3xf32>
    %c0_303 = arith.constant 0 : index
    %c3_304 = arith.constant 3 : index
    %c2_305 = arith.constant 2 : index
    %303 = vector.load %arg8[%c0_303, %c3_304, %c2_305] : memref<6x12x6xf32, #tpu.memory_space<vmem>>, vector<6x8x3xf32>
    %304 = arith.cmpf ogt, %303, %302 : vector<6x8x3xf32>
    %c2_i32_306 = arith.constant 2 : i32
    %305 = vector.broadcast %c2_i32_306 : i32 to vector<6x8x3xi32>
    %306 = arith.addi %216, %305 : vector<6x8x3xi32>
    %307 = arith.select %304, %306, %301 : vector<6x8x3xi1>, vector<6x8x3xi32>
    %308 = arith.select %304, %303, %302 : vector<6x8x3xi1>, vector<6x8x3xf32>
    %c0_307 = arith.constant 0 : index
    %c3_308 = arith.constant 3 : index
    %c3_309 = arith.constant 3 : index
    %309 = vector.load %arg8[%c0_307, %c3_308, %c3_309] : memref<6x12x6xf32, #tpu.memory_space<vmem>>, vector<6x8x3xf32>
    %310 = arith.cmpf ogt, %309, %308 : vector<6x8x3xf32>
    %c3_i32 = arith.constant 3 : i32
    %311 = vector.broadcast %c3_i32 : i32 to vector<6x8x3xi32>
    %312 = arith.addi %216, %311 : vector<6x8x3xi32>
    %313 = arith.select %310, %312, %307 : vector<6x8x3xi1>, vector<6x8x3xi32>
    %314 = arith.select %310, %309, %308 : vector<6x8x3xi1>, vector<6x8x3xf32>
    %c0_310 = arith.constant 0 : index
    %c4_311 = arith.constant 4 : index
    %c0_312 = arith.constant 0 : index
    %315 = vector.load %arg8[%c0_310, %c4_311, %c0_312] : memref<6x12x6xf32, #tpu.memory_space<vmem>>, vector<6x8x3xf32>
    %316 = arith.cmpf ogt, %315, %314 : vector<6x8x3xf32>
    %c2_i32_313 = arith.constant 2 : i32
    %317 = vector.broadcast %c2_i32_313 : i32 to vector<6x8x3xi32>
    %318 = arith.addi %216, %317 : vector<6x8x3xi32>
    %319 = arith.select %316, %318, %313 : vector<6x8x3xi1>, vector<6x8x3xi32>
    %320 = arith.select %316, %315, %314 : vector<6x8x3xi1>, vector<6x8x3xf32>
    %c0_314 = arith.constant 0 : index
    %c4_315 = arith.constant 4 : index
    %c1_316 = arith.constant 1 : index
    %321 = vector.load %arg8[%c0_314, %c4_315, %c1_316] : memref<6x12x6xf32, #tpu.memory_space<vmem>>, vector<6x8x3xf32>
    %322 = arith.cmpf ogt, %321, %320 : vector<6x8x3xf32>
    %c3_i32_317 = arith.constant 3 : i32
    %323 = vector.broadcast %c3_i32_317 : i32 to vector<6x8x3xi32>
    %324 = arith.addi %216, %323 : vector<6x8x3xi32>
    %325 = arith.select %322, %324, %319 : vector<6x8x3xi1>, vector<6x8x3xi32>
    %326 = arith.select %322, %321, %320 : vector<6x8x3xi1>, vector<6x8x3xf32>
    %c0_318 = arith.constant 0 : index
    %c4_319 = arith.constant 4 : index
    %c2_320 = arith.constant 2 : index
    %327 = vector.load %arg8[%c0_318, %c4_319, %c2_320] : memref<6x12x6xf32, #tpu.memory_space<vmem>>, vector<6x8x3xf32>
    %328 = arith.cmpf ogt, %327, %326 : vector<6x8x3xf32>
    %c4_i32 = arith.constant 4 : i32
    %329 = vector.broadcast %c4_i32 : i32 to vector<6x8x3xi32>
    %330 = arith.addi %216, %329 : vector<6x8x3xi32>
    %331 = arith.select %328, %330, %325 : vector<6x8x3xi1>, vector<6x8x3xi32>
    %332 = arith.select %328, %327, %326 : vector<6x8x3xi1>, vector<6x8x3xf32>
    %c0_321 = arith.constant 0 : index
    %c4_322 = arith.constant 4 : index
    %c3_323 = arith.constant 3 : index
    %333 = vector.load %arg8[%c0_321, %c4_322, %c3_323] : memref<6x12x6xf32, #tpu.memory_space<vmem>>, vector<6x8x3xf32>
    %334 = arith.cmpf ogt, %333, %332 : vector<6x8x3xf32>
    %c5_i32 = arith.constant 5 : i32
    %335 = vector.broadcast %c5_i32 : i32 to vector<6x8x3xi32>
    %336 = arith.addi %216, %335 : vector<6x8x3xi32>
    %337 = arith.select %334, %336, %331 : vector<6x8x3xi1>, vector<6x8x3xi32>
    %338 = arith.select %334, %333, %332 : vector<6x8x3xi1>, vector<6x8x3xf32>
    %c0_324 = arith.constant 0 : index
    %c0_325 = arith.constant 0 : index
    %c0_326 = arith.constant 0 : index
    %339 = vector.load %arg1[%c0_324, %c0_325, %c0_326] : memref<6x8x3xf32, #tpu.memory_space<vmem>>, vector<6x8x3xf32>
    tpu.vector_store %arg1[%c0_324, %c0_325, %c0_326], %338 {strides = array<i32>} : memref<6x8x3xf32, #tpu.memory_space<vmem>>, vector<6x8x3xf32>,
    %c0_327 = arith.constant 0 : index
    %c0_328 = arith.constant 0 : index
    %c0_329 = arith.constant 0 : index
    %340 = vector.load %arg2[%c0_327, %c0_328, %c0_329] : memref<6x8x3xi32, #tpu.memory_space<vmem>>, vector<6x8x3xi32>
    tpu.vector_store %arg2[%c0_327, %c0_328, %c0_329], %337 {strides = array<i32>} : memref<6x8x3xi32, #tpu.memory_space<vmem>>, vector<6x8x3xi32>,
    return
  }
}

</mosaic_0001>

<llo_original>
// kernel: model_forward.1
$region0: #{model_forward.1}
  #allocation0 [shape = 'u32[]', space=smem, size = 0x4, offset = 0x4, fixed_abs, tag = 'smem constant byte address 0x4 - core index']
  #allocation1 [shape = 'u32[72,128]{1,0:T(1,128)}', space=vmem, size = 0x9000, scoped, tag = 'internal scratch']
  #allocation2 [shape = 'f32[6,20,20]{2,1,0:T(8,128)}', space=vmem, size = 0x12000, scoped, tag = 'scratch operand']
  #allocation3 [shape = 'f32[6,9,11]{2,1,0:T(8,128)}', space=vmem, size = 0xc000, scoped, tag = 'scratch operand']
  #allocation4 [shape = 'f32[6,11,13]{2,1,0:T(8,128)}', space=vmem, size = 0xc000, scoped, tag = 'scratch operand']
  #allocation5 [shape = 'f32[6,10,7]{2,1,0:T(8,128)}', space=vmem, size = 0xc000, scoped, tag = 'scratch operand']
  #allocation6 [shape = 'f32[6,9,3]{2,1,0:T(8,128)}', space=vmem, size = 0xc000, scoped, tag = 'scratch operand']
  #allocation7 [shape = 'f32[6,12,6]{2,1,0:T(8,128)}', space=vmem, size = 0xc000, scoped, tag = 'scratch operand']
  %s0 = inlined_call_operand.hbm [shape: f32[6,48,48], index: 0, kind: input, shape index: {}]
  %s1 = inlined_call_operand.vmem [shape: f32[6,8,3], index: 1, kind: output, shape index: {0}]
  %s2 = inlined_call_operand.vmem [shape: s32[6,8,3], index: 2, kind: output, shape index: {1}]
  %3 = xla_tuple %s1, %s2
  %s4 = sld [smem:[#allocation0]]
  $region26: #{model_forward.1} parent=0
    _
  %s6 = ssub.s32 1, %s4
  %s7 = scalar_select 0, %s6, %s4
  $region1: #{model_forward.1} parent=0
    #allocation8 [shape = 'u8[147456]{0}', space=vmem, size = 0x24000, scoped, tag = 'input window, operand 0, single buffered']
    #allocation9 [shape = 's32[1]{0}', space=sflag, size = 0x4, scoped, tag = 'scoped memory for model_forward.1']
    %8 = vsyncpa [#allocation9], 0
    // Predicated region
    $region2: #{model_forward.1} parent=1 // pred_check
      _
    $region3: #{model_forward.1} parent=1 // pred_check_branch
      %10 = sbr.rel (0) target = $region5
    $region4: #{model_forward.1} parent=1 // pred_region
      %12 = vsyncadd [#allocation9], 0
      %s13 = sshll.u32 %s0, 4
      %s14 = int_to_ptr.hbm [resolvable:$true] %s13
      %s15 = sshll.u32 [#allocation8], 4
      %s16 = int_to_ptr.vmem [resolvable:$true] %s15
      %21 = dma.hbm_to_vmem [thread:$0]  %s14, 4608, %s16, [#allocation9], 128, 128, 8
    $region5: #{model_forward.1} parent=1 // pred_fallthru
      _
    // Predicated region
    $region6: #{model_forward.1} parent=1 // pred_check
      _
    $region7: #{model_forward.1} parent=1 // pred_check_branch
      %23 = sbr.rel (0) target = $region9
    $region8: #{model_forward.1} parent=1 // pred_region
      %25 = dma.done [#allocation9], 4608
    $region9: #{model_forward.1} parent=1 // pred_fallthru
      _
    %v26 = vld [vmem:[#allocation8] sm:$0xff]
    %v27 = vld [vmem:[#allocation8 + $0x8] sm:$0xff]
    %v28 = vld [vmem:[#allocation8 + $0x10] sm:$0xff]
    %v29 = vld [vmem:[#allocation8 + $0x18] sm:$0xff]
    %v30 = vld [vmem:[#allocation8 + $0x20] sm:$0xff]
    %v31 = vld [vmem:[#allocation8 + $0x28] sm:$0x3f]
    %v32 = vld [vmem:[#allocation8 + $0x30] sm:$0xff]
    %v33 = vld [vmem:[#allocation8 + $0x38] sm:$0xff]
    %v34 = vld [vmem:[#allocation8 + $0x40] sm:$0xff]
    %v35 = vld [vmem:[#allocation8 + $0x48] sm:$0xff]
    %v36 = vld [vmem:[#allocation8 + $0x50] sm:$0xff]
    %v37 = vld [vmem:[#allocation8 + $0x58] sm:$0x3f]
    %v38 = vld [vmem:[#allocation8 + $0x60] sm:$0xff]
    %v39 = vld [vmem:[#allocation8 + $0x68] sm:$0xff]
    %v40 = vld [vmem:[#allocation8 + $0x70] sm:$0xff]
    %v41 = vld [vmem:[#allocation8 + $0x78] sm:$0xff]
    %v42 = vld [vmem:[#allocation8 + $0x80] sm:$0xff]
    %v43 = vld [vmem:[#allocation8 + $0x88] sm:$0x3f]
    %v44 = vld [vmem:[#allocation8 + $0x90] sm:$0xff]
    %v45 = vld [vmem:[#allocation8 + $0x98] sm:$0xff]
    %v46 = vld [vmem:[#allocation8 + $0xa0] sm:$0xff]
    %v47 = vld [vmem:[#allocation8 + $0xa8] sm:$0xff]
    %v48 = vld [vmem:[#allocation8 + $0xb0] sm:$0xff]
    %v49 = vld [vmem:[#allocation8 + $0xb8] sm:$0x3f]
    %v50 = vld [vmem:[#allocation8 + $0xc0] sm:$0xff]
    %v51 = vld [vmem:[#allocation8 + $0xc8] sm:$0xff]
    %v52 = vld [vmem:[#allocation8 + $0xd0] sm:$0xff]
    %v53 = vld [vmem:[#allocation8 + $0xd8] sm:$0xff]
    %v54 = vld [vmem:[#allocation8 + $0xe0] sm:$0xff]
    %v55 = vld [vmem:[#allocation8 + $0xe8] sm:$0x3f]
    %v56 = vld [vmem:[#allocation8 + $0xf0] sm:$0xff]
    %v57 = vld [vmem:[#allocation8 + $0xf8] sm:$0xff]
    %v58 = vld [vmem:[#allocation8 + $0x100] sm:$0xff]
    %v59 = vld [vmem:[#allocation8 + $0x108] sm:$0xff]
    %v60 = vld [vmem:[#allocation8 + $0x110] sm:$0xff]
    %v61 = vld [vmem:[#allocation8 + $0x118] sm:$0x3f]
    %98 = vrot.lane.b32.xlu0 %v26, 127
    %v99 = vpop.permute.xlu0 %98
    %100 = vrot.lane.b32.xlu0 %v27, 127
    %v101 = vpop.permute.xlu0 %100
    %102 = vrot.lane.b32.xlu0 %v28, 127
    %v103 = vpop.permute.xlu0 %102
    %104 = vrot.lane.b32.xlu0 %v29, 127
    %v105 = vpop.permute.xlu0 %104
    %106 = vrot.lane.b32.xlu0 %v30, 127
    %v107 = vpop.permute.xlu0 %106
    %108 = vrot.lane.b32.xlu0 %v31, 127
    %v109 = vpop.permute.xlu0 %108
    %110 = vrot.lane.b32.xlu0 %v32, 127
    %v111 = vpop.permute.xlu0 %110
    %112 = vrot.lane.b32.xlu0 %v33, 127
    %v113 = vpop.permute.xlu0 %112
    %114 = vrot.lane.b32.xlu0 %v34, 127
    %v115 = vpop.permute.xlu0 %114
    %116 = vrot.lane.b32.xlu0 %v35, 127
    %v117 = vpop.permute.xlu0 %116
    %118 = vrot.lane.b32.xlu0 %v36, 127
    %v119 = vpop.permute.xlu0 %118
    %120 = vrot.lane.b32.xlu0 %v37, 127
    %v121 = vpop.permute.xlu0 %120
    %122 = vrot.lane.b32.xlu0 %v38, 127
    %v123 = vpop.permute.xlu0 %122
    %124 = vrot.lane.b32.xlu0 %v39, 127
    %v125 = vpop.permute.xlu0 %124
    %126 = vrot.lane.b32.xlu0 %v40, 127
    %v127 = vpop.permute.xlu0 %126
    %128 = vrot.lane.b32.xlu0 %v41, 127
    %v129 = vpop.permute.xlu0 %128
    %130 = vrot.lane.b32.xlu0 %v42, 127
    %v131 = vpop.permute.xlu0 %130
    %132 = vrot.lane.b32.xlu0 %v43, 127
    %v133 = vpop.permute.xlu0 %132
    %134 = vrot.lane.b32.xlu0 %v44, 127
    %v135 = vpop.permute.xlu0 %134
    %136 = vrot.lane.b32.xlu0 %v45, 127
    %v137 = vpop.permute.xlu0 %136
    %138 = vrot.lane.b32.xlu0 %v46, 127
    %v139 = vpop.permute.xlu0 %138
    %140 = vrot.lane.b32.xlu0 %v47, 127
    %v141 = vpop.permute.xlu0 %140
    %142 = vrot.lane.b32.xlu0 %v48, 127
    %v143 = vpop.permute.xlu0 %142
    %144 = vrot.lane.b32.xlu0 %v49, 127
    %v145 = vpop.permute.xlu0 %144
    %146 = vrot.lane.b32.xlu0 %v50, 127
    %v147 = vpop.permute.xlu0 %146
    %148 = vrot.lane.b32.xlu0 %v51, 127
    %v149 = vpop.permute.xlu0 %148
    %150 = vrot.lane.b32.xlu0 %v52, 127
    %v151 = vpop.permute.xlu0 %150
    %152 = vrot.lane.b32.xlu0 %v53, 127
    %v153 = vpop.permute.xlu0 %152
    %154 = vrot.lane.b32.xlu0 %v54, 127
    %v155 = vpop.permute.xlu0 %154
    %156 = vrot.lane.b32.xlu0 %v55, 127
    %v157 = vpop.permute.xlu0 %156
    %158 = vrot.lane.b32.xlu0 %v56, 127
    %v159 = vpop.permute.xlu0 %158
    %160 = vrot.lane.b32.xlu0 %v57, 127
    %v161 = vpop.permute.xlu0 %160
    %162 = vrot.lane.b32.xlu0 %v58, 127
    %v163 = vpop.permute.xlu0 %162
    %164 = vrot.lane.b32.xlu0 %v59, 127
    %v165 = vpop.permute.xlu0 %164
    %166 = vrot.lane.b32.xlu0 %v60, 127
    %v167 = vpop.permute.xlu0 %166
    %168 = vrot.lane.b32.xlu0 %v61, 127
    %v169 = vpop.permute.xlu0 %168
    %v206 = vmax.f32 %v26, %v99
    %v207 = vmax.f32 %v27, %v101
    %v208 = vmax.f32 %v28, %v103
    %v209 = vmax.f32 %v29, %v105
    %v210 = vmax.f32 %v30, %v107
    %v211 = vmax.f32 %v31, %v109
    %v212 = vmax.f32 %v32, %v111
    %v213 = vmax.f32 %v33, %v113
    %v214 = vmax.f32 %v34, %v115
    %v215 = vmax.f32 %v35, %v117
    %v216 = vmax.f32 %v36, %v119
    %v217 = vmax.f32 %v37, %v121
    %v218 = vmax.f32 %v38, %v123
    %v219 = vmax.f32 %v39, %v125
    %v220 = vmax.f32 %v40, %v127
    %v221 = vmax.f32 %v41, %v129
    %v222 = vmax.f32 %v42, %v131
    %v223 = vmax.f32 %v43, %v133
    %v224 = vmax.f32 %v44, %v135
    %v225 = vmax.f32 %v45, %v137
    %v226 = vmax.f32 %v46, %v139
    %v227 = vmax.f32 %v47, %v141
    %v228 = vmax.f32 %v48, %v143
    %v229 = vmax.f32 %v49, %v145
    %v230 = vmax.f32 %v50, %v147
    %v231 = vmax.f32 %v51, %v149
    %v232 = vmax.f32 %v52, %v151
    %v233 = vmax.f32 %v53, %v153
    %v234 = vmax.f32 %v54, %v155
    %v235 = vmax.f32 %v55, %v157
    %v236 = vmax.f32 %v56, %v159
    %v237 = vmax.f32 %v57, %v161
    %v238 = vmax.f32 %v58, %v163
    %v239 = vmax.f32 %v59, %v165
    %v240 = vmax.f32 %v60, %v167
    %v241 = vmax.f32 %v61, %v169
    %242 = vrot.lane.b32.xlu0 %v26, 126
    %v243 = vpop.permute.xlu0 %242
    %244 = vrot.lane.b32.xlu0 %v27, 126
    %v245 = vpop.permute.xlu0 %244
    %246 = vrot.lane.b32.xlu0 %v28, 126
    %v247 = vpop.permute.xlu0 %246
    %248 = vrot.lane.b32.xlu0 %v29, 126
    %v249 = vpop.permute.xlu0 %248
    %250 = vrot.lane.b32.xlu0 %v30, 126
    %v251 = vpop.permute.xlu0 %250
    %252 = vrot.lane.b32.xlu0 %v31, 126
    %v253 = vpop.permute.xlu0 %252
    %254 = vrot.lane.b32.xlu0 %v32, 126
    %v255 = vpop.permute.xlu0 %254
    %256 = vrot.lane.b32.xlu0 %v33, 126
    %v257 = vpop.permute.xlu0 %256
    %258 = vrot.lane.b32.xlu0 %v34, 126
    %v259 = vpop.permute.xlu0 %258
    %260 = vrot.lane.b32.xlu0 %v35, 126
    %v261 = vpop.permute.xlu0 %260
    %262 = vrot.lane.b32.xlu0 %v36, 126
    %v263 = vpop.permute.xlu0 %262
    %264 = vrot.lane.b32.xlu0 %v37, 126
    %v265 = vpop.permute.xlu0 %264
    %266 = vrot.lane.b32.xlu0 %v38, 126
    %v267 = vpop.permute.xlu0 %266
    %268 = vrot.lane.b32.xlu0 %v39, 126
    %v269 = vpop.permute.xlu0 %268
    %270 = vrot.lane.b32.xlu0 %v40, 126
    %v271 = vpop.permute.xlu0 %270
    %272 = vrot.lane.b32.xlu0 %v41, 126
    %v273 = vpop.permute.xlu0 %272
    %274 = vrot.lane.b32.xlu0 %v42, 126
    %v275 = vpop.permute.xlu0 %274
    %276 = vrot.lane.b32.xlu0 %v43, 126
    %v277 = vpop.permute.xlu0 %276
    %278 = vrot.lane.b32.xlu0 %v44, 126
    %v279 = vpop.permute.xlu0 %278
    %280 = vrot.lane.b32.xlu0 %v45, 126
    %v281 = vpop.permute.xlu0 %280
    %282 = vrot.lane.b32.xlu0 %v46, 126
    %v283 = vpop.permute.xlu0 %282
    %284 = vrot.lane.b32.xlu0 %v47, 126
    %v285 = vpop.permute.xlu0 %284
    %286 = vrot.lane.b32.xlu0 %v48, 126
    %v287 = vpop.permute.xlu0 %286
    %288 = vrot.lane.b32.xlu0 %v49, 126
    %v289 = vpop.permute.xlu0 %288
    %290 = vrot.lane.b32.xlu0 %v50, 126
    %v291 = vpop.permute.xlu0 %290
    %292 = vrot.lane.b32.xlu0 %v51, 126
    %v293 = vpop.permute.xlu0 %292
    %294 = vrot.lane.b32.xlu0 %v52, 126
    %v295 = vpop.permute.xlu0 %294
    %296 = vrot.lane.b32.xlu0 %v53, 126
    %v297 = vpop.permute.xlu0 %296
    %298 = vrot.lane.b32.xlu0 %v54, 126
    %v299 = vpop.permute.xlu0 %298
    %300 = vrot.lane.b32.xlu0 %v55, 126
    %v301 = vpop.permute.xlu0 %300
    %302 = vrot.lane.b32.xlu0 %v56, 126
    %v303 = vpop.permute.xlu0 %302
    %304 = vrot.lane.b32.xlu0 %v57, 126
    %v305 = vpop.permute.xlu0 %304
    %306 = vrot.lane.b32.xlu0 %v58, 126
    %v307 = vpop.permute.xlu0 %306
    %308 = vrot.lane.b32.xlu0 %v59, 126
    %v309 = vpop.permute.xlu0 %308
    %310 = vrot.lane.b32.xlu0 %v60, 126
    %v311 = vpop.permute.xlu0 %310
    %312 = vrot.lane.b32.xlu0 %v61, 126
    %v313 = vpop.permute.xlu0 %312
    %v350 = vmax.f32 %v206, %v243
    %v351 = vmax.f32 %v207, %v245
    %v352 = vmax.f32 %v208, %v247
    %v353 = vmax.f32 %v209, %v249
    %v354 = vmax.f32 %v210, %v251
    %v355 = vmax.f32 %v211, %v253
    %v356 = vmax.f32 %v212, %v255
    %v357 = vmax.f32 %v213, %v257
    %v358 = vmax.f32 %v214, %v259
    %v359 = vmax.f32 %v215, %v261
    %v360 = vmax.f32 %v216, %v263
    %v361 = vmax.f32 %v217, %v265
    %v362 = vmax.f32 %v218, %v267
    %v363 = vmax.f32 %v219, %v269
    %v364 = vmax.f32 %v220, %v271
    %v365 = vmax.f32 %v221, %v273
    %v366 = vmax.f32 %v222, %v275
    %v367 = vmax.f32 %v223, %v277
    %v368 = vmax.f32 %v224, %v279
    %v369 = vmax.f32 %v225, %v281
    %v370 = vmax.f32 %v226, %v283
    %v371 = vmax.f32 %v227, %v285
    %v372 = vmax.f32 %v228, %v287
    %v373 = vmax.f32 %v229, %v289
    %v374 = vmax.f32 %v230, %v291
    %v375 = vmax.f32 %v231, %v293
    %v376 = vmax.f32 %v232, %v295
    %v377 = vmax.f32 %v233, %v297
    %v378 = vmax.f32 %v234, %v299
    %v379 = vmax.f32 %v235, %v301
    %v380 = vmax.f32 %v236, %v303
    %v381 = vmax.f32 %v237, %v305
    %v382 = vmax.f32 %v238, %v307
    %v383 = vmax.f32 %v239, %v309
    %v384 = vmax.f32 %v240, %v311
    %v385 = vmax.f32 %v241, %v313
    %v386 = vld [vmem:[#allocation8 + $0x1] sm:$0xff]
    %v387 = vld [vmem:[#allocation8 + $0x9] sm:$0xff]
    %v388 = vld [vmem:[#allocation8 + $0x11] sm:$0xff]
    %v389 = vld [vmem:[#allocation8 + $0x19] sm:$0xff]
    %v390 = vld [vmem:[#allocation8 + $0x21] sm:$0xff]
    %v391 = vld [vmem:[#allocation8 + $0x29] sm:$0x3f]
    %v392 = vld [vmem:[#allocation8 + $0x31] sm:$0xff]
    %v393 = vld [vmem:[#allocation8 + $0x39] sm:$0xff]
    %v394 = vld [vmem:[#allocation8 + $0x41] sm:$0xff]
    %v395 = vld [vmem:[#allocation8 + $0x49] sm:$0xff]
    %v396 = vld [vmem:[#allocation8 + $0x51] sm:$0xff]
    %v397 = vld [vmem:[#allocation8 + $0x59] sm:$0x3f]
    %v398 = vld [vmem:[#allocation8 + $0x61] sm:$0xff]
    %v399 = vld [vmem:[#allocation8 + $0x69] sm:$0xff]
    %v400 = vld [vmem:[#allocation8 + $0x71] sm:$0xff]
    %v401 = vld [vmem:[#allocation8 + $0x79] sm:$0xff]
    %v402 = vld [vmem:[#allocation8 + $0x81] sm:$0xff]
    %v403 = vld [vmem:[#allocation8 + $0x89] sm:$0x3f]
    %v404 = vld [vmem:[#allocation8 + $0x91] sm:$0xff]
    %v405 = vld [vmem:[#allocation8 + $0x99] sm:$0xff]
    %v406 = vld [vmem:[#allocation8 + $0xa1] sm:$0xff]
    %v407 = vld [vmem:[#allocation8 + $0xa9] sm:$0xff]
    %v408 = vld [vmem:[#allocation8 + $0xb1] sm:$0xff]
    %v409 = vld [vmem:[#allocation8 + $0xb9] sm:$0x3f]
    %v410 = vld [vmem:[#allocation8 + $0xc1] sm:$0xff]
    %v411 = vld [vmem:[#allocation8 + $0xc9] sm:$0xff]
    %v412 = vld [vmem:[#allocation8 + $0xd1] sm:$0xff]
    %v413 = vld [vmem:[#allocation8 + $0xd9] sm:$0xff]
    %v414 = vld [vmem:[#allocation8 + $0xe1] sm:$0xff]
    %v415 = vld [vmem:[#allocation8 + $0xe9] sm:$0x3f]
    %v416 = vld [vmem:[#allocation8 + $0xf1] sm:$0xff]
    %v417 = vld [vmem:[#allocation8 + $0xf9] sm:$0xff]
    %v418 = vld [vmem:[#allocation8 + $0x101] sm:$0xff]
    %v419 = vld [vmem:[#allocation8 + $0x109] sm:$0xff]
    %v420 = vld [vmem:[#allocation8 + $0x111] sm:$0xff]
    %v421 = vld [vmem:[#allocation8 + $0x119] sm:$0x3f]
    %v422 = vmax.f32 %v350, %v386
    %v423 = vmax.f32 %v351, %v387
    %v424 = vmax.f32 %v352, %v388
    %v425 = vmax.f32 %v353, %v389
    %v426 = vmax.f32 %v354, %v390
    %v427 = vmax.f32 %v355, %v391
    %v428 = vmax.f32 %v356, %v392
    %v429 = vmax.f32 %v357, %v393
    %v430 = vmax.f32 %v358, %v394
    %v431 = vmax.f32 %v359, %v395
    %v432 = vmax.f32 %v360, %v396
    %v433 = vmax.f32 %v361, %v397
    %v434 = vmax.f32 %v362, %v398
    %v435 = vmax.f32 %v363, %v399
    %v436 = vmax.f32 %v364, %v400
    %v437 = vmax.f32 %v365, %v401
    %v438 = vmax.f32 %v366, %v402
    %v439 = vmax.f32 %v367, %v403
    %v440 = vmax.f32 %v368, %v404
    %v441 = vmax.f32 %v369, %v405
    %v442 = vmax.f32 %v370, %v406
    %v443 = vmax.f32 %v371, %v407
    %v444 = vmax.f32 %v372, %v408
    %v445 = vmax.f32 %v373, %v409
    %v446 = vmax.f32 %v374, %v410
    %v447 = vmax.f32 %v375, %v411
    %v448 = vmax.f32 %v376, %v412
    %v449 = vmax.f32 %v377, %v413
    %v450 = vmax.f32 %v378, %v414
    %v451 = vmax.f32 %v379, %v415
    %v452 = vmax.f32 %v380, %v416
    %v453 = vmax.f32 %v381, %v417
    %v454 = vmax.f32 %v382, %v418
    %v455 = vmax.f32 %v383, %v419
    %v456 = vmax.f32 %v384, %v420
    %v457 = vmax.f32 %v385, %v421
    %494 = vrot.lane.b32.xlu0 %v386, 127
    %v495 = vpop.permute.xlu0 %494
    %496 = vrot.lane.b32.xlu0 %v387, 127
    %v497 = vpop.permute.xlu0 %496
    %498 = vrot.lane.b32.xlu0 %v388, 127
    %v499 = vpop.permute.xlu0 %498
    %500 = vrot.lane.b32.xlu0 %v389, 127
    %v501 = vpop.permute.xlu0 %500
    %502 = vrot.lane.b32.xlu0 %v390, 127
    %v503 = vpop.permute.xlu0 %502
    %504 = vrot.lane.b32.xlu0 %v391, 127
    %v505 = vpop.permute.xlu0 %504
    %506 = vrot.lane.b32.xlu0 %v392, 127
    %v507 = vpop.permute.xlu0 %506
    %508 = vrot.lane.b32.xlu0 %v393, 127
    %v509 = vpop.permute.xlu0 %508
    %510 = vrot.lane.b32.xlu0 %v394, 127
    %v511 = vpop.permute.xlu0 %510
    %512 = vrot.lane.b32.xlu0 %v395, 127
    %v513 = vpop.permute.xlu0 %512
    %514 = vrot.lane.b32.xlu0 %v396, 127
    %v515 = vpop.permute.xlu0 %514
    %516 = vrot.lane.b32.xlu0 %v397, 127
    %v517 = vpop.permute.xlu0 %516
    %518 = vrot.lane.b32.xlu0 %v398, 127
    %v519 = vpop.permute.xlu0 %518
    %520 = vrot.lane.b32.xlu0 %v399, 127
    %v521 = vpop.permute.xlu0 %520
    %522 = vrot.lane.b32.xlu0 %v400, 127
    %v523 = vpop.permute.xlu0 %522
    %524 = vrot.lane.b32.xlu0 %v401, 127
    %v525 = vpop.permute.xlu0 %524
    %526 = vrot.lane.b32.xlu0 %v402, 127
    %v527 = vpop.permute.xlu0 %526
    %528 = vrot.lane.b32.xlu0 %v403, 127
    %v529 = vpop.permute.xlu0 %528
    %530 = vrot.lane.b32.xlu0 %v404, 127
    %v531 = vpop.permute.xlu0 %530
    %532 = vrot.lane.b32.xlu0 %v405, 127
    %v533 = vpop.permute.xlu0 %532
    %534 = vrot.lane.b32.xlu0 %v406, 127
    %v535 = vpop.permute.xlu0 %534
    %536 = vrot.lane.b32.xlu0 %v407, 127
    %v537 = vpop.permute.xlu0 %536
    %538 = vrot.lane.b32.xlu0 %v408, 127
    %v539 = vpop.permute.xlu0 %538
    %540 = vrot.lane.b32.xlu0 %v409, 127
    %v541 = vpop.permute.xlu0 %540
    %542 = vrot.lane.b32.xlu0 %v410, 127
    %v543 = vpop.permute.xlu0 %542
    %544 = vrot.lane.b32.xlu0 %v411, 127
    %v545 = vpop.permute.xlu0 %544
    %546 = vrot.lane.b32.xlu0 %v412, 127
    %v547 = vpop.permute.xlu0 %546
    %548 = vrot.lane.b32.xlu0 %v413, 127
    %v549 = vpop.permute.xlu0 %548
    %550 = vrot.lane.b32.xlu0 %v414, 127
    %v551 = vpop.permute.xlu0 %550
    %552 = vrot.lane.b32.xlu0 %v415, 127
    %v553 = vpop.permute.xlu0 %552
    %554 = vrot.lane.b32.xlu0 %v416, 127
    %v555 = vpop.permute.xlu0 %554
    %556 = vrot.lane.b32.xlu0 %v417, 127
    %v557 = vpop.permute.xlu0 %556
    %558 = vrot.lane.b32.xlu0 %v418, 127
    %v559 = vpop.permute.xlu0 %558
    %560 = vrot.lane.b32.xlu0 %v419, 127
    %v561 = vpop.permute.xlu0 %560
    %562 = vrot.lane.b32.xlu0 %v420, 127
    %v563 = vpop.permute.xlu0 %562
    %564 = vrot.lane.b32.xlu0 %v421, 127
    %v565 = vpop.permute.xlu0 %564
    %v602 = vmax.f32 %v422, %v495
    %v603 = vmax.f32 %v423, %v497
    %v604 = vmax.f32 %v424, %v499
    %v605 = vmax.f32 %v425, %v501
    %v606 = vmax.f32 %v426, %v503
    %v607 = vmax.f32 %v427, %v505
    %v608 = vmax.f32 %v428, %v507
    %v609 = vmax.f32 %v429, %v509
    %v610 = vmax.f32 %v430, %v511
    %v611 = vmax.f32 %v431, %v513
    %v612 = vmax.f32 %v432, %v515
    %v613 = vmax.f32 %v433, %v517
    %v614 = vmax.f32 %v434, %v519
    %v615 = vmax.f32 %v435, %v521
    %v616 = vmax.f32 %v436, %v523
    %v617 = vmax.f32 %v437, %v525
    %v618 = vmax.f32 %v438, %v527
    %v619 = vmax.f32 %v439, %v529
    %v620 = vmax.f32 %v440, %v531
    %v621 = vmax.f32 %v441, %v533
    %v622 = vmax.f32 %v442, %v535
    %v623 = vmax.f32 %v443, %v537
    %v624 = vmax.f32 %v444, %v539
    %v625 = vmax.f32 %v445, %v541
    %v626 = vmax.f32 %v446, %v543
    %v627 = vmax.f32 %v447, %v545
    %v628 = vmax.f32 %v448, %v547
    %v629 = vmax.f32 %v449, %v549
    %v630 = vmax.f32 %v450, %v551
    %v631 = vmax.f32 %v451, %v553
    %v632 = vmax.f32 %v452, %v555
    %v633 = vmax.f32 %v453, %v557
    %v634 = vmax.f32 %v454, %v559
    %v635 = vmax.f32 %v455, %v561
    %v636 = vmax.f32 %v456, %v563
    %v637 = vmax.f32 %v457, %v565
    %638 = vrot.lane.b32.xlu0 %v386, 126
    %v639 = vpop.permute.xlu0 %638
    %640 = vrot.lane.b32.xlu0 %v387, 126
    %v641 = vpop.permute.xlu0 %640
    %642 = vrot.lane.b32.xlu0 %v388, 126
    %v643 = vpop.permute.xlu0 %642
    %644 = vrot.lane.b32.xlu0 %v389, 126
    %v645 = vpop.permute.xlu0 %644
    %646 = vrot.lane.b32.xlu0 %v390, 126
    %v647 = vpop.permute.xlu0 %646
    %648 = vrot.lane.b32.xlu0 %v391, 126
    %v649 = vpop.permute.xlu0 %648
    %650 = vrot.lane.b32.xlu0 %v392, 126
    %v651 = vpop.permute.xlu0 %650
    %652 = vrot.lane.b32.xlu0 %v393, 126
    %v653 = vpop.permute.xlu0 %652
    %654 = vrot.lane.b32.xlu0 %v394, 126
    %v655 = vpop.permute.xlu0 %654
    %656 = vrot.lane.b32.xlu0 %v395, 126
    %v657 = vpop.permute.xlu0 %656
    %658 = vrot.lane.b32.xlu0 %v396, 126
    %v659 = vpop.permute.xlu0 %658
    %660 = vrot.lane.b32.xlu0 %v397, 126
    %v661 = vpop.permute.xlu0 %660
    %662 = vrot.lane.b32.xlu0 %v398, 126
    %v663 = vpop.permute.xlu0 %662
    %664 = vrot.lane.b32.xlu0 %v399, 126
    %v665 = vpop.permute.xlu0 %664
    %666 = vrot.lane.b32.xlu0 %v400, 126
    %v667 = vpop.permute.xlu0 %666
    %668 = vrot.lane.b32.xlu0 %v401, 126
    %v669 = vpop.permute.xlu0 %668
    %670 = vrot.lane.b32.xlu0 %v402, 126
    %v671 = vpop.permute.xlu0 %670
    %672 = vrot.lane.b32.xlu0 %v403, 126
    %v673 = vpop.permute.xlu0 %672
    %674 = vrot.lane.b32.xlu0 %v404, 126
    %v675 = vpop.permute.xlu0 %674
    %676 = vrot.lane.b32.xlu0 %v405, 126
    %v677 = vpop.permute.xlu0 %676
    %678 = vrot.lane.b32.xlu0 %v406, 126
    %v679 = vpop.permute.xlu0 %678
    %680 = vrot.lane.b32.xlu0 %v407, 126
    %v681 = vpop.permute.xlu0 %680
    %682 = vrot.lane.b32.xlu0 %v408, 126
    %v683 = vpop.permute.xlu0 %682
    %684 = vrot.lane.b32.xlu0 %v409, 126
    %v685 = vpop.permute.xlu0 %684
    %686 = vrot.lane.b32.xlu0 %v410, 126
    %v687 = vpop.permute.xlu0 %686
    %688 = vrot.lane.b32.xlu0 %v411, 126
    %v689 = vpop.permute.xlu0 %688
    %690 = vrot.lane.b32.xlu0 %v412, 126
    %v691 = vpop.permute.xlu0 %690
    %692 = vrot.lane.b32.xlu0 %v413, 126
    %v693 = vpop.permute.xlu0 %692
    %694 = vrot.lane.b32.xlu0 %v414, 126
    %v695 = vpop.permute.xlu0 %694
    %696 = vrot.lane.b32.xlu0 %v415, 126
    %v697 = vpop.permute.xlu0 %696
    %698 = vrot.lane.b32.xlu0 %v416, 126
    %v699 = vpop.permute.xlu0 %698
    %700 = vrot.lane.b32.xlu0 %v417, 126
    %v701 = vpop.permute.xlu0 %700
    %702 = vrot.lane.b32.xlu0 %v418, 126
    %v703 = vpop.permute.xlu0 %702
    %704 = vrot.lane.b32.xlu0 %v419, 126
    %v705 = vpop.permute.xlu0 %704
    %706 = vrot.lane.b32.xlu0 %v420, 126
    %v707 = vpop.permute.xlu0 %706
    %708 = vrot.lane.b32.xlu0 %v421, 126
    %v709 = vpop.permute.xlu0 %708
    %v746 = vmax.f32 %v602, %v639
    %v747 = vmax.f32 %v603, %v641
    %v748 = vmax.f32 %v604, %v643
    %v749 = vmax.f32 %v605, %v645
    %v750 = vmax.f32 %v606, %v647
    %v751 = vmax.f32 %v607, %v649
    %v752 = vmax.f32 %v608, %v651
    %v753 = vmax.f32 %v609, %v653
    %v754 = vmax.f32 %v610, %v655
    %v755 = vmax.f32 %v611, %v657
    %v756 = vmax.f32 %v612, %v659
    %v757 = vmax.f32 %v613, %v661
    %v758 = vmax.f32 %v614, %v663
    %v759 = vmax.f32 %v615, %v665
    %v760 = vmax.f32 %v616, %v667
    %v761 = vmax.f32 %v617, %v669
    %v762 = vmax.f32 %v618, %v671
    %v763 = vmax.f32 %v619, %v673
    %v764 = vmax.f32 %v620, %v675
    %v765 = vmax.f32 %v621, %v677
    %v766 = vmax.f32 %v622, %v679
    %v767 = vmax.f32 %v623, %v681
    %v768 = vmax.f32 %v624, %v683
    %v769 = vmax.f32 %v625, %v685
    %v770 = vmax.f32 %v626, %v687
    %v771 = vmax.f32 %v627, %v689
    %v772 = vmax.f32 %v628, %v691
    %v773 = vmax.f32 %v629, %v693
    %v774 = vmax.f32 %v630, %v695
    %v775 = vmax.f32 %v631, %v697
    %v776 = vmax.f32 %v632, %v699
    %v777 = vmax.f32 %v633, %v701
    %v778 = vmax.f32 %v634, %v703
    %v779 = vmax.f32 %v635, %v705
    %v780 = vmax.f32 %v636, %v707
    %v781 = vmax.f32 %v637, %v709
    %v782 = vld [vmem:[#allocation8 + $0x2] sm:$0xff]
    %v783 = vld [vmem:[#allocation8 + $0xa] sm:$0xff]
    %v784 = vld [vmem:[#allocation8 + $0x12] sm:$0xff]
    %v785 = vld [vmem:[#allocation8 + $0x1a] sm:$0xff]
    %v786 = vld [vmem:[#allocation8 + $0x22] sm:$0xff]
    %v787 = vld [vmem:[#allocation8 + $0x2a] sm:$0x3f]
    %v788 = vld [vmem:[#allocation8 + $0x32] sm:$0xff]
    %v789 = vld [vmem:[#allocation8 + $0x3a] sm:$0xff]
    %v790 = vld [vmem:[#allocation8 + $0x42] sm:$0xff]
    %v791 = vld [vmem:[#allocation8 + $0x4a] sm:$0xff]
    %v792 = vld [vmem:[#allocation8 + $0x52] sm:$0xff]
    %v793 = vld [vmem:[#allocation8 + $0x5a] sm:$0x3f]
    %v794 = vld [vmem:[#allocation8 + $0x62] sm:$0xff]
    %v795 = vld [vmem:[#allocation8 + $0x6a] sm:$0xff]
    %v796 = vld [vmem:[#allocation8 + $0x72] sm:$0xff]
    %v797 = vld [vmem:[#allocation8 + $0x7a] sm:$0xff]
    %v798 = vld [vmem:[#allocation8 + $0x82] sm:$0xff]
    %v799 = vld [vmem:[#allocation8 + $0x8a] sm:$0x3f]
    %v800 = vld [vmem:[#allocation8 + $0x92] sm:$0xff]
    %v801 = vld [vmem:[#allocation8 + $0x9a] sm:$0xff]
    %v802 = vld [vmem:[#allocation8 + $0xa2] sm:$0xff]
    %v803 = vld [vmem:[#allocation8 + $0xaa] sm:$0xff]
    %v804 = vld [vmem:[#allocation8 + $0xb2] sm:$0xff]
    %v805 = vld [vmem:[#allocation8 + $0xba] sm:$0x3f]
    %v806 = vld [vmem:[#allocation8 + $0xc2] sm:$0xff]
    %v807 = vld [vmem:[#allocation8 + $0xca] sm:$0xff]
    %v808 = vld [vmem:[#allocation8 + $0xd2] sm:$0xff]
    %v809 = vld [vmem:[#allocation8 + $0xda] sm:$0xff]
    %v810 = vld [vmem:[#allocation8 + $0xe2] sm:$0xff]
    %v811 = vld [vmem:[#allocation8 + $0xea] sm:$0x3f]
    %v812 = vld [vmem:[#allocation8 + $0xf2] sm:$0xff]
    %v813 = vld [vmem:[#allocation8 + $0xfa] sm:$0xff]
    %v814 = vld [vmem:[#allocation8 + $0x102] sm:$0xff]
    %v815 = vld [vmem:[#allocation8 + $0x10a] sm:$0xff]
    %v816 = vld [vmem:[#allocation8 + $0x112] sm:$0xff]
    %v817 = vld [vmem:[#allocation8 + $0x11a] sm:$0x3f]
    %v818 = vmax.f32 %v746, %v782
    %v819 = vmax.f32 %v747, %v783
    %v820 = vmax.f32 %v748, %v784
    %v821 = vmax.f32 %v749, %v785
    %v822 = vmax.f32 %v750, %v786
    %v823 = vmax.f32 %v751, %v787
    %v824 = vmax.f32 %v752, %v788
    %v825 = vmax.f32 %v753, %v789
    %v826 = vmax.f32 %v754, %v790
    %v827 = vmax.f32 %v755, %v791
    %v828 = vmax.f32 %v756, %v792
    %v829 = vmax.f32 %v757, %v793
    %v830 = vmax.f32 %v758, %v794
    %v831 = vmax.f32 %v759, %v795
    %v832 = vmax.f32 %v760, %v796
    %v833 = vmax.f32 %v761, %v797
    %v834 = vmax.f32 %v762, %v798
    %v835 = vmax.f32 %v763, %v799
    %v836 = vmax.f32 %v764, %v800
    %v837 = vmax.f32 %v765, %v801
    %v838 = vmax.f32 %v766, %v802
    %v839 = vmax.f32 %v767, %v803
    %v840 = vmax.f32 %v768, %v804
    %v841 = vmax.f32 %v769, %v805
    %v842 = vmax.f32 %v770, %v806
    %v843 = vmax.f32 %v771, %v807
    %v844 = vmax.f32 %v772, %v808
    %v845 = vmax.f32 %v773, %v809
    %v846 = vmax.f32 %v774, %v810
    %v847 = vmax.f32 %v775, %v811
    %v848 = vmax.f32 %v776, %v812
    %v849 = vmax.f32 %v777, %v813
    %v850 = vmax.f32 %v778, %v814
    %v851 = vmax.f32 %v779, %v815
    %v852 = vmax.f32 %v780, %v816
    %v853 = vmax.f32 %v781, %v817
    %890 = vrot.lane.b32.xlu0 %v782, 127
    %v891 = vpop.permute.xlu0 %890
    %892 = vrot.lane.b32.xlu0 %v783, 127
    %v893 = vpop.permute.xlu0 %892
    %894 = vrot.lane.b32.xlu0 %v784, 127
    %v895 = vpop.permute.xlu0 %894
    %896 = vrot.lane.b32.xlu0 %v785, 127
    %v897 = vpop.permute.xlu0 %896
    %898 = vrot.lane.b32.xlu0 %v786, 127
    %v899 = vpop.permute.xlu0 %898
    %900 = vrot.lane.b32.xlu0 %v787, 127
    %v901 = vpop.permute.xlu0 %900
    %902 = vrot.lane.b32.xlu0 %v788, 127
    %v903 = vpop.permute.xlu0 %902
    %904 = vrot.lane.b32.xlu0 %v789, 127
    %v905 = vpop.permute.xlu0 %904
    %906 = vrot.lane.b32.xlu0 %v790, 127
    %v907 = vpop.permute.xlu0 %906
    %908 = vrot.lane.b32.xlu0 %v791, 127
    %v909 = vpop.permute.xlu0 %908
    %910 = vrot.lane.b32.xlu0 %v792, 127
    %v911 = vpop.permute.xlu0 %910
    %912 = vrot.lane.b32.xlu0 %v793, 127
    %v913 = vpop.permute.xlu0 %912
    %914 = vrot.lane.b32.xlu0 %v794, 127
    %v915 = vpop.permute.xlu0 %914
    %916 = vrot.lane.b32.xlu0 %v795, 127
    %v917 = vpop.permute.xlu0 %916
    %918 = vrot.lane.b32.xlu0 %v796, 127
    %v919 = vpop.permute.xlu0 %918
    %920 = vrot.lane.b32.xlu0 %v797, 127
    %v921 = vpop.permute.xlu0 %920
    %922 = vrot.lane.b32.xlu0 %v798, 127
    %v923 = vpop.permute.xlu0 %922
    %924 = vrot.lane.b32.xlu0 %v799, 127
    %v925 = vpop.permute.xlu0 %924
    %926 = vrot.lane.b32.xlu0 %v800, 127
    %v927 = vpop.permute.xlu0 %926
    %928 = vrot.lane.b32.xlu0 %v801, 127
    %v929 = vpop.permute.xlu0 %928
    %930 = vrot.lane.b32.xlu0 %v802, 127
    %v931 = vpop.permute.xlu0 %930
    %932 = vrot.lane.b32.xlu0 %v803, 127
    %v933 = vpop.permute.xlu0 %932
    %934 = vrot.lane.b32.xlu0 %v804, 127
    %v935 = vpop.permute.xlu0 %934
    %936 = vrot.lane.b32.xlu0 %v805, 127
    %v937 = vpop.permute.xlu0 %936
    %938 = vrot.lane.b32.xlu0 %v806, 127
    %v939 = vpop.permute.xlu0 %938
    %940 = vrot.lane.b32.xlu0 %v807, 127
    %v941 = vpop.permute.xlu0 %940
    %942 = vrot.lane.b32.xlu0 %v808, 127
    %v943 = vpop.permute.xlu0 %942
    %944 = vrot.lane.b32.xlu0 %v809, 127
    %v945 = vpop.permute.xlu0 %944
    %946 = vrot.lane.b32.xlu0 %v810, 127
    %v947 = vpop.permute.xlu0 %946
    %948 = vrot.lane.b32.xlu0 %v811, 127
    %v949 = vpop.permute.xlu0 %948
    %950 = vrot.lane.b32.xlu0 %v812, 127
    %v951 = vpop.permute.xlu0 %950
    %952 = vrot.lane.b32.xlu0 %v813, 127
    %v953 = vpop.permute.xlu0 %952
    %954 = vrot.lane.b32.xlu0 %v814, 127
    %v955 = vpop.permute.xlu0 %954
    %956 = vrot.lane.b32.xlu0 %v815, 127
    %v957 = vpop.permute.xlu0 %956
    %958 = vrot.lane.b32.xlu0 %v816, 127
    %v959 = vpop.permute.xlu0 %958
    %960 = vrot.lane.b32.xlu0 %v817, 127
    %v961 = vpop.permute.xlu0 %960
    %v998 = vmax.f32 %v818, %v891
    %v999 = vmax.f32 %v819, %v893
    %v1000 = vmax.f32 %v820, %v895
    %v1001 = vmax.f32 %v821, %v897
    %v1002 = vmax.f32 %v822, %v899
    %v1003 = vmax.f32 %v823, %v901
    %v1004 = vmax.f32 %v824, %v903
    %v1005 = vmax.f32 %v825, %v905
    %v1006 = vmax.f32 %v826, %v907
    %v1007 = vmax.f32 %v827, %v909
    %v1008 = vmax.f32 %v828, %v911
    %v1009 = vmax.f32 %v829, %v913
    %v1010 = vmax.f32 %v830, %v915
    %v1011 = vmax.f32 %v831, %v917
    %v1012 = vmax.f32 %v832, %v919
    %v1013 = vmax.f32 %v833, %v921
    %v1014 = vmax.f32 %v834, %v923
    %v1015 = vmax.f32 %v835, %v925
    %v1016 = vmax.f32 %v836, %v927
    %v1017 = vmax.f32 %v837, %v929
    %v1018 = vmax.f32 %v838, %v931
    %v1019 = vmax.f32 %v839, %v933
    %v1020 = vmax.f32 %v840, %v935
    %v1021 = vmax.f32 %v841, %v937
    %v1022 = vmax.f32 %v842, %v939
    %v1023 = vmax.f32 %v843, %v941
    %v1024 = vmax.f32 %v844, %v943
    %v1025 = vmax.f32 %v845, %v945
    %v1026 = vmax.f32 %v846, %v947
    %v1027 = vmax.f32 %v847, %v949
    %v1028 = vmax.f32 %v848, %v951
    %v1029 = vmax.f32 %v849, %v953
    %v1030 = vmax.f32 %v850, %v955
    %v1031 = vmax.f32 %v851, %v957
    %v1032 = vmax.f32 %v852, %v959
    %v1033 = vmax.f32 %v853, %v961
    %1034 = vrot.lane.b32.xlu0 %v782, 126
    %v1035 = vpop.permute.xlu0 %1034
    %1036 = vrot.lane.b32.xlu0 %v783, 126
    %v1037 = vpop.permute.xlu0 %1036
    %1038 = vrot.lane.b32.xlu0 %v784, 126
    %v1039 = vpop.permute.xlu0 %1038
    %1040 = vrot.lane.b32.xlu0 %v785, 126
    %v1041 = vpop.permute.xlu0 %1040
    %1042 = vrot.lane.b32.xlu0 %v786, 126
    %v1043 = vpop.permute.xlu0 %1042
    %1044 = vrot.lane.b32.xlu0 %v787, 126
    %v1045 = vpop.permute.xlu0 %1044
    %1046 = vrot.lane.b32.xlu0 %v788, 126
    %v1047 = vpop.permute.xlu0 %1046
    %1048 = vrot.lane.b32.xlu0 %v789, 126
    %v1049 = vpop.permute.xlu0 %1048
    %1050 = vrot.lane.b32.xlu0 %v790, 126
    %v1051 = vpop.permute.xlu0 %1050
    %1052 = vrot.lane.b32.xlu0 %v791, 126
    %v1053 = vpop.permute.xlu0 %1052
    %1054 = vrot.lane.b32.xlu0 %v792, 126
    %v1055 = vpop.permute.xlu0 %1054
    %1056 = vrot.lane.b32.xlu0 %v793, 126
    %v1057 = vpop.permute.xlu0 %1056
    %1058 = vrot.lane.b32.xlu0 %v794, 126
    %v1059 = vpop.permute.xlu0 %1058
    %1060 = vrot.lane.b32.xlu0 %v795, 126
    %v1061 = vpop.permute.xlu0 %1060
    %1062 = vrot.lane.b32.xlu0 %v796, 126
    %v1063 = vpop.permute.xlu0 %1062
    %1064 = vrot.lane.b32.xlu0 %v797, 126
    %v1065 = vpop.permute.xlu0 %1064
    %1066 = vrot.lane.b32.xlu0 %v798, 126
    %v1067 = vpop.permute.xlu0 %1066
    %1068 = vrot.lane.b32.xlu0 %v799, 126
    %v1069 = vpop.permute.xlu0 %1068
    %1070 = vrot.lane.b32.xlu0 %v800, 126
    %v1071 = vpop.permute.xlu0 %1070
    %1072 = vrot.lane.b32.xlu0 %v801, 126
    %v1073 = vpop.permute.xlu0 %1072
    %1074 = vrot.lane.b32.xlu0 %v802, 126
    %v1075 = vpop.permute.xlu0 %1074
    %1076 = vrot.lane.b32.xlu0 %v803, 126
    %v1077 = vpop.permute.xlu0 %1076
    %1078 = vrot.lane.b32.xlu0 %v804, 126
    %v1079 = vpop.permute.xlu0 %1078
    %1080 = vrot.lane.b32.xlu0 %v805, 126
    %v1081 = vpop.permute.xlu0 %1080
    %1082 = vrot.lane.b32.xlu0 %v806, 126
    %v1083 = vpop.permute.xlu0 %1082
    %1084 = vrot.lane.b32.xlu0 %v807, 126
    %v1085 = vpop.permute.xlu0 %1084
    %1086 = vrot.lane.b32.xlu0 %v808, 126
    %v1087 = vpop.permute.xlu0 %1086
    %1088 = vrot.lane.b32.xlu0 %v809, 126
    %v1089 = vpop.permute.xlu0 %1088
    %1090 = vrot.lane.b32.xlu0 %v810, 126
    %v1091 = vpop.permute.xlu0 %1090
    %1092 = vrot.lane.b32.xlu0 %v811, 126
    %v1093 = vpop.permute.xlu0 %1092
    %1094 = vrot.lane.b32.xlu0 %v812, 126
    %v1095 = vpop.permute.xlu0 %1094
    %1096 = vrot.lane.b32.xlu0 %v813, 126
    %v1097 = vpop.permute.xlu0 %1096
    %1098 = vrot.lane.b32.xlu0 %v814, 126
    %v1099 = vpop.permute.xlu0 %1098
    %1100 = vrot.lane.b32.xlu0 %v815, 126
    %v1101 = vpop.permute.xlu0 %1100
    %1102 = vrot.lane.b32.xlu0 %v816, 126
    %v1103 = vpop.permute.xlu0 %1102
    %1104 = vrot.lane.b32.xlu0 %v817, 126
    %v1105 = vpop.permute.xlu0 %1104
    %v1142 = vmax.f32 %v998, %v1035
    %v1143 = vmax.f32 %v999, %v1037
    %v1144 = vmax.f32 %v1000, %v1039
    %v1145 = vmax.f32 %v1001, %v1041
    %v1146 = vmax.f32 %v1002, %v1043
    %v1147 = vmax.f32 %v1003, %v1045
    %v1148 = vmax.f32 %v1004, %v1047
    %v1149 = vmax.f32 %v1005, %v1049
    %v1150 = vmax.f32 %v1006, %v1051
    %v1151 = vmax.f32 %v1007, %v1053
    %v1152 = vmax.f32 %v1008, %v1055
    %v1153 = vmax.f32 %v1009, %v1057
    %v1154 = vmax.f32 %v1010, %v1059
    %v1155 = vmax.f32 %v1011, %v1061
    %v1156 = vmax.f32 %v1012, %v1063
    %v1157 = vmax.f32 %v1013, %v1065
    %v1158 = vmax.f32 %v1014, %v1067
    %v1159 = vmax.f32 %v1015, %v1069
    %v1160 = vmax.f32 %v1016, %v1071
    %v1161 = vmax.f32 %v1017, %v1073
    %v1162 = vmax.f32 %v1018, %v1075
    %v1163 = vmax.f32 %v1019, %v1077
    %v1164 = vmax.f32 %v1020, %v1079
    %v1165 = vmax.f32 %v1021, %v1081
    %v1166 = vmax.f32 %v1022, %v1083
    %v1167 = vmax.f32 %v1023, %v1085
    %v1168 = vmax.f32 %v1024, %v1087
    %v1169 = vmax.f32 %v1025, %v1089
    %v1170 = vmax.f32 %v1026, %v1091
    %v1171 = vmax.f32 %v1027, %v1093
    %v1172 = vmax.f32 %v1028, %v1095
    %v1173 = vmax.f32 %v1029, %v1097
    %v1174 = vmax.f32 %v1030, %v1099
    %v1175 = vmax.f32 %v1031, %v1101
    %v1176 = vmax.f32 %v1032, %v1103
    %v1177 = vmax.f32 %v1033, %v1105
    %v1184 = vrot.slane %v1142, 2
    %v1185 = vrot.slane %v1148, 2
    %v1186 = vrot.slane %v1154, 2
    %v1187 = vrot.slane %v1160, 2
    %v1188 = vrot.slane %v1166, 2
    %v1189 = vrot.slane %v1172, 2
    %v1196 = vrot.slane %v1142, 4
    %v1197 = vrot.slane %v1148, 4
    %v1198 = vrot.slane %v1154, 4
    %v1199 = vrot.slane %v1160, 4
    %v1200 = vrot.slane %v1166, 4
    %v1201 = vrot.slane %v1172, 4
    %v1214 = vrot.slane %v1143, 6
    %v1215 = vrot.slane %v1149, 6
    %v1216 = vrot.slane %v1155, 6
    %v1217 = vrot.slane %v1161, 6
    %v1218 = vrot.slane %v1167, 6
    %v1219 = vrot.slane %v1173, 6
    %v1226 = vrot.slane %v1143, 2
    %v1227 = vrot.slane %v1149, 2
    %v1228 = vrot.slane %v1155, 2
    %v1229 = vrot.slane %v1161, 2
    %v1230 = vrot.slane %v1167, 2
    %v1231 = vrot.slane %v1173, 2
    %v1244 = vrot.slane %v1144, 4
    %v1245 = vrot.slane %v1150, 4
    %v1246 = vrot.slane %v1156, 4
    %v1247 = vrot.slane %v1162, 4
    %v1248 = vrot.slane %v1168, 4
    %v1249 = vrot.slane %v1174, 4
    %v1256 = vrot.slane %v1144, 6
    %v1257 = vrot.slane %v1150, 6
    %v1258 = vrot.slane %v1156, 6
    %v1259 = vrot.slane %v1162, 6
    %v1260 = vrot.slane %v1168, 6
    %v1261 = vrot.slane %v1174, 6
    %v1274 = vrot.slane %v1145, 2
    %v1275 = vrot.slane %v1151, 2
    %v1276 = vrot.slane %v1157, 2
    %v1277 = vrot.slane %v1163, 2
    %v1278 = vrot.slane %v1169, 2
    %v1279 = vrot.slane %v1175, 2
    %v1286 = vrot.slane %v1145, 4
    %v1287 = vrot.slane %v1151, 4
    %v1288 = vrot.slane %v1157, 4
    %v1289 = vrot.slane %v1163, 4
    %v1290 = vrot.slane %v1169, 4
    %v1291 = vrot.slane %v1175, 4
    %v1304 = vrot.slane %v1146, 6
    %v1305 = vrot.slane %v1152, 6
    %v1306 = vrot.slane %v1158, 6
    %v1307 = vrot.slane %v1164, 6
    %v1308 = vrot.slane %v1170, 6
    %v1309 = vrot.slane %v1176, 6
    %v1316 = vrot.slane %v1146, 2
    %v1317 = vrot.slane %v1152, 2
    %v1318 = vrot.slane %v1158, 2
    %v1319 = vrot.slane %v1164, 2
    %v1320 = vrot.slane %v1170, 2
    %v1321 = vrot.slane %v1176, 2
    %v1334 = vrot.slane %v1147, 4
    %v1335 = vrot.slane %v1153, 4
    %v1336 = vrot.slane %v1159, 4
    %v1337 = vrot.slane %v1165, 4
    %v1338 = vrot.slane %v1171, 4
    %v1339 = vrot.slane %v1177, 4
    %v1346 = vrot.slane %v1147, 6
    %v1347 = vrot.slane %v1153, 6
    %v1348 = vrot.slane %v1159, 6
    %v1349 = vrot.slane %v1165, 6
    %v1350 = vrot.slane %v1171, 6
    %v1351 = vrot.slane %v1177, 6
    %vm1358 = vcmask 1040384
    %v1359 = vsel %vm1358, %v1142, %v1184
    %v1360 = vsel %vm1358, %v1148, %v1185
    %v1361 = vsel %vm1358, %v1154, %v1186
    %v1362 = vsel %vm1358, %v1160, %v1187
    %v1363 = vsel %vm1358, %v1166, %v1188
    %v1364 = vsel %vm1358, %v1172, %v1189
    %vm1365 = vcmask 1041408
    %v1366 = vsel %vm1365, %v1359, %v1196
    %v1367 = vsel %vm1365, %v1360, %v1197
    %v1368 = vsel %vm1365, %v1361, %v1198
    %v1369 = vsel %vm1365, %v1362, %v1199
    %v1370 = vsel %vm1365, %v1363, %v1200
    %v1371 = vsel %vm1365, %v1364, %v1201
    %vm1372 = vcmask 1042432
    %v1373 = vsel %vm1372, %v1366, %v1214
    %v1374 = vsel %vm1372, %v1367, %v1215
    %v1375 = vsel %vm1372, %v1368, %v1216
    %v1376 = vsel %vm1372, %v1369, %v1217
    %v1377 = vsel %vm1372, %v1370, %v1218
    %v1378 = vsel %vm1372, %v1371, %v1219
    %vm1379 = vcmask 1043456
    %v1380 = vsel %vm1379, %v1373, %v1143
    %v1381 = vsel %vm1379, %v1374, %v1149
    %v1382 = vsel %vm1379, %v1375, %v1155
    %v1383 = vsel %vm1379, %v1376, %v1161
    %v1384 = vsel %vm1379, %v1377, %v1167
    %v1385 = vsel %vm1379, %v1378, %v1173
    %vm1386 = vcmask 1044480
    %v1387 = vsel %vm1386, %v1380, %v1226
    %v1388 = vsel %vm1386, %v1381, %v1227
    %v1389 = vsel %vm1386, %v1382, %v1228
    %v1390 = vsel %vm1386, %v1383, %v1229
    %v1391 = vsel %vm1386, %v1384, %v1230
    %v1392 = vsel %vm1386, %v1385, %v1231
    %vm1393 = vcmask 1045504
    %v1394 = vsel %vm1393, %v1387, %v1244
    %v1395 = vsel %vm1393, %v1388, %v1245
    %v1396 = vsel %vm1393, %v1389, %v1246
    %v1397 = vsel %vm1393, %v1390, %v1247
    %v1398 = vsel %vm1393, %v1391, %v1248
    %v1399 = vsel %vm1393, %v1392, %v1249
    %vm1400 = vcmask 1046528
    %v1401 = vsel %vm1400, %v1394, %v1256
    %v1402 = vsel %vm1400, %v1395, %v1257
    %v1403 = vsel %vm1400, %v1396, %v1258
    %v1404 = vsel %vm1400, %v1397, %v1259
    %v1405 = vsel %vm1400, %v1398, %v1260
    %v1406 = vsel %vm1400, %v1399, %v1261
    %v1407 = vsel %vm1358, %v1145, %v1274
    %v1408 = vsel %vm1358, %v1151, %v1275
    %v1409 = vsel %vm1358, %v1157, %v1276
    %v1410 = vsel %vm1358, %v1163, %v1277
    %v1411 = vsel %vm1358, %v1169, %v1278
    %v1412 = vsel %vm1358, %v1175, %v1279
    %v1413 = vsel %vm1365, %v1407, %v1286
    %v1414 = vsel %vm1365, %v1408, %v1287
    %v1415 = vsel %vm1365, %v1409, %v1288
    %v1416 = vsel %vm1365, %v1410, %v1289
    %v1417 = vsel %vm1365, %v1411, %v1290
    %v1418 = vsel %vm1365, %v1412, %v1291
    %v1419 = vsel %vm1372, %v1413, %v1304
    %v1420 = vsel %vm1372, %v1414, %v1305
    %v1421 = vsel %vm1372, %v1415, %v1306
    %v1422 = vsel %vm1372, %v1416, %v1307
    %v1423 = vsel %vm1372, %v1417, %v1308
    %v1424 = vsel %vm1372, %v1418, %v1309
    %v1425 = vsel %vm1379, %v1419, %v1146
    %v1426 = vsel %vm1379, %v1420, %v1152
    %v1427 = vsel %vm1379, %v1421, %v1158
    %v1428 = vsel %vm1379, %v1422, %v1164
    %v1429 = vsel %vm1379, %v1423, %v1170
    %v1430 = vsel %vm1379, %v1424, %v1176
    %v1431 = vsel %vm1386, %v1425, %v1316
    %v1432 = vsel %vm1386, %v1426, %v1317
    %v1433 = vsel %vm1386, %v1427, %v1318
    %v1434 = vsel %vm1386, %v1428, %v1319
    %v1435 = vsel %vm1386, %v1429, %v1320
    %v1436 = vsel %vm1386, %v1430, %v1321
    %v1437 = vsel %vm1393, %v1431, %v1334
    %v1438 = vsel %vm1393, %v1432, %v1335
    %v1439 = vsel %vm1393, %v1433, %v1336
    %v1440 = vsel %vm1393, %v1434, %v1337
    %v1441 = vsel %vm1393, %v1435, %v1338
    %v1442 = vsel %vm1393, %v1436, %v1339
    %v1443 = vsel %vm1400, %v1437, %v1346
    %v1444 = vsel %vm1400, %v1438, %v1347
    %v1445 = vsel %vm1400, %v1439, %v1348
    %v1446 = vsel %vm1400, %v1440, %v1349
    %v1447 = vsel %vm1400, %v1441, %v1350
    %v1448 = vsel %vm1400, %v1442, %v1351
    %1461 = vrot.lane.b32.xlu0 %v1401, 126
    %v1462 = vpop.permute.xlu0 %1461
    %1463 = vrot.lane.b32.xlu0 %v1443, 126
    %v1464 = vpop.permute.xlu0 %1463
    %1465 = vrot.lane.b32.xlu0 %v1402, 126
    %v1466 = vpop.permute.xlu0 %1465
    %1467 = vrot.lane.b32.xlu0 %v1444, 126
    %v1468 = vpop.permute.xlu0 %1467
    %1469 = vrot.lane.b32.xlu0 %v1403, 126
    %v1470 = vpop.permute.xlu0 %1469
    %1471 = vrot.lane.b32.xlu0 %v1445, 126
    %v1472 = vpop.permute.xlu0 %1471
    %1473 = vrot.lane.b32.xlu0 %v1404, 126
    %v1474 = vpop.permute.xlu0 %1473
    %1475 = vrot.lane.b32.xlu0 %v1446, 126
    %v1476 = vpop.permute.xlu0 %1475
    %1477 = vrot.lane.b32.xlu0 %v1405, 126
    %v1478 = vpop.permute.xlu0 %1477
    %1479 = vrot.lane.b32.xlu0 %v1447, 126
    %v1480 = vpop.permute.xlu0 %1479
    %1481 = vrot.lane.b32.xlu0 %v1406, 126
    %v1482 = vpop.permute.xlu0 %1481
    %1483 = vrot.lane.b32.xlu0 %v1448, 126
    %v1484 = vpop.permute.xlu0 %1483
    %1497 = vrot.lane.b32.xlu0 %v1401, 124
    %v1498 = vpop.permute.xlu0 %1497
    %1499 = vrot.lane.b32.xlu0 %v1443, 124
    %v1500 = vpop.permute.xlu0 %1499
    %1501 = vrot.lane.b32.xlu0 %v1402, 124
    %v1502 = vpop.permute.xlu0 %1501
    %1503 = vrot.lane.b32.xlu0 %v1444, 124
    %v1504 = vpop.permute.xlu0 %1503
    %1505 = vrot.lane.b32.xlu0 %v1403, 124
    %v1506 = vpop.permute.xlu0 %1505
    %1507 = vrot.lane.b32.xlu0 %v1445, 124
    %v1508 = vpop.permute.xlu0 %1507
    %1509 = vrot.lane.b32.xlu0 %v1404, 124
    %v1510 = vpop.permute.xlu0 %1509
    %1511 = vrot.lane.b32.xlu0 %v1446, 124
    %v1512 = vpop.permute.xlu0 %1511
    %1513 = vrot.lane.b32.xlu0 %v1405, 124
    %v1514 = vpop.permute.xlu0 %1513
    %1515 = vrot.lane.b32.xlu0 %v1447, 124
    %v1516 = vpop.permute.xlu0 %1515
    %1517 = vrot.lane.b32.xlu0 %v1406, 124
    %v1518 = vpop.permute.xlu0 %1517
    %1519 = vrot.lane.b32.xlu0 %v1448, 124
    %v1520 = vpop.permute.xlu0 %1519
    %1533 = vrot.lane.b32.xlu0 %v1401, 122
    %v1534 = vpop.permute.xlu0 %1533
    %1535 = vrot.lane.b32.xlu0 %v1443, 122
    %v1536 = vpop.permute.xlu0 %1535
    %1537 = vrot.lane.b32.xlu0 %v1402, 122
    %v1538 = vpop.permute.xlu0 %1537
    %1539 = vrot.lane.b32.xlu0 %v1444, 122
    %v1540 = vpop.permute.xlu0 %1539
    %1541 = vrot.lane.b32.xlu0 %v1403, 122
    %v1542 = vpop.permute.xlu0 %1541
    %1543 = vrot.lane.b32.xlu0 %v1445, 122
    %v1544 = vpop.permute.xlu0 %1543
    %1545 = vrot.lane.b32.xlu0 %v1404, 122
    %v1546 = vpop.permute.xlu0 %1545
    %1547 = vrot.lane.b32.xlu0 %v1446, 122
    %v1548 = vpop.permute.xlu0 %1547
    %1549 = vrot.lane.b32.xlu0 %v1405, 122
    %v1550 = vpop.permute.xlu0 %1549
    %1551 = vrot.lane.b32.xlu0 %v1447, 122
    %v1552 = vpop.permute.xlu0 %1551
    %1553 = vrot.lane.b32.xlu0 %v1406, 122
    %v1554 = vpop.permute.xlu0 %1553
    %1555 = vrot.lane.b32.xlu0 %v1448, 122
    %v1556 = vpop.permute.xlu0 %1555
    %1569 = vrot.lane.b32.xlu0 %v1401, 120
    %v1570 = vpop.permute.xlu0 %1569
    %1571 = vrot.lane.b32.xlu0 %v1443, 120
    %v1572 = vpop.permute.xlu0 %1571
    %1573 = vrot.lane.b32.xlu0 %v1402, 120
    %v1574 = vpop.permute.xlu0 %1573
    %1575 = vrot.lane.b32.xlu0 %v1444, 120
    %v1576 = vpop.permute.xlu0 %1575
    %1577 = vrot.lane.b32.xlu0 %v1403, 120
    %v1578 = vpop.permute.xlu0 %1577
    %1579 = vrot.lane.b32.xlu0 %v1445, 120
    %v1580 = vpop.permute.xlu0 %1579
    %1581 = vrot.lane.b32.xlu0 %v1404, 120
    %v1582 = vpop.permute.xlu0 %1581
    %1583 = vrot.lane.b32.xlu0 %v1446, 120
    %v1584 = vpop.permute.xlu0 %1583
    %1585 = vrot.lane.b32.xlu0 %v1405, 120
    %v1586 = vpop.permute.xlu0 %1585
    %1587 = vrot.lane.b32.xlu0 %v1447, 120
    %v1588 = vpop.permute.xlu0 %1587
    %1589 = vrot.lane.b32.xlu0 %v1406, 120
    %v1590 = vpop.permute.xlu0 %1589
    %1591 = vrot.lane.b32.xlu0 %v1448, 120
    %v1592 = vpop.permute.xlu0 %1591
    %1605 = vrot.lane.b32.xlu0 %v1401, 118
    %v1606 = vpop.permute.xlu0 %1605
    %1607 = vrot.lane.b32.xlu0 %v1443, 118
    %v1608 = vpop.permute.xlu0 %1607
    %1609 = vrot.lane.b32.xlu0 %v1402, 118
    %v1610 = vpop.permute.xlu0 %1609
    %1611 = vrot.lane.b32.xlu0 %v1444, 118
    %v1612 = vpop.permute.xlu0 %1611
    %1613 = vrot.lane.b32.xlu0 %v1403, 118
    %v1614 = vpop.permute.xlu0 %1613
    %1615 = vrot.lane.b32.xlu0 %v1445, 118
    %v1616 = vpop.permute.xlu0 %1615
    %1617 = vrot.lane.b32.xlu0 %v1404, 118
    %v1618 = vpop.permute.xlu0 %1617
    %1619 = vrot.lane.b32.xlu0 %v1446, 118
    %v1620 = vpop.permute.xlu0 %1619
    %1621 = vrot.lane.b32.xlu0 %v1405, 118
    %v1622 = vpop.permute.xlu0 %1621
    %1623 = vrot.lane.b32.xlu0 %v1447, 118
    %v1624 = vpop.permute.xlu0 %1623
    %1625 = vrot.lane.b32.xlu0 %v1406, 118
    %v1626 = vpop.permute.xlu0 %1625
    %1627 = vrot.lane.b32.xlu0 %v1448, 118
    %v1628 = vpop.permute.xlu0 %1627
    %1641 = vrot.lane.b32.xlu0 %v1401, 116
    %v1642 = vpop.permute.xlu0 %1641
    %1643 = vrot.lane.b32.xlu0 %v1443, 116
    %v1644 = vpop.permute.xlu0 %1643
    %1645 = vrot.lane.b32.xlu0 %v1402, 116
    %v1646 = vpop.permute.xlu0 %1645
    %1647 = vrot.lane.b32.xlu0 %v1444, 116
    %v1648 = vpop.permute.xlu0 %1647
    %1649 = vrot.lane.b32.xlu0 %v1403, 116
    %v1650 = vpop.permute.xlu0 %1649
    %1651 = vrot.lane.b32.xlu0 %v1445, 116
    %v1652 = vpop.permute.xlu0 %1651
    %1653 = vrot.lane.b32.xlu0 %v1404, 116
    %v1654 = vpop.permute.xlu0 %1653
    %1655 = vrot.lane.b32.xlu0 %v1446, 116
    %v1656 = vpop.permute.xlu0 %1655
    %1657 = vrot.lane.b32.xlu0 %v1405, 116
    %v1658 = vpop.permute.xlu0 %1657
    %1659 = vrot.lane.b32.xlu0 %v1447, 116
    %v1660 = vpop.permute.xlu0 %1659
    %1661 = vrot.lane.b32.xlu0 %v1406, 116
    %v1662 = vpop.permute.xlu0 %1661
    %1663 = vrot.lane.b32.xlu0 %v1448, 116
    %v1664 = vpop.permute.xlu0 %1663
    %1677 = vrot.lane.b32.xlu0 %v1401, 114
    %v1678 = vpop.permute.xlu0 %1677
    %1679 = vrot.lane.b32.xlu0 %v1443, 114
    %v1680 = vpop.permute.xlu0 %1679
    %1681 = vrot.lane.b32.xlu0 %v1402, 114
    %v1682 = vpop.permute.xlu0 %1681
    %1683 = vrot.lane.b32.xlu0 %v1444, 114
    %v1684 = vpop.permute.xlu0 %1683
    %1685 = vrot.lane.b32.xlu0 %v1403, 114
    %v1686 = vpop.permute.xlu0 %1685
    %1687 = vrot.lane.b32.xlu0 %v1445, 114
    %v1688 = vpop.permute.xlu0 %1687
    %1689 = vrot.lane.b32.xlu0 %v1404, 114
    %v1690 = vpop.permute.xlu0 %1689
    %1691 = vrot.lane.b32.xlu0 %v1446, 114
    %v1692 = vpop.permute.xlu0 %1691
    %1693 = vrot.lane.b32.xlu0 %v1405, 114
    %v1694 = vpop.permute.xlu0 %1693
    %1695 = vrot.lane.b32.xlu0 %v1447, 114
    %v1696 = vpop.permute.xlu0 %1695
    %1697 = vrot.lane.b32.xlu0 %v1406, 114
    %v1698 = vpop.permute.xlu0 %1697
    %1699 = vrot.lane.b32.xlu0 %v1448, 114
    %v1700 = vpop.permute.xlu0 %1699
    %1713 = vrot.lane.b32.xlu0 %v1401, 112
    %v1714 = vpop.permute.xlu0 %1713
    %1715 = vrot.lane.b32.xlu0 %v1443, 112
    %v1716 = vpop.permute.xlu0 %1715
    %1717 = vrot.lane.b32.xlu0 %v1402, 112
    %v1718 = vpop.permute.xlu0 %1717
    %1719 = vrot.lane.b32.xlu0 %v1444, 112
    %v1720 = vpop.permute.xlu0 %1719
    %1721 = vrot.lane.b32.xlu0 %v1403, 112
    %v1722 = vpop.permute.xlu0 %1721
    %1723 = vrot.lane.b32.xlu0 %v1445, 112
    %v1724 = vpop.permute.xlu0 %1723
    %1725 = vrot.lane.b32.xlu0 %v1404, 112
    %v1726 = vpop.permute.xlu0 %1725
    %1727 = vrot.lane.b32.xlu0 %v1446, 112
    %v1728 = vpop.permute.xlu0 %1727
    %1729 = vrot.lane.b32.xlu0 %v1405, 112
    %v1730 = vpop.permute.xlu0 %1729
    %1731 = vrot.lane.b32.xlu0 %v1447, 112
    %v1732 = vpop.permute.xlu0 %1731
    %1733 = vrot.lane.b32.xlu0 %v1406, 112
    %v1734 = vpop.permute.xlu0 %1733
    %1735 = vrot.lane.b32.xlu0 %v1448, 112
    %v1736 = vpop.permute.xlu0 %1735
    %1749 = vrot.lane.b32.xlu0 %v1401, 110
    %v1750 = vpop.permute.xlu0 %1749
    %1751 = vrot.lane.b32.xlu0 %v1443, 110
    %v1752 = vpop.permute.xlu0 %1751
    %1753 = vrot.lane.b32.xlu0 %v1402, 110
    %v1754 = vpop.permute.xlu0 %1753
    %1755 = vrot.lane.b32.xlu0 %v1444, 110
    %v1756 = vpop.permute.xlu0 %1755
    %1757 = vrot.lane.b32.xlu0 %v1403, 110
    %v1758 = vpop.permute.xlu0 %1757
    %1759 = vrot.lane.b32.xlu0 %v1445, 110
    %v1760 = vpop.permute.xlu0 %1759
    %1761 = vrot.lane.b32.xlu0 %v1404, 110
    %v1762 = vpop.permute.xlu0 %1761
    %1763 = vrot.lane.b32.xlu0 %v1446, 110
    %v1764 = vpop.permute.xlu0 %1763
    %1765 = vrot.lane.b32.xlu0 %v1405, 110
    %v1766 = vpop.permute.xlu0 %1765
    %1767 = vrot.lane.b32.xlu0 %v1447, 110
    %v1768 = vpop.permute.xlu0 %1767
    %1769 = vrot.lane.b32.xlu0 %v1406, 110
    %v1770 = vpop.permute.xlu0 %1769
    %1771 = vrot.lane.b32.xlu0 %v1448, 110
    %v1772 = vpop.permute.xlu0 %1771
    %1785 = vrot.lane.b32.xlu0 %v1401, 108
    %v1786 = vpop.permute.xlu0 %1785
    %1787 = vrot.lane.b32.xlu0 %v1443, 108
    %v1788 = vpop.permute.xlu0 %1787
    %1789 = vrot.lane.b32.xlu0 %v1402, 108
    %v1790 = vpop.permute.xlu0 %1789
    %1791 = vrot.lane.b32.xlu0 %v1444, 108
    %v1792 = vpop.permute.xlu0 %1791
    %1793 = vrot.lane.b32.xlu0 %v1403, 108
    %v1794 = vpop.permute.xlu0 %1793
    %1795 = vrot.lane.b32.xlu0 %v1445, 108
    %v1796 = vpop.permute.xlu0 %1795
    %1797 = vrot.lane.b32.xlu0 %v1404, 108
    %v1798 = vpop.permute.xlu0 %1797
    %1799 = vrot.lane.b32.xlu0 %v1446, 108
    %v1800 = vpop.permute.xlu0 %1799
    %1801 = vrot.lane.b32.xlu0 %v1405, 108
    %v1802 = vpop.permute.xlu0 %1801
    %1803 = vrot.lane.b32.xlu0 %v1447, 108
    %v1804 = vpop.permute.xlu0 %1803
    %1805 = vrot.lane.b32.xlu0 %v1406, 108
    %v1806 = vpop.permute.xlu0 %1805
    %1807 = vrot.lane.b32.xlu0 %v1448, 108
    %v1808 = vpop.permute.xlu0 %1807
    %1821 = vrot.lane.b32.xlu0 %v1401, 106
    %v1822 = vpop.permute.xlu0 %1821
    %1823 = vrot.lane.b32.xlu0 %v1443, 106
    %v1824 = vpop.permute.xlu0 %1823
    %1825 = vrot.lane.b32.xlu0 %v1402, 106
    %v1826 = vpop.permute.xlu0 %1825
    %1827 = vrot.lane.b32.xlu0 %v1444, 106
    %v1828 = vpop.permute.xlu0 %1827
    %1829 = vrot.lane.b32.xlu0 %v1403, 106
    %v1830 = vpop.permute.xlu0 %1829
    %1831 = vrot.lane.b32.xlu0 %v1445, 106
    %v1832 = vpop.permute.xlu0 %1831
    %1833 = vrot.lane.b32.xlu0 %v1404, 106
    %v1834 = vpop.permute.xlu0 %1833
    %1835 = vrot.lane.b32.xlu0 %v1446, 106
    %v1836 = vpop.permute.xlu0 %1835
    %1837 = vrot.lane.b32.xlu0 %v1405, 106
    %v1838 = vpop.permute.xlu0 %1837
    %1839 = vrot.lane.b32.xlu0 %v1447, 106
    %v1840 = vpop.permute.xlu0 %1839
    %1841 = vrot.lane.b32.xlu0 %v1406, 106
    %v1842 = vpop.permute.xlu0 %1841
    %1843 = vrot.lane.b32.xlu0 %v1448, 106
    %v1844 = vpop.permute.xlu0 %1843
    %1857 = vrot.lane.b32.xlu0 %v1401, 104
    %v1858 = vpop.permute.xlu0 %1857
    %1859 = vrot.lane.b32.xlu0 %v1443, 104
    %v1860 = vpop.permute.xlu0 %1859
    %1861 = vrot.lane.b32.xlu0 %v1402, 104
    %v1862 = vpop.permute.xlu0 %1861
    %1863 = vrot.lane.b32.xlu0 %v1444, 104
    %v1864 = vpop.permute.xlu0 %1863
    %1865 = vrot.lane.b32.xlu0 %v1403, 104
    %v1866 = vpop.permute.xlu0 %1865
    %1867 = vrot.lane.b32.xlu0 %v1445, 104
    %v1868 = vpop.permute.xlu0 %1867
    %1869 = vrot.lane.b32.xlu0 %v1404, 104
    %v1870 = vpop.permute.xlu0 %1869
    %1871 = vrot.lane.b32.xlu0 %v1446, 104
    %v1872 = vpop.permute.xlu0 %1871
    %1873 = vrot.lane.b32.xlu0 %v1405, 104
    %v1874 = vpop.permute.xlu0 %1873
    %1875 = vrot.lane.b32.xlu0 %v1447, 104
    %v1876 = vpop.permute.xlu0 %1875
    %1877 = vrot.lane.b32.xlu0 %v1406, 104
    %v1878 = vpop.permute.xlu0 %1877
    %1879 = vrot.lane.b32.xlu0 %v1448, 104
    %v1880 = vpop.permute.xlu0 %1879
    %1893 = vrot.lane.b32.xlu0 %v1401, 102
    %v1894 = vpop.permute.xlu0 %1893
    %1895 = vrot.lane.b32.xlu0 %v1443, 102
    %v1896 = vpop.permute.xlu0 %1895
    %1897 = vrot.lane.b32.xlu0 %v1402, 102
    %v1898 = vpop.permute.xlu0 %1897
    %1899 = vrot.lane.b32.xlu0 %v1444, 102
    %v1900 = vpop.permute.xlu0 %1899
    %1901 = vrot.lane.b32.xlu0 %v1403, 102
    %v1902 = vpop.permute.xlu0 %1901
    %1903 = vrot.lane.b32.xlu0 %v1445, 102
    %v1904 = vpop.permute.xlu0 %1903
    %1905 = vrot.lane.b32.xlu0 %v1404, 102
    %v1906 = vpop.permute.xlu0 %1905
    %1907 = vrot.lane.b32.xlu0 %v1446, 102
    %v1908 = vpop.permute.xlu0 %1907
    %1909 = vrot.lane.b32.xlu0 %v1405, 102
    %v1910 = vpop.permute.xlu0 %1909
    %1911 = vrot.lane.b32.xlu0 %v1447, 102
    %v1912 = vpop.permute.xlu0 %1911
    %1913 = vrot.lane.b32.xlu0 %v1406, 102
    %v1914 = vpop.permute.xlu0 %1913
    %1915 = vrot.lane.b32.xlu0 %v1448, 102
    %v1916 = vpop.permute.xlu0 %1915
    %1929 = vrot.lane.b32.xlu0 %v1401, 100
    %v1930 = vpop.permute.xlu0 %1929
    %1931 = vrot.lane.b32.xlu0 %v1443, 100
    %v1932 = vpop.permute.xlu0 %1931
    %1933 = vrot.lane.b32.xlu0 %v1402, 100
    %v1934 = vpop.permute.xlu0 %1933
    %1935 = vrot.lane.b32.xlu0 %v1444, 100
    %v1936 = vpop.permute.xlu0 %1935
    %1937 = vrot.lane.b32.xlu0 %v1403, 100
    %v1938 = vpop.permute.xlu0 %1937
    %1939 = vrot.lane.b32.xlu0 %v1445, 100
    %v1940 = vpop.permute.xlu0 %1939
    %1941 = vrot.lane.b32.xlu0 %v1404, 100
    %v1942 = vpop.permute.xlu0 %1941
    %1943 = vrot.lane.b32.xlu0 %v1446, 100
    %v1944 = vpop.permute.xlu0 %1943
    %1945 = vrot.lane.b32.xlu0 %v1405, 100
    %v1946 = vpop.permute.xlu0 %1945
    %1947 = vrot.lane.b32.xlu0 %v1447, 100
    %v1948 = vpop.permute.xlu0 %1947
    %1949 = vrot.lane.b32.xlu0 %v1406, 100
    %v1950 = vpop.permute.xlu0 %1949
    %1951 = vrot.lane.b32.xlu0 %v1448, 100
    %v1952 = vpop.permute.xlu0 %1951
    %1965 = vrot.lane.b32.xlu0 %v1401, 98
    %v1966 = vpop.permute.xlu0 %1965
    %1967 = vrot.lane.b32.xlu0 %v1443, 98
    %v1968 = vpop.permute.xlu0 %1967
    %1969 = vrot.lane.b32.xlu0 %v1402, 98
    %v1970 = vpop.permute.xlu0 %1969
    %1971 = vrot.lane.b32.xlu0 %v1444, 98
    %v1972 = vpop.permute.xlu0 %1971
    %1973 = vrot.lane.b32.xlu0 %v1403, 98
    %v1974 = vpop.permute.xlu0 %1973
    %1975 = vrot.lane.b32.xlu0 %v1445, 98
    %v1976 = vpop.permute.xlu0 %1975
    %1977 = vrot.lane.b32.xlu0 %v1404, 98
    %v1978 = vpop.permute.xlu0 %1977
    %1979 = vrot.lane.b32.xlu0 %v1446, 98
    %v1980 = vpop.permute.xlu0 %1979
    %1981 = vrot.lane.b32.xlu0 %v1405, 98
    %v1982 = vpop.permute.xlu0 %1981
    %1983 = vrot.lane.b32.xlu0 %v1447, 98
    %v1984 = vpop.permute.xlu0 %1983
    %1985 = vrot.lane.b32.xlu0 %v1406, 98
    %v1986 = vpop.permute.xlu0 %1985
    %1987 = vrot.lane.b32.xlu0 %v1448, 98
    %v1988 = vpop.permute.xlu0 %1987
    %vm2001 = vcmask 7168
    %v2002 = vsel %vm2001, %v1401, %v1462
    %v2003 = vsel %vm2001, %v1443, %v1464
    %v2004 = vsel %vm2001, %v1402, %v1466
    %v2005 = vsel %vm2001, %v1444, %v1468
    %v2006 = vsel %vm2001, %v1403, %v1470
    %v2007 = vsel %vm2001, %v1445, %v1472
    %v2008 = vsel %vm2001, %v1404, %v1474
    %v2009 = vsel %vm2001, %v1446, %v1476
    %v2010 = vsel %vm2001, %v1405, %v1478
    %v2011 = vsel %vm2001, %v1447, %v1480
    %v2012 = vsel %vm2001, %v1406, %v1482
    %v2013 = vsel %vm2001, %v1448, %v1484
    %vm2014 = vcmask 15360
    %v2015 = vsel %vm2014, %v2002, %v1498
    %v2016 = vsel %vm2014, %v2003, %v1500
    %v2017 = vsel %vm2014, %v2004, %v1502
    %v2018 = vsel %vm2014, %v2005, %v1504
    %v2019 = vsel %vm2014, %v2006, %v1506
    %v2020 = vsel %vm2014, %v2007, %v1508
    %v2021 = vsel %vm2014, %v2008, %v1510
    %v2022 = vsel %vm2014, %v2009, %v1512
    %v2023 = vsel %vm2014, %v2010, %v1514
    %v2024 = vsel %vm2014, %v2011, %v1516
    %v2025 = vsel %vm2014, %v2012, %v1518
    %v2026 = vsel %vm2014, %v2013, %v1520
    %vm2027 = vcmask 23552
    %v2028 = vsel %vm2027, %v2015, %v1534
    %v2029 = vsel %vm2027, %v2016, %v1536
    %v2030 = vsel %vm2027, %v2017, %v1538
    %v2031 = vsel %vm2027, %v2018, %v1540
    %v2032 = vsel %vm2027, %v2019, %v1542
    %v2033 = vsel %vm2027, %v2020, %v1544
    %v2034 = vsel %vm2027, %v2021, %v1546
    %v2035 = vsel %vm2027, %v2022, %v1548
    %v2036 = vsel %vm2027, %v2023, %v1550
    %v2037 = vsel %vm2027, %v2024, %v1552
    %v2038 = vsel %vm2027, %v2025, %v1554
    %v2039 = vsel %vm2027, %v2026, %v1556
    %vm2040 = vcmask 31744
    %v2041 = vsel %vm2040, %v2028, %v1570
    %v2042 = vsel %vm2040, %v2029, %v1572
    %v2043 = vsel %vm2040, %v2030, %v1574
    %v2044 = vsel %vm2040, %v2031, %v1576
    %v2045 = vsel %vm2040, %v2032, %v1578
    %v2046 = vsel %vm2040, %v2033, %v1580
    %v2047 = vsel %vm2040, %v2034, %v1582
    %v2048 = vsel %vm2040, %v2035, %v1584
    %v2049 = vsel %vm2040, %v2036, %v1586
    %v2050 = vsel %vm2040, %v2037, %v1588
    %v2051 = vsel %vm2040, %v2038, %v1590
    %v2052 = vsel %vm2040, %v2039, %v1592
    %vm2053 = vcmask 39936
    %v2054 = vsel %vm2053, %v2041, %v1606
    %v2055 = vsel %vm2053, %v2042, %v1608
    %v2056 = vsel %vm2053, %v2043, %v1610
    %v2057 = vsel %vm2053, %v2044, %v1612
    %v2058 = vsel %vm2053, %v2045, %v1614
    %v2059 = vsel %vm2053, %v2046, %v1616
    %v2060 = vsel %vm2053, %v2047, %v1618
    %v2061 = vsel %vm2053, %v2048, %v1620
    %v2062 = vsel %vm2053, %v2049, %v1622
    %v2063 = vsel %vm2053, %v2050, %v1624
    %v2064 = vsel %vm2053, %v2051, %v1626
    %v2065 = vsel %vm2053, %v2052, %v1628
    %vm2066 = vcmask 48128
    %v2067 = vsel %vm2066, %v2054, %v1642
    %v2068 = vsel %vm2066, %v2055, %v1644
    %v2069 = vsel %vm2066, %v2056, %v1646
    %v2070 = vsel %vm2066, %v2057, %v1648
    %v2071 = vsel %vm2066, %v2058, %v1650
    %v2072 = vsel %vm2066, %v2059, %v1652
    %v2073 = vsel %vm2066, %v2060, %v1654
    %v2074 = vsel %vm2066, %v2061, %v1656
    %v2075 = vsel %vm2066, %v2062, %v1658
    %v2076 = vsel %vm2066, %v2063, %v1660
    %v2077 = vsel %vm2066, %v2064, %v1662
    %v2078 = vsel %vm2066, %v2065, %v1664
    %vm2079 = vcmask 56320
    %v2080 = vsel %vm2079, %v2067, %v1678
    %v2081 = vsel %vm2079, %v2068, %v1680
    %v2082 = vsel %vm2079, %v2069, %v1682
    %v2083 = vsel %vm2079, %v2070, %v1684
    %v2084 = vsel %vm2079, %v2071, %v1686
    %v2085 = vsel %vm2079, %v2072, %v1688
    %v2086 = vsel %vm2079, %v2073, %v1690
    %v2087 = vsel %vm2079, %v2074, %v1692
    %v2088 = vsel %vm2079, %v2075, %v1694
    %v2089 = vsel %vm2079, %v2076, %v1696
    %v2090 = vsel %vm2079, %v2077, %v1698
    %v2091 = vsel %vm2079, %v2078, %v1700
    %vm2092 = vcmask 64512
    %v2093 = vsel %vm2092, %v2080, %v1714
    %v2094 = vsel %vm2092, %v2081, %v1716
    %v2095 = vsel %vm2092, %v2082, %v1718
    %v2096 = vsel %vm2092, %v2083, %v1720
    %v2097 = vsel %vm2092, %v2084, %v1722
    %v2098 = vsel %vm2092, %v2085, %v1724
    %v2099 = vsel %vm2092, %v2086, %v1726
    %v2100 = vsel %vm2092, %v2087, %v1728
    %v2101 = vsel %vm2092, %v2088, %v1730
    %v2102 = vsel %vm2092, %v2089, %v1732
    %v2103 = vsel %vm2092, %v2090, %v1734
    %v2104 = vsel %vm2092, %v2091, %v1736
    %vm2105 = vcmask 72704
    %v2106 = vsel %vm2105, %v2093, %v1750
    %v2107 = vsel %vm2105, %v2094, %v1752
    %v2108 = vsel %vm2105, %v2095, %v1754
    %v2109 = vsel %vm2105, %v2096, %v1756
    %v2110 = vsel %vm2105, %v2097, %v1758
    %v2111 = vsel %vm2105, %v2098, %v1760
    %v2112 = vsel %vm2105, %v2099, %v1762
    %v2113 = vsel %vm2105, %v2100, %v1764
    %v2114 = vsel %vm2105, %v2101, %v1766
    %v2115 = vsel %vm2105, %v2102, %v1768
    %v2116 = vsel %vm2105, %v2103, %v1770
    %v2117 = vsel %vm2105, %v2104, %v1772
    %vm2118 = vcmask 80896
    %v2119 = vsel %vm2118, %v2106, %v1786
    %v2120 = vsel %vm2118, %v2107, %v1788
    %v2121 = vsel %vm2118, %v2108, %v1790
    %v2122 = vsel %vm2118, %v2109, %v1792
    %v2123 = vsel %vm2118, %v2110, %v1794
    %v2124 = vsel %vm2118, %v2111, %v1796
    %v2125 = vsel %vm2118, %v2112, %v1798
    %v2126 = vsel %vm2118, %v2113, %v1800
    %v2127 = vsel %vm2118, %v2114, %v1802
    %v2128 = vsel %vm2118, %v2115, %v1804
    %v2129 = vsel %vm2118, %v2116, %v1806
    %v2130 = vsel %vm2118, %v2117, %v1808
    %vm2131 = vcmask 89088
    %v2132 = vsel %vm2131, %v2119, %v1822
    %v2133 = vsel %vm2131, %v2120, %v1824
    %v2134 = vsel %vm2131, %v2121, %v1826
    %v2135 = vsel %vm2131, %v2122, %v1828
    %v2136 = vsel %vm2131, %v2123, %v1830
    %v2137 = vsel %vm2131, %v2124, %v1832
    %v2138 = vsel %vm2131, %v2125, %v1834
    %v2139 = vsel %vm2131, %v2126, %v1836
    %v2140 = vsel %vm2131, %v2127, %v1838
    %v2141 = vsel %vm2131, %v2128, %v1840
    %v2142 = vsel %vm2131, %v2129, %v1842
    %v2143 = vsel %vm2131, %v2130, %v1844
    %vm2144 = vcmask 97280
    %v2145 = vsel %vm2144, %v2132, %v1858
    %v2146 = vsel %vm2144, %v2133, %v1860
    %v2147 = vsel %vm2144, %v2134, %v1862
    %v2148 = vsel %vm2144, %v2135, %v1864
    %v2149 = vsel %vm2144, %v2136, %v1866
    %v2150 = vsel %vm2144, %v2137, %v1868
    %v2151 = vsel %vm2144, %v2138, %v1870
    %v2152 = vsel %vm2144, %v2139, %v1872
    %v2153 = vsel %vm2144, %v2140, %v1874
    %v2154 = vsel %vm2144, %v2141, %v1876
    %v2155 = vsel %vm2144, %v2142, %v1878
    %v2156 = vsel %vm2144, %v2143, %v1880
    %vm2157 = vcmask 105472
    %v2158 = vsel %vm2157, %v2145, %v1894
    %v2159 = vsel %vm2157, %v2146, %v1896
    %v2160 = vsel %vm2157, %v2147, %v1898
    %v2161 = vsel %vm2157, %v2148, %v1900
    %v2162 = vsel %vm2157, %v2149, %v1902
    %v2163 = vsel %vm2157, %v2150, %v1904
    %v2164 = vsel %vm2157, %v2151, %v1906
    %v2165 = vsel %vm2157, %v2152, %v1908
    %v2166 = vsel %vm2157, %v2153, %v1910
    %v2167 = vsel %vm2157, %v2154, %v1912
    %v2168 = vsel %vm2157, %v2155, %v1914
    %v2169 = vsel %vm2157, %v2156, %v1916
    %vm2170 = vcmask 113664
    %v2171 = vsel %vm2170, %v2158, %v1930
    %v2172 = vsel %vm2170, %v2159, %v1932
    %v2173 = vsel %vm2170, %v2160, %v1934
    %v2174 = vsel %vm2170, %v2161, %v1936
    %v2175 = vsel %vm2170, %v2162, %v1938
    %v2176 = vsel %vm2170, %v2163, %v1940
    %v2177 = vsel %vm2170, %v2164, %v1942
    %v2178 = vsel %vm2170, %v2165, %v1944
    %v2179 = vsel %vm2170, %v2166, %v1946
    %v2180 = vsel %vm2170, %v2167, %v1948
    %v2181 = vsel %vm2170, %v2168, %v1950
    %v2182 = vsel %vm2170, %v2169, %v1952
    %vm2183 = vcmask 121856
    %v2184 = vsel %vm2183, %v2171, %v1966
    %v2185 = vsel %vm2183, %v2172, %v1968
    %v2186 = vsel %vm2183, %v2173, %v1970
    %v2187 = vsel %vm2183, %v2174, %v1972
    %v2188 = vsel %vm2183, %v2175, %v1974
    %v2189 = vsel %vm2183, %v2176, %v1976
    %v2190 = vsel %vm2183, %v2177, %v1978
    %v2191 = vsel %vm2183, %v2178, %v1980
    %v2192 = vsel %vm2183, %v2179, %v1982
    %v2193 = vsel %vm2183, %v2180, %v1984
    %v2194 = vsel %vm2183, %v2181, %v1986
    %v2195 = vsel %vm2183, %v2182, %v1988
    %vm2196 = vcmask 156672
    %2197 = vst.msk [vmem:[#allocation2] sm:$0x3] %vm2196, -inf
    %2198 = vst.msk [vmem:[#allocation2 + $0x18] sm:$0x3] %vm2196, -inf
    %2199 = vst.msk [vmem:[#allocation2 + $0x30] sm:$0x3] %vm2196, -inf
    %2200 = vst.msk [vmem:[#allocation2 + $0x48] sm:$0x3] %vm2196, -inf
    %2201 = vst.msk [vmem:[#allocation2 + $0x60] sm:$0x3] %vm2196, -inf
    %2202 = vst.msk [vmem:[#allocation2 + $0x78] sm:$0x3] %vm2196, -inf
    %2203 = vst.msk [vmem:[#allocation2 + $0x12] sm:$0x3] %vm2196, -inf
    %2204 = vst.msk [vmem:[#allocation2 + $0x2a] sm:$0x3] %vm2196, -inf
    %2205 = vst.msk [vmem:[#allocation2 + $0x42] sm:$0x3] %vm2196, -inf
    %2206 = vst.msk [vmem:[#allocation2 + $0x5a] sm:$0x3] %vm2196, -inf
    %2207 = vst.msk [vmem:[#allocation2 + $0x72] sm:$0x3] %vm2196, -inf
    %2208 = vst.msk [vmem:[#allocation2 + $0x8a] sm:$0x3] %vm2196, -inf
    %2209 = vst.msk [vmem:[#allocation2 + $0x2] sm:$0xff] %vm2014, -inf
    %2210 = vst.msk [vmem:[#allocation2 + $0xa] sm:$0xff] %vm2014, -inf
    %2211 = vst.msk [vmem:[#allocation2 + $0x1a] sm:$0xff] %vm2014, -inf
    %2212 = vst.msk [vmem:[#allocation2 + $0x22] sm:$0xff] %vm2014, -inf
    %2213 = vst.msk [vmem:[#allocation2 + $0x32] sm:$0xff] %vm2014, -inf
    %2214 = vst.msk [vmem:[#allocation2 + $0x3a] sm:$0xff] %vm2014, -inf
    %2215 = vst.msk [vmem:[#allocation2 + $0x4a] sm:$0xff] %vm2014, -inf
    %2216 = vst.msk [vmem:[#allocation2 + $0x52] sm:$0xff] %vm2014, -inf
    %2217 = vst.msk [vmem:[#allocation2 + $0x62] sm:$0xff] %vm2014, -inf
    %2218 = vst.msk [vmem:[#allocation2 + $0x6a] sm:$0xff] %vm2014, -inf
    %2219 = vst.msk [vmem:[#allocation2 + $0x7a] sm:$0xff] %vm2014, -inf
    %2220 = vst.msk [vmem:[#allocation2 + $0x82] sm:$0xff] %vm2014, -inf
    %vm2221 = vcmask 162960
    %2222 = vst.msk [vmem:[#allocation2 + $0x2] sm:$0xff] %vm2221, -inf
    %2223 = vst.msk [vmem:[#allocation2 + $0xa] sm:$0xff] %vm2221, -inf
    %2224 = vst.msk [vmem:[#allocation2 + $0x1a] sm:$0xff] %vm2221, -inf
    %2225 = vst.msk [vmem:[#allocation2 + $0x22] sm:$0xff] %vm2221, -inf
    %2226 = vst.msk [vmem:[#allocation2 + $0x32] sm:$0xff] %vm2221, -inf
    %2227 = vst.msk [vmem:[#allocation2 + $0x3a] sm:$0xff] %vm2221, -inf
    %2228 = vst.msk [vmem:[#allocation2 + $0x4a] sm:$0xff] %vm2221, -inf
    %2229 = vst.msk [vmem:[#allocation2 + $0x52] sm:$0xff] %vm2221, -inf
    %2230 = vst.msk [vmem:[#allocation2 + $0x62] sm:$0xff] %vm2221, -inf
    %2231 = vst.msk [vmem:[#allocation2 + $0x6a] sm:$0xff] %vm2221, -inf
    %2232 = vst.msk [vmem:[#allocation2 + $0x7a] sm:$0xff] %vm2221, -inf
    %2233 = vst.msk [vmem:[#allocation2 + $0x82] sm:$0xff] %vm2221, -inf
    %2246 = vrot.lane.b32.xlu0 %v2184, 2
    %v2247 = vpop.permute.xlu0 %2246
    %2248 = vrot.lane.b32.xlu0 %v2185, 2
    %v2249 = vpop.permute.xlu0 %2248
    %2250 = vrot.lane.b32.xlu0 %v2186, 2
    %v2251 = vpop.permute.xlu0 %2250
    %2252 = vrot.lane.b32.xlu0 %v2187, 2
    %v2253 = vpop.permute.xlu0 %2252
    %2254 = vrot.lane.b32.xlu0 %v2188, 2
    %v2255 = vpop.permute.xlu0 %2254
    %2256 = vrot.lane.b32.xlu0 %v2189, 2
    %v2257 = vpop.permute.xlu0 %2256
    %2258 = vrot.lane.b32.xlu0 %v2190, 2
    %v2259 = vpop.permute.xlu0 %2258
    %2260 = vrot.lane.b32.xlu0 %v2191, 2
    %v2261 = vpop.permute.xlu0 %2260
    %2262 = vrot.lane.b32.xlu0 %v2192, 2
    %v2263 = vpop.permute.xlu0 %2262
    %2264 = vrot.lane.b32.xlu0 %v2193, 2
    %v2265 = vpop.permute.xlu0 %2264
    %2266 = vrot.lane.b32.xlu0 %v2194, 2
    %v2267 = vpop.permute.xlu0 %2266
    %2268 = vrot.lane.b32.xlu0 %v2195, 2
    %v2269 = vpop.permute.xlu0 %2268
    %vm2282 = vcmask 146448
    %2283 = vst.msk [vmem:[#allocation2 + $0x2] sm:$0xff] %vm2282, %v2247
    %2284 = vst.msk [vmem:[#allocation2 + $0xa] sm:$0xff] %vm2282, %v2249
    %2285 = vst.msk [vmem:[#allocation2 + $0x1a] sm:$0xff] %vm2282, %v2251
    %2286 = vst.msk [vmem:[#allocation2 + $0x22] sm:$0xff] %vm2282, %v2253
    %2287 = vst.msk [vmem:[#allocation2 + $0x32] sm:$0xff] %vm2282, %v2255
    %2288 = vst.msk [vmem:[#allocation2 + $0x3a] sm:$0xff] %vm2282, %v2257
    %2289 = vst.msk [vmem:[#allocation2 + $0x4a] sm:$0xff] %vm2282, %v2259
    %2290 = vst.msk [vmem:[#allocation2 + $0x52] sm:$0xff] %vm2282, %v2261
    %2291 = vst.msk [vmem:[#allocation2 + $0x62] sm:$0xff] %vm2282, %v2263
    %2292 = vst.msk [vmem:[#allocation2 + $0x6a] sm:$0xff] %vm2282, %v2265
    %2293 = vst.msk [vmem:[#allocation2 + $0x7a] sm:$0xff] %vm2282, %v2267
    %2294 = vst.msk [vmem:[#allocation2 + $0x82] sm:$0xff] %vm2282, %v2269
    %v2295 = vld [vmem:[#allocation2] sm:$0xff]
    %v2296 = vld [vmem:[#allocation2 + $0x8] sm:$0xff]
    %v2297 = vld [vmem:[#allocation2 + $0x10] sm:$0x1]
    %v2298 = vld [vmem:[#allocation2 + $0x18] sm:$0xff]
    %v2299 = vld [vmem:[#allocation2 + $0x20] sm:$0xff]
    %v2300 = vld [vmem:[#allocation2 + $0x28] sm:$0x1]
    %v2301 = vld [vmem:[#allocation2 + $0x30] sm:$0xff]
    %v2302 = vld [vmem:[#allocation2 + $0x38] sm:$0xff]
    %v2303 = vld [vmem:[#allocation2 + $0x40] sm:$0x1]
    %v2304 = vld [vmem:[#allocation2 + $0x48] sm:$0xff]
    %v2305 = vld [vmem:[#allocation2 + $0x50] sm:$0xff]
    %v2306 = vld [vmem:[#allocation2 + $0x58] sm:$0x1]
    %v2307 = vld [vmem:[#allocation2 + $0x60] sm:$0xff]
    %v2308 = vld [vmem:[#allocation2 + $0x68] sm:$0xff]
    %v2309 = vld [vmem:[#allocation2 + $0x70] sm:$0x1]
    %v2310 = vld [vmem:[#allocation2 + $0x78] sm:$0xff]
    %v2311 = vld [vmem:[#allocation2 + $0x80] sm:$0xff]
    %v2312 = vld [vmem:[#allocation2 + $0x88] sm:$0x1]
    %2331 = vrot.lane.b32.xlu0 %v2295, 127
    %v2332 = vpop.permute.xlu0 %2331
    %2333 = vrot.lane.b32.xlu0 %v2296, 127
    %v2334 = vpop.permute.xlu0 %2333
    %2335 = vrot.lane.b32.xlu0 %v2297, 127
    %v2336 = vpop.permute.xlu0 %2335
    %2337 = vrot.lane.b32.xlu0 %v2298, 127
    %v2338 = vpop.permute.xlu0 %2337
    %2339 = vrot.lane.b32.xlu0 %v2299, 127
    %v2340 = vpop.permute.xlu0 %2339
    %2341 = vrot.lane.b32.xlu0 %v2300, 127
    %v2342 = vpop.permute.xlu0 %2341
    %2343 = vrot.lane.b32.xlu0 %v2301, 127
    %v2344 = vpop.permute.xlu0 %2343
    %2345 = vrot.lane.b32.xlu0 %v2302, 127
    %v2346 = vpop.permute.xlu0 %2345
    %2347 = vrot.lane.b32.xlu0 %v2303, 127
    %v2348 = vpop.permute.xlu0 %2347
    %2349 = vrot.lane.b32.xlu0 %v2304, 127
    %v2350 = vpop.permute.xlu0 %2349
    %2351 = vrot.lane.b32.xlu0 %v2305, 127
    %v2352 = vpop.permute.xlu0 %2351
    %2353 = vrot.lane.b32.xlu0 %v2306, 127
    %v2354 = vpop.permute.xlu0 %2353
    %2355 = vrot.lane.b32.xlu0 %v2307, 127
    %v2356 = vpop.permute.xlu0 %2355
    %2357 = vrot.lane.b32.xlu0 %v2308, 127
    %v2358 = vpop.permute.xlu0 %2357
    %2359 = vrot.lane.b32.xlu0 %v2309, 127
    %v2360 = vpop.permute.xlu0 %2359
    %2361 = vrot.lane.b32.xlu0 %v2310, 127
    %v2362 = vpop.permute.xlu0 %2361
    %2363 = vrot.lane.b32.xlu0 %v2311, 127
    %v2364 = vpop.permute.xlu0 %2363
    %2365 = vrot.lane.b32.xlu0 %v2312, 127
    %v2366 = vpop.permute.xlu0 %2365
    %v2385 = vmax.f32 %v2295, %v2332
    %v2386 = vmax.f32 %v2296, %v2334
    %v2387 = vmax.f32 %v2297, %v2336
    %v2388 = vmax.f32 %v2298, %v2338
    %v2389 = vmax.f32 %v2299, %v2340
    %v2390 = vmax.f32 %v2300, %v2342
    %v2391 = vmax.f32 %v2301, %v2344
    %v2392 = vmax.f32 %v2302, %v2346
    %v2393 = vmax.f32 %v2303, %v2348
    %v2394 = vmax.f32 %v2304, %v2350
    %v2395 = vmax.f32 %v2305, %v2352
    %v2396 = vmax.f32 %v2306, %v2354
    %v2397 = vmax.f32 %v2307, %v2356
    %v2398 = vmax.f32 %v2308, %v2358
    %v2399 = vmax.f32 %v2309, %v2360
    %v2400 = vmax.f32 %v2310, %v2362
    %v2401 = vmax.f32 %v2311, %v2364
    %v2402 = vmax.f32 %v2312, %v2366
    %2403 = vrot.lane.b32.xlu0 %v2295, 126
    %v2404 = vpop.permute.xlu0 %2403
    %2405 = vrot.lane.b32.xlu0 %v2296, 126
    %v2406 = vpop.permute.xlu0 %2405
    %2407 = vrot.lane.b32.xlu0 %v2297, 126
    %v2408 = vpop.permute.xlu0 %2407
    %2409 = vrot.lane.b32.xlu0 %v2298, 126
    %v2410 = vpop.permute.xlu0 %2409
    %2411 = vrot.lane.b32.xlu0 %v2299, 126
    %v2412 = vpop.permute.xlu0 %2411
    %2413 = vrot.lane.b32.xlu0 %v2300, 126
    %v2414 = vpop.permute.xlu0 %2413
    %2415 = vrot.lane.b32.xlu0 %v2301, 126
    %v2416 = vpop.permute.xlu0 %2415
    %2417 = vrot.lane.b32.xlu0 %v2302, 126
    %v2418 = vpop.permute.xlu0 %2417
    %2419 = vrot.lane.b32.xlu0 %v2303, 126
    %v2420 = vpop.permute.xlu0 %2419
    %2421 = vrot.lane.b32.xlu0 %v2304, 126
    %v2422 = vpop.permute.xlu0 %2421
    %2423 = vrot.lane.b32.xlu0 %v2305, 126
    %v2424 = vpop.permute.xlu0 %2423
    %2425 = vrot.lane.b32.xlu0 %v2306, 126
    %v2426 = vpop.permute.xlu0 %2425
    %2427 = vrot.lane.b32.xlu0 %v2307, 126
    %v2428 = vpop.permute.xlu0 %2427
    %2429 = vrot.lane.b32.xlu0 %v2308, 126
    %v2430 = vpop.permute.xlu0 %2429
    %2431 = vrot.lane.b32.xlu0 %v2309, 126
    %v2432 = vpop.permute.xlu0 %2431
    %2433 = vrot.lane.b32.xlu0 %v2310, 126
    %v2434 = vpop.permute.xlu0 %2433
    %2435 = vrot.lane.b32.xlu0 %v2311, 126
    %v2436 = vpop.permute.xlu0 %2435
    %2437 = vrot.lane.b32.xlu0 %v2312, 126
    %v2438 = vpop.permute.xlu0 %2437
    %v2457 = vmax.f32 %v2385, %v2404
    %v2458 = vmax.f32 %v2386, %v2406
    %v2459 = vmax.f32 %v2387, %v2408
    %v2460 = vmax.f32 %v2388, %v2410
    %v2461 = vmax.f32 %v2389, %v2412
    %v2462 = vmax.f32 %v2390, %v2414
    %v2463 = vmax.f32 %v2391, %v2416
    %v2464 = vmax.f32 %v2392, %v2418
    %v2465 = vmax.f32 %v2393, %v2420
    %v2466 = vmax.f32 %v2394, %v2422
    %v2467 = vmax.f32 %v2395, %v2424
    %v2468 = vmax.f32 %v2396, %v2426
    %v2469 = vmax.f32 %v2397, %v2428
    %v2470 = vmax.f32 %v2398, %v2430
    %v2471 = vmax.f32 %v2399, %v2432
    %v2472 = vmax.f32 %v2400, %v2434
    %v2473 = vmax.f32 %v2401, %v2436
    %v2474 = vmax.f32 %v2402, %v2438
    %2475 = vrot.lane.b32.xlu0 %v2295, 125
    %v2476 = vpop.permute.xlu0 %2475
    %2477 = vrot.lane.b32.xlu0 %v2296, 125
    %v2478 = vpop.permute.xlu0 %2477
    %2479 = vrot.lane.b32.xlu0 %v2297, 125
    %v2480 = vpop.permute.xlu0 %2479
    %2481 = vrot.lane.b32.xlu0 %v2298, 125
    %v2482 = vpop.permute.xlu0 %2481
    %2483 = vrot.lane.b32.xlu0 %v2299, 125
    %v2484 = vpop.permute.xlu0 %2483
    %2485 = vrot.lane.b32.xlu0 %v2300, 125
    %v2486 = vpop.permute.xlu0 %2485
    %2487 = vrot.lane.b32.xlu0 %v2301, 125
    %v2488 = vpop.permute.xlu0 %2487
    %2489 = vrot.lane.b32.xlu0 %v2302, 125
    %v2490 = vpop.permute.xlu0 %2489
    %2491 = vrot.lane.b32.xlu0 %v2303, 125
    %v2492 = vpop.permute.xlu0 %2491
    %2493 = vrot.lane.b32.xlu0 %v2304, 125
    %v2494 = vpop.permute.xlu0 %2493
    %2495 = vrot.lane.b32.xlu0 %v2305, 125
    %v2496 = vpop.permute.xlu0 %2495
    %2497 = vrot.lane.b32.xlu0 %v2306, 125
    %v2498 = vpop.permute.xlu0 %2497
    %2499 = vrot.lane.b32.xlu0 %v2307, 125
    %v2500 = vpop.permute.xlu0 %2499
    %2501 = vrot.lane.b32.xlu0 %v2308, 125
    %v2502 = vpop.permute.xlu0 %2501
    %2503 = vrot.lane.b32.xlu0 %v2309, 125
    %v2504 = vpop.permute.xlu0 %2503
    %2505 = vrot.lane.b32.xlu0 %v2310, 125
    %v2506 = vpop.permute.xlu0 %2505
    %2507 = vrot.lane.b32.xlu0 %v2311, 125
    %v2508 = vpop.permute.xlu0 %2507
    %2509 = vrot.lane.b32.xlu0 %v2312, 125
    %v2510 = vpop.permute.xlu0 %2509
    %v2529 = vmax.f32 %v2457, %v2476
    %v2530 = vmax.f32 %v2458, %v2478
    %v2531 = vmax.f32 %v2459, %v2480
    %v2532 = vmax.f32 %v2460, %v2482
    %v2533 = vmax.f32 %v2461, %v2484
    %v2534 = vmax.f32 %v2462, %v2486
    %v2535 = vmax.f32 %v2463, %v2488
    %v2536 = vmax.f32 %v2464, %v2490
    %v2537 = vmax.f32 %v2465, %v2492
    %v2538 = vmax.f32 %v2466, %v2494
    %v2539 = vmax.f32 %v2467, %v2496
    %v2540 = vmax.f32 %v2468, %v2498
    %v2541 = vmax.f32 %v2469, %v2500
    %v2542 = vmax.f32 %v2470, %v2502
    %v2543 = vmax.f32 %v2471, %v2504
    %v2544 = vmax.f32 %v2472, %v2506
    %v2545 = vmax.f32 %v2473, %v2508
    %v2546 = vmax.f32 %v2474, %v2510
    %v2547 = vld [vmem:[#allocation2 + $0x1] sm:$0xff]
    %v2548 = vld [vmem:[#allocation2 + $0x9] sm:$0xff]
    %v2549 = vld [vmem:[#allocation2 + $0x11] sm:$0x1]
    %v2550 = vld [vmem:[#allocation2 + $0x19] sm:$0xff]
    %v2551 = vld [vmem:[#allocation2 + $0x21] sm:$0xff]
    %v2552 = vld [vmem:[#allocation2 + $0x29] sm:$0x1]
    %v2553 = vld [vmem:[#allocation2 + $0x31] sm:$0xff]
    %v2554 = vld [vmem:[#allocation2 + $0x39] sm:$0xff]
    %v2555 = vld [vmem:[#allocation2 + $0x41] sm:$0x1]
    %v2556 = vld [vmem:[#allocation2 + $0x49] sm:$0xff]
    %v2557 = vld [vmem:[#allocation2 + $0x51] sm:$0xff]
    %v2558 = vld [vmem:[#allocation2 + $0x59] sm:$0x1]
    %v2559 = vld [vmem:[#allocation2 + $0x61] sm:$0xff]
    %v2560 = vld [vmem:[#allocation2 + $0x69] sm:$0xff]
    %v2561 = vld [vmem:[#allocation2 + $0x71] sm:$0x1]
    %v2562 = vld [vmem:[#allocation2 + $0x79] sm:$0xff]
    %v2563 = vld [vmem:[#allocation2 + $0x81] sm:$0xff]
    %v2564 = vld [vmem:[#allocation2 + $0x89] sm:$0x1]
    %v2565 = vmax.f32 %v2529, %v2547
    %v2566 = vmax.f32 %v2530, %v2548
    %v2567 = vmax.f32 %v2531, %v2549
    %v2568 = vmax.f32 %v2532, %v2550
    %v2569 = vmax.f32 %v2533, %v2551
    %v2570 = vmax.f32 %v2534, %v2552
    %v2571 = vmax.f32 %v2535, %v2553
    %v2572 = vmax.f32 %v2536, %v2554
    %v2573 = vmax.f32 %v2537, %v2555
    %v2574 = vmax.f32 %v2538, %v2556
    %v2575 = vmax.f32 %v2539, %v2557
    %v2576 = vmax.f32 %v2540, %v2558
    %v2577 = vmax.f32 %v2541, %v2559
    %v2578 = vmax.f32 %v2542, %v2560
    %v2579 = vmax.f32 %v2543, %v2561
    %v2580 = vmax.f32 %v2544, %v2562
    %v2581 = vmax.f32 %v2545, %v2563
    %v2582 = vmax.f32 %v2546, %v2564
    %2601 = vrot.lane.b32.xlu0 %v2547, 127
    %v2602 = vpop.permute.xlu0 %2601
    %2603 = vrot.lane.b32.xlu0 %v2548, 127
    %v2604 = vpop.permute.xlu0 %2603
    %2605 = vrot.lane.b32.xlu0 %v2549, 127
    %v2606 = vpop.permute.xlu0 %2605
    %2607 = vrot.lane.b32.xlu0 %v2550, 127
    %v2608 = vpop.permute.xlu0 %2607
    %2609 = vrot.lane.b32.xlu0 %v2551, 127
    %v2610 = vpop.permute.xlu0 %2609
    %2611 = vrot.lane.b32.xlu0 %v2552, 127
    %v2612 = vpop.permute.xlu0 %2611
    %2613 = vrot.lane.b32.xlu0 %v2553, 127
    %v2614 = vpop.permute.xlu0 %2613
    %2615 = vrot.lane.b32.xlu0 %v2554, 127
    %v2616 = vpop.permute.xlu0 %2615
    %2617 = vrot.lane.b32.xlu0 %v2555, 127
    %v2618 = vpop.permute.xlu0 %2617
    %2619 = vrot.lane.b32.xlu0 %v2556, 127
    %v2620 = vpop.permute.xlu0 %2619
    %2621 = vrot.lane.b32.xlu0 %v2557, 127
    %v2622 = vpop.permute.xlu0 %2621
    %2623 = vrot.lane.b32.xlu0 %v2558, 127
    %v2624 = vpop.permute.xlu0 %2623
    %2625 = vrot.lane.b32.xlu0 %v2559, 127
    %v2626 = vpop.permute.xlu0 %2625
    %2627 = vrot.lane.b32.xlu0 %v2560, 127
    %v2628 = vpop.permute.xlu0 %2627
    %2629 = vrot.lane.b32.xlu0 %v2561, 127
    %v2630 = vpop.permute.xlu0 %2629
    %2631 = vrot.lane.b32.xlu0 %v2562, 127
    %v2632 = vpop.permute.xlu0 %2631
    %2633 = vrot.lane.b32.xlu0 %v2563, 127
    %v2634 = vpop.permute.xlu0 %2633
    %2635 = vrot.lane.b32.xlu0 %v2564, 127
    %v2636 = vpop.permute.xlu0 %2635
    %v2655 = vmax.f32 %v2565, %v2602
    %v2656 = vmax.f32 %v2566, %v2604
    %v2657 = vmax.f32 %v2567, %v2606
    %v2658 = vmax.f32 %v2568, %v2608
    %v2659 = vmax.f32 %v2569, %v2610
    %v2660 = vmax.f32 %v2570, %v2612
    %v2661 = vmax.f32 %v2571, %v2614
    %v2662 = vmax.f32 %v2572, %v2616
    %v2663 = vmax.f32 %v2573, %v2618
    %v2664 = vmax.f32 %v2574, %v2620
    %v2665 = vmax.f32 %v2575, %v2622
    %v2666 = vmax.f32 %v2576, %v2624
    %v2667 = vmax.f32 %v2577, %v2626
    %v2668 = vmax.f32 %v2578, %v2628
    %v2669 = vmax.f32 %v2579, %v2630
    %v2670 = vmax.f32 %v2580, %v2632
    %v2671 = vmax.f32 %v2581, %v2634
    %v2672 = vmax.f32 %v2582, %v2636
    %2673 = vrot.lane.b32.xlu0 %v2547, 126
    %v2674 = vpop.permute.xlu0 %2673
    %2675 = vrot.lane.b32.xlu0 %v2548, 126
    %v2676 = vpop.permute.xlu0 %2675
    %2677 = vrot.lane.b32.xlu0 %v2549, 126
    %v2678 = vpop.permute.xlu0 %2677
    %2679 = vrot.lane.b32.xlu0 %v2550, 126
    %v2680 = vpop.permute.xlu0 %2679
    %2681 = vrot.lane.b32.xlu0 %v2551, 126
    %v2682 = vpop.permute.xlu0 %2681
    %2683 = vrot.lane.b32.xlu0 %v2552, 126
    %v2684 = vpop.permute.xlu0 %2683
    %2685 = vrot.lane.b32.xlu0 %v2553, 126
    %v2686 = vpop.permute.xlu0 %2685
    %2687 = vrot.lane.b32.xlu0 %v2554, 126
    %v2688 = vpop.permute.xlu0 %2687
    %2689 = vrot.lane.b32.xlu0 %v2555, 126
    %v2690 = vpop.permute.xlu0 %2689
    %2691 = vrot.lane.b32.xlu0 %v2556, 126
    %v2692 = vpop.permute.xlu0 %2691
    %2693 = vrot.lane.b32.xlu0 %v2557, 126
    %v2694 = vpop.permute.xlu0 %2693
    %2695 = vrot.lane.b32.xlu0 %v2558, 126
    %v2696 = vpop.permute.xlu0 %2695
    %2697 = vrot.lane.b32.xlu0 %v2559, 126
    %v2698 = vpop.permute.xlu0 %2697
    %2699 = vrot.lane.b32.xlu0 %v2560, 126
    %v2700 = vpop.permute.xlu0 %2699
    %2701 = vrot.lane.b32.xlu0 %v2561, 126
    %v2702 = vpop.permute.xlu0 %2701
    %2703 = vrot.lane.b32.xlu0 %v2562, 126
    %v2704 = vpop.permute.xlu0 %2703
    %2705 = vrot.lane.b32.xlu0 %v2563, 126
    %v2706 = vpop.permute.xlu0 %2705
    %2707 = vrot.lane.b32.xlu0 %v2564, 126
    %v2708 = vpop.permute.xlu0 %2707
    %v2727 = vmax.f32 %v2655, %v2674
    %v2728 = vmax.f32 %v2656, %v2676
    %v2729 = vmax.f32 %v2657, %v2678
    %v2730 = vmax.f32 %v2658, %v2680
    %v2731 = vmax.f32 %v2659, %v2682
    %v2732 = vmax.f32 %v2660, %v2684
    %v2733 = vmax.f32 %v2661, %v2686
    %v2734 = vmax.f32 %v2662, %v2688
    %v2735 = vmax.f32 %v2663, %v2690
    %v2736 = vmax.f32 %v2664, %v2692
    %v2737 = vmax.f32 %v2665, %v2694
    %v2738 = vmax.f32 %v2666, %v2696
    %v2739 = vmax.f32 %v2667, %v2698
    %v2740 = vmax.f32 %v2668, %v2700
    %v2741 = vmax.f32 %v2669, %v2702
    %v2742 = vmax.f32 %v2670, %v2704
    %v2743 = vmax.f32 %v2671, %v2706
    %v2744 = vmax.f32 %v2672, %v2708
    %2745 = vrot.lane.b32.xlu0 %v2547, 125
    %v2746 = vpop.permute.xlu0 %2745
    %2747 = vrot.lane.b32.xlu0 %v2548, 125
    %v2748 = vpop.permute.xlu0 %2747
    %2749 = vrot.lane.b32.xlu0 %v2549, 125
    %v2750 = vpop.permute.xlu0 %2749
    %2751 = vrot.lane.b32.xlu0 %v2550, 125
    %v2752 = vpop.permute.xlu0 %2751
    %2753 = vrot.lane.b32.xlu0 %v2551, 125
    %v2754 = vpop.permute.xlu0 %2753
    %2755 = vrot.lane.b32.xlu0 %v2552, 125
    %v2756 = vpop.permute.xlu0 %2755
    %2757 = vrot.lane.b32.xlu0 %v2553, 125
    %v2758 = vpop.permute.xlu0 %2757
    %2759 = vrot.lane.b32.xlu0 %v2554, 125
    %v2760 = vpop.permute.xlu0 %2759
    %2761 = vrot.lane.b32.xlu0 %v2555, 125
    %v2762 = vpop.permute.xlu0 %2761
    %2763 = vrot.lane.b32.xlu0 %v2556, 125
    %v2764 = vpop.permute.xlu0 %2763
    %2765 = vrot.lane.b32.xlu0 %v2557, 125
    %v2766 = vpop.permute.xlu0 %2765
    %2767 = vrot.lane.b32.xlu0 %v2558, 125
    %v2768 = vpop.permute.xlu0 %2767
    %2769 = vrot.lane.b32.xlu0 %v2559, 125
    %v2770 = vpop.permute.xlu0 %2769
    %2771 = vrot.lane.b32.xlu0 %v2560, 125
    %v2772 = vpop.permute.xlu0 %2771
    %2773 = vrot.lane.b32.xlu0 %v2561, 125
    %v2774 = vpop.permute.xlu0 %2773
    %2775 = vrot.lane.b32.xlu0 %v2562, 125
    %v2776 = vpop.permute.xlu0 %2775
    %2777 = vrot.lane.b32.xlu0 %v2563, 125
    %v2778 = vpop.permute.xlu0 %2777
    %2779 = vrot.lane.b32.xlu0 %v2564, 125
    %v2780 = vpop.permute.xlu0 %2779
    %v2799 = vmax.f32 %v2727, %v2746
    %v2800 = vmax.f32 %v2728, %v2748
    %v2801 = vmax.f32 %v2729, %v2750
    %v2802 = vmax.f32 %v2730, %v2752
    %v2803 = vmax.f32 %v2731, %v2754
    %v2804 = vmax.f32 %v2732, %v2756
    %v2805 = vmax.f32 %v2733, %v2758
    %v2806 = vmax.f32 %v2734, %v2760
    %v2807 = vmax.f32 %v2735, %v2762
    %v2808 = vmax.f32 %v2736, %v2764
    %v2809 = vmax.f32 %v2737, %v2766
    %v2810 = vmax.f32 %v2738, %v2768
    %v2811 = vmax.f32 %v2739, %v2770
    %v2812 = vmax.f32 %v2740, %v2772
    %v2813 = vmax.f32 %v2741, %v2774
    %v2814 = vmax.f32 %v2742, %v2776
    %v2815 = vmax.f32 %v2743, %v2778
    %v2816 = vmax.f32 %v2744, %v2780
    %v2817 = vld [vmem:[#allocation2 + $0x2] sm:$0xff]
    %v2818 = vld [vmem:[#allocation2 + $0xa] sm:$0xff]
    %v2819 = vld [vmem:[#allocation2 + $0x12] sm:$0x1]
    %v2820 = vld [vmem:[#allocation2 + $0x1a] sm:$0xff]
    %v2821 = vld [vmem:[#allocation2 + $0x22] sm:$0xff]
    %v2822 = vld [vmem:[#allocation2 + $0x2a] sm:$0x1]
    %v2823 = vld [vmem:[#allocation2 + $0x32] sm:$0xff]
    %v2824 = vld [vmem:[#allocation2 + $0x3a] sm:$0xff]
    %v2825 = vld [vmem:[#allocation2 + $0x42] sm:$0x1]
    %v2826 = vld [vmem:[#allocation2 + $0x4a] sm:$0xff]
    %v2827 = vld [vmem:[#allocation2 + $0x52] sm:$0xff]
    %v2828 = vld [vmem:[#allocation2 + $0x5a] sm:$0x1]
    %v2829 = vld [vmem:[#allocation2 + $0x62] sm:$0xff]
    %v2830 = vld [vmem:[#allocation2 + $0x6a] sm:$0xff]
    %v2831 = vld [vmem:[#allocation2 + $0x72] sm:$0x1]
    %v2832 = vld [vmem:[#allocation2 + $0x7a] sm:$0xff]
    %v2833 = vld [vmem:[#allocation2 + $0x82] sm:$0xff]
    %v2834 = vld [vmem:[#allocation2 + $0x8a] sm:$0x1]
    %v2835 = vmax.f32 %v2799, %v2817
    %v2836 = vmax.f32 %v2800, %v2818
    %v2837 = vmax.f32 %v2801, %v2819
    %v2838 = vmax.f32 %v2802, %v2820
    %v2839 = vmax.f32 %v2803, %v2821
    %v2840 = vmax.f32 %v2804, %v2822
    %v2841 = vmax.f32 %v2805, %v2823
    %v2842 = vmax.f32 %v2806, %v2824
    %v2843 = vmax.f32 %v2807, %v2825
    %v2844 = vmax.f32 %v2808, %v2826
    %v2845 = vmax.f32 %v2809, %v2827
    %v2846 = vmax.f32 %v2810, %v2828
    %v2847 = vmax.f32 %v2811, %v2829
    %v2848 = vmax.f32 %v2812, %v2830
    %v2849 = vmax.f32 %v2813, %v2831
    %v2850 = vmax.f32 %v2814, %v2832
    %v2851 = vmax.f32 %v2815, %v2833
    %v2852 = vmax.f32 %v2816, %v2834
    %2871 = vrot.lane.b32.xlu0 %v2817, 127
    %v2872 = vpop.permute.xlu0 %2871
    %2873 = vrot.lane.b32.xlu0 %v2818, 127
    %v2874 = vpop.permute.xlu0 %2873
    %2875 = vrot.lane.b32.xlu0 %v2819, 127
    %v2876 = vpop.permute.xlu0 %2875
    %2877 = vrot.lane.b32.xlu0 %v2820, 127
    %v2878 = vpop.permute.xlu0 %2877
    %2879 = vrot.lane.b32.xlu0 %v2821, 127
    %v2880 = vpop.permute.xlu0 %2879
    %2881 = vrot.lane.b32.xlu0 %v2822, 127
    %v2882 = vpop.permute.xlu0 %2881
    %2883 = vrot.lane.b32.xlu0 %v2823, 127
    %v2884 = vpop.permute.xlu0 %2883
    %2885 = vrot.lane.b32.xlu0 %v2824, 127
    %v2886 = vpop.permute.xlu0 %2885
    %2887 = vrot.lane.b32.xlu0 %v2825, 127
    %v2888 = vpop.permute.xlu0 %2887
    %2889 = vrot.lane.b32.xlu0 %v2826, 127
    %v2890 = vpop.permute.xlu0 %2889
    %2891 = vrot.lane.b32.xlu0 %v2827, 127
    %v2892 = vpop.permute.xlu0 %2891
    %2893 = vrot.lane.b32.xlu0 %v2828, 127
    %v2894 = vpop.permute.xlu0 %2893
    %2895 = vrot.lane.b32.xlu0 %v2829, 127
    %v2896 = vpop.permute.xlu0 %2895
    %2897 = vrot.lane.b32.xlu0 %v2830, 127
    %v2898 = vpop.permute.xlu0 %2897
    %2899 = vrot.lane.b32.xlu0 %v2831, 127
    %v2900 = vpop.permute.xlu0 %2899
    %2901 = vrot.lane.b32.xlu0 %v2832, 127
    %v2902 = vpop.permute.xlu0 %2901
    %2903 = vrot.lane.b32.xlu0 %v2833, 127
    %v2904 = vpop.permute.xlu0 %2903
    %2905 = vrot.lane.b32.xlu0 %v2834, 127
    %v2906 = vpop.permute.xlu0 %2905
    %v2925 = vmax.f32 %v2835, %v2872
    %v2926 = vmax.f32 %v2836, %v2874
    %v2927 = vmax.f32 %v2837, %v2876
    %v2928 = vmax.f32 %v2838, %v2878
    %v2929 = vmax.f32 %v2839, %v2880
    %v2930 = vmax.f32 %v2840, %v2882
    %v2931 = vmax.f32 %v2841, %v2884
    %v2932 = vmax.f32 %v2842, %v2886
    %v2933 = vmax.f32 %v2843, %v2888
    %v2934 = vmax.f32 %v2844, %v2890
    %v2935 = vmax.f32 %v2845, %v2892
    %v2936 = vmax.f32 %v2846, %v2894
    %v2937 = vmax.f32 %v2847, %v2896
    %v2938 = vmax.f32 %v2848, %v2898
    %v2939 = vmax.f32 %v2849, %v2900
    %v2940 = vmax.f32 %v2850, %v2902
    %v2941 = vmax.f32 %v2851, %v2904
    %v2942 = vmax.f32 %v2852, %v2906
    %2943 = vrot.lane.b32.xlu0 %v2817, 126
    %v2944 = vpop.permute.xlu0 %2943
    %2945 = vrot.lane.b32.xlu0 %v2818, 126
    %v2946 = vpop.permute.xlu0 %2945
    %2947 = vrot.lane.b32.xlu0 %v2819, 126
    %v2948 = vpop.permute.xlu0 %2947
    %2949 = vrot.lane.b32.xlu0 %v2820, 126
    %v2950 = vpop.permute.xlu0 %2949
    %2951 = vrot.lane.b32.xlu0 %v2821, 126
    %v2952 = vpop.permute.xlu0 %2951
    %2953 = vrot.lane.b32.xlu0 %v2822, 126
    %v2954 = vpop.permute.xlu0 %2953
    %2955 = vrot.lane.b32.xlu0 %v2823, 126
    %v2956 = vpop.permute.xlu0 %2955
    %2957 = vrot.lane.b32.xlu0 %v2824, 126
    %v2958 = vpop.permute.xlu0 %2957
    %2959 = vrot.lane.b32.xlu0 %v2825, 126
    %v2960 = vpop.permute.xlu0 %2959
    %2961 = vrot.lane.b32.xlu0 %v2826, 126
    %v2962 = vpop.permute.xlu0 %2961
    %2963 = vrot.lane.b32.xlu0 %v2827, 126
    %v2964 = vpop.permute.xlu0 %2963
    %2965 = vrot.lane.b32.xlu0 %v2828, 126
    %v2966 = vpop.permute.xlu0 %2965
    %2967 = vrot.lane.b32.xlu0 %v2829, 126
    %v2968 = vpop.permute.xlu0 %2967
    %2969 = vrot.lane.b32.xlu0 %v2830, 126
    %v2970 = vpop.permute.xlu0 %2969
    %2971 = vrot.lane.b32.xlu0 %v2831, 126
    %v2972 = vpop.permute.xlu0 %2971
    %2973 = vrot.lane.b32.xlu0 %v2832, 126
    %v2974 = vpop.permute.xlu0 %2973
    %2975 = vrot.lane.b32.xlu0 %v2833, 126
    %v2976 = vpop.permute.xlu0 %2975
    %2977 = vrot.lane.b32.xlu0 %v2834, 126
    %v2978 = vpop.permute.xlu0 %2977
    %v2997 = vmax.f32 %v2925, %v2944
    %v2998 = vmax.f32 %v2926, %v2946
    %v2999 = vmax.f32 %v2927, %v2948
    %v3000 = vmax.f32 %v2928, %v2950
    %v3001 = vmax.f32 %v2929, %v2952
    %v3002 = vmax.f32 %v2930, %v2954
    %v3003 = vmax.f32 %v2931, %v2956
    %v3004 = vmax.f32 %v2932, %v2958
    %v3005 = vmax.f32 %v2933, %v2960
    %v3006 = vmax.f32 %v2934, %v2962
    %v3007 = vmax.f32 %v2935, %v2964
    %v3008 = vmax.f32 %v2936, %v2966
    %v3009 = vmax.f32 %v2937, %v2968
    %v3010 = vmax.f32 %v2938, %v2970
    %v3011 = vmax.f32 %v2939, %v2972
    %v3012 = vmax.f32 %v2940, %v2974
    %v3013 = vmax.f32 %v2941, %v2976
    %v3014 = vmax.f32 %v2942, %v2978
    %3015 = vrot.lane.b32.xlu0 %v2817, 125
    %v3016 = vpop.permute.xlu0 %3015
    %3017 = vrot.lane.b32.xlu0 %v2818, 125
    %v3018 = vpop.permute.xlu0 %3017
    %3019 = vrot.lane.b32.xlu0 %v2819, 125
    %v3020 = vpop.permute.xlu0 %3019
    %3021 = vrot.lane.b32.xlu0 %v2820, 125
    %v3022 = vpop.permute.xlu0 %3021
    %3023 = vrot.lane.b32.xlu0 %v2821, 125
    %v3024 = vpop.permute.xlu0 %3023
    %3025 = vrot.lane.b32.xlu0 %v2822, 125
    %v3026 = vpop.permute.xlu0 %3025
    %3027 = vrot.lane.b32.xlu0 %v2823, 125
    %v3028 = vpop.permute.xlu0 %3027
    %3029 = vrot.lane.b32.xlu0 %v2824, 125
    %v3030 = vpop.permute.xlu0 %3029
    %3031 = vrot.lane.b32.xlu0 %v2825, 125
    %v3032 = vpop.permute.xlu0 %3031
    %3033 = vrot.lane.b32.xlu0 %v2826, 125
    %v3034 = vpop.permute.xlu0 %3033
    %3035 = vrot.lane.b32.xlu0 %v2827, 125
    %v3036 = vpop.permute.xlu0 %3035
    %3037 = vrot.lane.b32.xlu0 %v2828, 125
    %v3038 = vpop.permute.xlu0 %3037
    %3039 = vrot.lane.b32.xlu0 %v2829, 125
    %v3040 = vpop.permute.xlu0 %3039
    %3041 = vrot.lane.b32.xlu0 %v2830, 125
    %v3042 = vpop.permute.xlu0 %3041
    %3043 = vrot.lane.b32.xlu0 %v2831, 125
    %v3044 = vpop.permute.xlu0 %3043
    %3045 = vrot.lane.b32.xlu0 %v2832, 125
    %v3046 = vpop.permute.xlu0 %3045
    %3047 = vrot.lane.b32.xlu0 %v2833, 125
    %v3048 = vpop.permute.xlu0 %3047
    %3049 = vrot.lane.b32.xlu0 %v2834, 125
    %v3050 = vpop.permute.xlu0 %3049
    %v3069 = vmax.f32 %v2997, %v3016
    %v3070 = vmax.f32 %v2998, %v3018
    %v3071 = vmax.f32 %v2999, %v3020
    %v3072 = vmax.f32 %v3000, %v3022
    %v3073 = vmax.f32 %v3001, %v3024
    %v3074 = vmax.f32 %v3002, %v3026
    %v3075 = vmax.f32 %v3003, %v3028
    %v3076 = vmax.f32 %v3004, %v3030
    %v3077 = vmax.f32 %v3005, %v3032
    %v3078 = vmax.f32 %v3006, %v3034
    %v3079 = vmax.f32 %v3007, %v3036
    %v3080 = vmax.f32 %v3008, %v3038
    %v3081 = vmax.f32 %v3009, %v3040
    %v3082 = vmax.f32 %v3010, %v3042
    %v3083 = vmax.f32 %v3011, %v3044
    %v3084 = vmax.f32 %v3012, %v3046
    %v3085 = vmax.f32 %v3013, %v3048
    %v3086 = vmax.f32 %v3014, %v3050
    %v3087 = vld [vmem:[#allocation2 + $0x3] sm:$0xff]
    %v3088 = vld [vmem:[#allocation2 + $0xb] sm:$0xff]
    %v3089 = vld [vmem:[#allocation2 + $0x13] sm:$0x1]
    %v3090 = vld [vmem:[#allocation2 + $0x1b] sm:$0xff]
    %v3091 = vld [vmem:[#allocation2 + $0x23] sm:$0xff]
    %v3092 = vld [vmem:[#allocation2 + $0x2b] sm:$0x1]
    %v3093 = vld [vmem:[#allocation2 + $0x33] sm:$0xff]
    %v3094 = vld [vmem:[#allocation2 + $0x3b] sm:$0xff]
    %v3095 = vld [vmem:[#allocation2 + $0x43] sm:$0x1]
    %v3096 = vld [vmem:[#allocation2 + $0x4b] sm:$0xff]
    %v3097 = vld [vmem:[#allocation2 + $0x53] sm:$0xff]
    %v3098 = vld [vmem:[#allocation2 + $0x5b] sm:$0x1]
    %v3099 = vld [vmem:[#allocation2 + $0x63] sm:$0xff]
    %v3100 = vld [vmem:[#allocation2 + $0x6b] sm:$0xff]
    %v3101 = vld [vmem:[#allocation2 + $0x73] sm:$0x1]
    %v3102 = vld [vmem:[#allocation2 + $0x7b] sm:$0xff]
    %v3103 = vld [vmem:[#allocation2 + $0x83] sm:$0xff]
    %v3104 = vld [vmem:[#allocation2 + $0x8b] sm:$0x1]
    %v3105 = vmax.f32 %v3069, %v3087
    %v3106 = vmax.f32 %v3070, %v3088
    %v3107 = vmax.f32 %v3071, %v3089
    %v3108 = vmax.f32 %v3072, %v3090
    %v3109 = vmax.f32 %v3073, %v3091
    %v3110 = vmax.f32 %v3074, %v3092
    %v3111 = vmax.f32 %v3075, %v3093
    %v3112 = vmax.f32 %v3076, %v3094
    %v3113 = vmax.f32 %v3077, %v3095
    %v3114 = vmax.f32 %v3078, %v3096
    %v3115 = vmax.f32 %v3079, %v3097
    %v3116 = vmax.f32 %v3080, %v3098
    %v3117 = vmax.f32 %v3081, %v3099
    %v3118 = vmax.f32 %v3082, %v3100
    %v3119 = vmax.f32 %v3083, %v3101
    %v3120 = vmax.f32 %v3084, %v3102
    %v3121 = vmax.f32 %v3085, %v3103
    %v3122 = vmax.f32 %v3086, %v3104
    %3141 = vrot.lane.b32.xlu0 %v3087, 127
    %v3142 = vpop.permute.xlu0 %3141
    %3143 = vrot.lane.b32.xlu0 %v3088, 127
    %v3144 = vpop.permute.xlu0 %3143
    %3145 = vrot.lane.b32.xlu0 %v3089, 127
    %v3146 = vpop.permute.xlu0 %3145
    %3147 = vrot.lane.b32.xlu0 %v3090, 127
    %v3148 = vpop.permute.xlu0 %3147
    %3149 = vrot.lane.b32.xlu0 %v3091, 127
    %v3150 = vpop.permute.xlu0 %3149
    %3151 = vrot.lane.b32.xlu0 %v3092, 127
    %v3152 = vpop.permute.xlu0 %3151
    %3153 = vrot.lane.b32.xlu0 %v3093, 127
    %v3154 = vpop.permute.xlu0 %3153
    %3155 = vrot.lane.b32.xlu0 %v3094, 127
    %v3156 = vpop.permute.xlu0 %3155
    %3157 = vrot.lane.b32.xlu0 %v3095, 127
    %v3158 = vpop.permute.xlu0 %3157
    %3159 = vrot.lane.b32.xlu0 %v3096, 127
    %v3160 = vpop.permute.xlu0 %3159
    %3161 = vrot.lane.b32.xlu0 %v3097, 127
    %v3162 = vpop.permute.xlu0 %3161
    %3163 = vrot.lane.b32.xlu0 %v3098, 127
    %v3164 = vpop.permute.xlu0 %3163
    %3165 = vrot.lane.b32.xlu0 %v3099, 127
    %v3166 = vpop.permute.xlu0 %3165
    %3167 = vrot.lane.b32.xlu0 %v3100, 127
    %v3168 = vpop.permute.xlu0 %3167
    %3169 = vrot.lane.b32.xlu0 %v3101, 127
    %v3170 = vpop.permute.xlu0 %3169
    %3171 = vrot.lane.b32.xlu0 %v3102, 127
    %v3172 = vpop.permute.xlu0 %3171
    %3173 = vrot.lane.b32.xlu0 %v3103, 127
    %v3174 = vpop.permute.xlu0 %3173
    %3175 = vrot.lane.b32.xlu0 %v3104, 127
    %v3176 = vpop.permute.xlu0 %3175
    %v3195 = vmax.f32 %v3105, %v3142
    %v3196 = vmax.f32 %v3106, %v3144
    %v3197 = vmax.f32 %v3107, %v3146
    %v3198 = vmax.f32 %v3108, %v3148
    %v3199 = vmax.f32 %v3109, %v3150
    %v3200 = vmax.f32 %v3110, %v3152
    %v3201 = vmax.f32 %v3111, %v3154
    %v3202 = vmax.f32 %v3112, %v3156
    %v3203 = vmax.f32 %v3113, %v3158
    %v3204 = vmax.f32 %v3114, %v3160
    %v3205 = vmax.f32 %v3115, %v3162
    %v3206 = vmax.f32 %v3116, %v3164
    %v3207 = vmax.f32 %v3117, %v3166
    %v3208 = vmax.f32 %v3118, %v3168
    %v3209 = vmax.f32 %v3119, %v3170
    %v3210 = vmax.f32 %v3120, %v3172
    %v3211 = vmax.f32 %v3121, %v3174
    %v3212 = vmax.f32 %v3122, %v3176
    %3213 = vrot.lane.b32.xlu0 %v3087, 126
    %v3214 = vpop.permute.xlu0 %3213
    %3215 = vrot.lane.b32.xlu0 %v3088, 126
    %v3216 = vpop.permute.xlu0 %3215
    %3217 = vrot.lane.b32.xlu0 %v3089, 126
    %v3218 = vpop.permute.xlu0 %3217
    %3219 = vrot.lane.b32.xlu0 %v3090, 126
    %v3220 = vpop.permute.xlu0 %3219
    %3221 = vrot.lane.b32.xlu0 %v3091, 126
    %v3222 = vpop.permute.xlu0 %3221
    %3223 = vrot.lane.b32.xlu0 %v3092, 126
    %v3224 = vpop.permute.xlu0 %3223
    %3225 = vrot.lane.b32.xlu0 %v3093, 126
    %v3226 = vpop.permute.xlu0 %3225
    %3227 = vrot.lane.b32.xlu0 %v3094, 126
    %v3228 = vpop.permute.xlu0 %3227
    %3229 = vrot.lane.b32.xlu0 %v3095, 126
    %v3230 = vpop.permute.xlu0 %3229
    %3231 = vrot.lane.b32.xlu0 %v3096, 126
    %v3232 = vpop.permute.xlu0 %3231
    %3233 = vrot.lane.b32.xlu0 %v3097, 126
    %v3234 = vpop.permute.xlu0 %3233
    %3235 = vrot.lane.b32.xlu0 %v3098, 126
    %v3236 = vpop.permute.xlu0 %3235
    %3237 = vrot.lane.b32.xlu0 %v3099, 126
    %v3238 = vpop.permute.xlu0 %3237
    %3239 = vrot.lane.b32.xlu0 %v3100, 126
    %v3240 = vpop.permute.xlu0 %3239
    %3241 = vrot.lane.b32.xlu0 %v3101, 126
    %v3242 = vpop.permute.xlu0 %3241
    %3243 = vrot.lane.b32.xlu0 %v3102, 126
    %v3244 = vpop.permute.xlu0 %3243
    %3245 = vrot.lane.b32.xlu0 %v3103, 126
    %v3246 = vpop.permute.xlu0 %3245
    %3247 = vrot.lane.b32.xlu0 %v3104, 126
    %v3248 = vpop.permute.xlu0 %3247
    %v3267 = vmax.f32 %v3195, %v3214
    %v3268 = vmax.f32 %v3196, %v3216
    %v3269 = vmax.f32 %v3197, %v3218
    %v3270 = vmax.f32 %v3198, %v3220
    %v3271 = vmax.f32 %v3199, %v3222
    %v3272 = vmax.f32 %v3200, %v3224
    %v3273 = vmax.f32 %v3201, %v3226
    %v3274 = vmax.f32 %v3202, %v3228
    %v3275 = vmax.f32 %v3203, %v3230
    %v3276 = vmax.f32 %v3204, %v3232
    %v3277 = vmax.f32 %v3205, %v3234
    %v3278 = vmax.f32 %v3206, %v3236
    %v3279 = vmax.f32 %v3207, %v3238
    %v3280 = vmax.f32 %v3208, %v3240
    %v3281 = vmax.f32 %v3209, %v3242
    %v3282 = vmax.f32 %v3210, %v3244
    %v3283 = vmax.f32 %v3211, %v3246
    %v3284 = vmax.f32 %v3212, %v3248
    %3285 = vrot.lane.b32.xlu0 %v3087, 125
    %v3286 = vpop.permute.xlu0 %3285
    %3287 = vrot.lane.b32.xlu0 %v3088, 125
    %v3288 = vpop.permute.xlu0 %3287
    %3289 = vrot.lane.b32.xlu0 %v3089, 125
    %v3290 = vpop.permute.xlu0 %3289
    %3291 = vrot.lane.b32.xlu0 %v3090, 125
    %v3292 = vpop.permute.xlu0 %3291
    %3293 = vrot.lane.b32.xlu0 %v3091, 125
    %v3294 = vpop.permute.xlu0 %3293
    %3295 = vrot.lane.b32.xlu0 %v3092, 125
    %v3296 = vpop.permute.xlu0 %3295
    %3297 = vrot.lane.b32.xlu0 %v3093, 125
    %v3298 = vpop.permute.xlu0 %3297
    %3299 = vrot.lane.b32.xlu0 %v3094, 125
    %v3300 = vpop.permute.xlu0 %3299
    %3301 = vrot.lane.b32.xlu0 %v3095, 125
    %v3302 = vpop.permute.xlu0 %3301
    %3303 = vrot.lane.b32.xlu0 %v3096, 125
    %v3304 = vpop.permute.xlu0 %3303
    %3305 = vrot.lane.b32.xlu0 %v3097, 125
    %v3306 = vpop.permute.xlu0 %3305
    %3307 = vrot.lane.b32.xlu0 %v3098, 125
    %v3308 = vpop.permute.xlu0 %3307
    %3309 = vrot.lane.b32.xlu0 %v3099, 125
    %v3310 = vpop.permute.xlu0 %3309
    %3311 = vrot.lane.b32.xlu0 %v3100, 125
    %v3312 = vpop.permute.xlu0 %3311
    %3313 = vrot.lane.b32.xlu0 %v3101, 125
    %v3314 = vpop.permute.xlu0 %3313
    %3315 = vrot.lane.b32.xlu0 %v3102, 125
    %v3316 = vpop.permute.xlu0 %3315
    %3317 = vrot.lane.b32.xlu0 %v3103, 125
    %v3318 = vpop.permute.xlu0 %3317
    %3319 = vrot.lane.b32.xlu0 %v3104, 125
    %v3320 = vpop.permute.xlu0 %3319
    %v3339 = vmax.f32 %v3267, %v3286
    %v3340 = vmax.f32 %v3268, %v3288
    %v3341 = vmax.f32 %v3269, %v3290
    %v3342 = vmax.f32 %v3270, %v3292
    %v3343 = vmax.f32 %v3271, %v3294
    %v3344 = vmax.f32 %v3272, %v3296
    %v3345 = vmax.f32 %v3273, %v3298
    %v3346 = vmax.f32 %v3274, %v3300
    %v3347 = vmax.f32 %v3275, %v3302
    %v3348 = vmax.f32 %v3276, %v3304
    %v3349 = vmax.f32 %v3277, %v3306
    %v3350 = vmax.f32 %v3278, %v3308
    %v3351 = vmax.f32 %v3279, %v3310
    %v3352 = vmax.f32 %v3280, %v3312
    %v3353 = vmax.f32 %v3281, %v3314
    %v3354 = vmax.f32 %v3282, %v3316
    %v3355 = vmax.f32 %v3283, %v3318
    %v3356 = vmax.f32 %v3284, %v3320
    %v3363 = vrot.slane %v3339, 1
    %v3364 = vrot.slane %v3342, 1
    %v3365 = vrot.slane %v3345, 1
    %v3366 = vrot.slane %v3348, 1
    %v3367 = vrot.slane %v3351, 1
    %v3368 = vrot.slane %v3354, 1
    %v3375 = vrot.slane %v3339, 2
    %v3376 = vrot.slane %v3342, 2
    %v3377 = vrot.slane %v3345, 2
    %v3378 = vrot.slane %v3348, 2
    %v3379 = vrot.slane %v3351, 2
    %v3380 = vrot.slane %v3354, 2
    %v3387 = vrot.slane %v3339, 3
    %v3388 = vrot.slane %v3342, 3
    %v3389 = vrot.slane %v3345, 3
    %v3390 = vrot.slane %v3348, 3
    %v3391 = vrot.slane %v3351, 3
    %v3392 = vrot.slane %v3354, 3
    %v3405 = vrot.slane %v3340, 4
    %v3406 = vrot.slane %v3343, 4
    %v3407 = vrot.slane %v3346, 4
    %v3408 = vrot.slane %v3349, 4
    %v3409 = vrot.slane %v3352, 4
    %v3410 = vrot.slane %v3355, 4
    %v3417 = vrot.slane %v3340, 5
    %v3418 = vrot.slane %v3343, 5
    %v3419 = vrot.slane %v3346, 5
    %v3420 = vrot.slane %v3349, 5
    %v3421 = vrot.slane %v3352, 5
    %v3422 = vrot.slane %v3355, 5
    %v3429 = vrot.slane %v3340, 6
    %v3430 = vrot.slane %v3343, 6
    %v3431 = vrot.slane %v3346, 6
    %v3432 = vrot.slane %v3349, 6
    %v3433 = vrot.slane %v3352, 6
    %v3434 = vrot.slane %v3355, 6
    %v3441 = vrot.slane %v3340, 7
    %v3442 = vrot.slane %v3343, 7
    %v3443 = vrot.slane %v3346, 7
    %v3444 = vrot.slane %v3349, 7
    %v3445 = vrot.slane %v3352, 7
    %v3446 = vrot.slane %v3355, 7
    %v3453 = vsel %vm1358, %v3339, %v3363
    %v3454 = vsel %vm1358, %v3342, %v3364
    %v3455 = vsel %vm1358, %v3345, %v3365
    %v3456 = vsel %vm1358, %v3348, %v3366
    %v3457 = vsel %vm1358, %v3351, %v3367
    %v3458 = vsel %vm1358, %v3354, %v3368
    %v3459 = vsel %vm1365, %v3453, %v3375
    %v3460 = vsel %vm1365, %v3454, %v3376
    %v3461 = vsel %vm1365, %v3455, %v3377
    %v3462 = vsel %vm1365, %v3456, %v3378
    %v3463 = vsel %vm1365, %v3457, %v3379
    %v3464 = vsel %vm1365, %v3458, %v3380
    %v3465 = vsel %vm1372, %v3459, %v3387
    %v3466 = vsel %vm1372, %v3460, %v3388
    %v3467 = vsel %vm1372, %v3461, %v3389
    %v3468 = vsel %vm1372, %v3462, %v3390
    %v3469 = vsel %vm1372, %v3463, %v3391
    %v3470 = vsel %vm1372, %v3464, %v3392
    %v3471 = vsel %vm1379, %v3465, %v3405
    %v3472 = vsel %vm1379, %v3466, %v3406
    %v3473 = vsel %vm1379, %v3467, %v3407
    %v3474 = vsel %vm1379, %v3468, %v3408
    %v3475 = vsel %vm1379, %v3469, %v3409
    %v3476 = vsel %vm1379, %v3470, %v3410
    %v3477 = vsel %vm1386, %v3471, %v3417
    %v3478 = vsel %vm1386, %v3472, %v3418
    %v3479 = vsel %vm1386, %v3473, %v3419
    %v3480 = vsel %vm1386, %v3474, %v3420
    %v3481 = vsel %vm1386, %v3475, %v3421
    %v3482 = vsel %vm1386, %v3476, %v3422
    %v3483 = vsel %vm1393, %v3477, %v3429
    %v3484 = vsel %vm1393, %v3478, %v3430
    %v3485 = vsel %vm1393, %v3479, %v3431
    %v3486 = vsel %vm1393, %v3480, %v3432
    %v3487 = vsel %vm1393, %v3481, %v3433
    %v3488 = vsel %vm1393, %v3482, %v3434
    %v3489 = vsel %vm1400, %v3483, %v3441
    %v3490 = vsel %vm1400, %v3484, %v3442
    %v3491 = vsel %vm1400, %v3485, %v3443
    %v3492 = vsel %vm1400, %v3486, %v3444
    %v3493 = vsel %vm1400, %v3487, %v3445
    %v3494 = vsel %vm1400, %v3488, %v3446
    %3507 = vrot.lane.b32.xlu0 %v3489, 127
    %v3508 = vpop.permute.xlu0 %3507
    %3509 = vrot.lane.b32.xlu0 %v3341, 127
    %v3510 = vpop.permute.xlu0 %3509
    %3511 = vrot.lane.b32.xlu0 %v3490, 127
    %v3512 = vpop.permute.xlu0 %3511
    %3513 = vrot.lane.b32.xlu0 %v3344, 127
    %v3514 = vpop.permute.xlu0 %3513
    %3515 = vrot.lane.b32.xlu0 %v3491, 127
    %v3516 = vpop.permute.xlu0 %3515
    %3517 = vrot.lane.b32.xlu0 %v3347, 127
    %v3518 = vpop.permute.xlu0 %3517
    %3519 = vrot.lane.b32.xlu0 %v3492, 127
    %v3520 = vpop.permute.xlu0 %3519
    %3521 = vrot.lane.b32.xlu0 %v3350, 127
    %v3522 = vpop.permute.xlu0 %3521
    %3523 = vrot.lane.b32.xlu0 %v3493, 127
    %v3524 = vpop.permute.xlu0 %3523
    %3525 = vrot.lane.b32.xlu0 %v3353, 127
    %v3526 = vpop.permute.xlu0 %3525
    %3527 = vrot.lane.b32.xlu0 %v3494, 127
    %v3528 = vpop.permute.xlu0 %3527
    %3529 = vrot.lane.b32.xlu0 %v3356, 127
    %v3530 = vpop.permute.xlu0 %3529
    %3543 = vrot.lane.b32.xlu0 %v3489, 126
    %v3544 = vpop.permute.xlu0 %3543
    %3545 = vrot.lane.b32.xlu0 %v3341, 126
    %v3546 = vpop.permute.xlu0 %3545
    %3547 = vrot.lane.b32.xlu0 %v3490, 126
    %v3548 = vpop.permute.xlu0 %3547
    %3549 = vrot.lane.b32.xlu0 %v3344, 126
    %v3550 = vpop.permute.xlu0 %3549
    %3551 = vrot.lane.b32.xlu0 %v3491, 126
    %v3552 = vpop.permute.xlu0 %3551
    %3553 = vrot.lane.b32.xlu0 %v3347, 126
    %v3554 = vpop.permute.xlu0 %3553
    %3555 = vrot.lane.b32.xlu0 %v3492, 126
    %v3556 = vpop.permute.xlu0 %3555
    %3557 = vrot.lane.b32.xlu0 %v3350, 126
    %v3558 = vpop.permute.xlu0 %3557
    %3559 = vrot.lane.b32.xlu0 %v3493, 126
    %v3560 = vpop.permute.xlu0 %3559
    %3561 = vrot.lane.b32.xlu0 %v3353, 126
    %v3562 = vpop.permute.xlu0 %3561
    %3563 = vrot.lane.b32.xlu0 %v3494, 126
    %v3564 = vpop.permute.xlu0 %3563
    %3565 = vrot.lane.b32.xlu0 %v3356, 126
    %v3566 = vpop.permute.xlu0 %3565
    %3579 = vrot.lane.b32.xlu0 %v3489, 125
    %v3580 = vpop.permute.xlu0 %3579
    %3581 = vrot.lane.b32.xlu0 %v3341, 125
    %v3582 = vpop.permute.xlu0 %3581
    %3583 = vrot.lane.b32.xlu0 %v3490, 125
    %v3584 = vpop.permute.xlu0 %3583
    %3585 = vrot.lane.b32.xlu0 %v3344, 125
    %v3586 = vpop.permute.xlu0 %3585
    %3587 = vrot.lane.b32.xlu0 %v3491, 125
    %v3588 = vpop.permute.xlu0 %3587
    %3589 = vrot.lane.b32.xlu0 %v3347, 125
    %v3590 = vpop.permute.xlu0 %3589
    %3591 = vrot.lane.b32.xlu0 %v3492, 125
    %v3592 = vpop.permute.xlu0 %3591
    %3593 = vrot.lane.b32.xlu0 %v3350, 125
    %v3594 = vpop.permute.xlu0 %3593
    %3595 = vrot.lane.b32.xlu0 %v3493, 125
    %v3596 = vpop.permute.xlu0 %3595
    %3597 = vrot.lane.b32.xlu0 %v3353, 125
    %v3598 = vpop.permute.xlu0 %3597
    %3599 = vrot.lane.b32.xlu0 %v3494, 125
    %v3600 = vpop.permute.xlu0 %3599
    %3601 = vrot.lane.b32.xlu0 %v3356, 125
    %v3602 = vpop.permute.xlu0 %3601
    %3615 = vrot.lane.b32.xlu0 %v3489, 124
    %v3616 = vpop.permute.xlu0 %3615
    %3617 = vrot.lane.b32.xlu0 %v3341, 124
    %v3618 = vpop.permute.xlu0 %3617
    %3619 = vrot.lane.b32.xlu0 %v3490, 124
    %v3620 = vpop.permute.xlu0 %3619
    %3621 = vrot.lane.b32.xlu0 %v3344, 124
    %v3622 = vpop.permute.xlu0 %3621
    %3623 = vrot.lane.b32.xlu0 %v3491, 124
    %v3624 = vpop.permute.xlu0 %3623
    %3625 = vrot.lane.b32.xlu0 %v3347, 124
    %v3626 = vpop.permute.xlu0 %3625
    %3627 = vrot.lane.b32.xlu0 %v3492, 124
    %v3628 = vpop.permute.xlu0 %3627
    %3629 = vrot.lane.b32.xlu0 %v3350, 124
    %v3630 = vpop.permute.xlu0 %3629
    %3631 = vrot.lane.b32.xlu0 %v3493, 124
    %v3632 = vpop.permute.xlu0 %3631
    %3633 = vrot.lane.b32.xlu0 %v3353, 124
    %v3634 = vpop.permute.xlu0 %3633
    %3635 = vrot.lane.b32.xlu0 %v3494, 124
    %v3636 = vpop.permute.xlu0 %3635
    %3637 = vrot.lane.b32.xlu0 %v3356, 124
    %v3638 = vpop.permute.xlu0 %3637
    %3651 = vrot.lane.b32.xlu0 %v3489, 123
    %v3652 = vpop.permute.xlu0 %3651
    %3653 = vrot.lane.b32.xlu0 %v3341, 123
    %v3654 = vpop.permute.xlu0 %3653
    %3655 = vrot.lane.b32.xlu0 %v3490, 123
    %v3656 = vpop.permute.xlu0 %3655
    %3657 = vrot.lane.b32.xlu0 %v3344, 123
    %v3658 = vpop.permute.xlu0 %3657
    %3659 = vrot.lane.b32.xlu0 %v3491, 123
    %v3660 = vpop.permute.xlu0 %3659
    %3661 = vrot.lane.b32.xlu0 %v3347, 123
    %v3662 = vpop.permute.xlu0 %3661
    %3663 = vrot.lane.b32.xlu0 %v3492, 123
    %v3664 = vpop.permute.xlu0 %3663
    %3665 = vrot.lane.b32.xlu0 %v3350, 123
    %v3666 = vpop.permute.xlu0 %3665
    %3667 = vrot.lane.b32.xlu0 %v3493, 123
    %v3668 = vpop.permute.xlu0 %3667
    %3669 = vrot.lane.b32.xlu0 %v3353, 123
    %v3670 = vpop.permute.xlu0 %3669
    %3671 = vrot.lane.b32.xlu0 %v3494, 123
    %v3672 = vpop.permute.xlu0 %3671
    %3673 = vrot.lane.b32.xlu0 %v3356, 123
    %v3674 = vpop.permute.xlu0 %3673
    %3687 = vrot.lane.b32.xlu0 %v3489, 122
    %v3688 = vpop.permute.xlu0 %3687
    %3689 = vrot.lane.b32.xlu0 %v3341, 122
    %v3690 = vpop.permute.xlu0 %3689
    %3691 = vrot.lane.b32.xlu0 %v3490, 122
    %v3692 = vpop.permute.xlu0 %3691
    %3693 = vrot.lane.b32.xlu0 %v3344, 122
    %v3694 = vpop.permute.xlu0 %3693
    %3695 = vrot.lane.b32.xlu0 %v3491, 122
    %v3696 = vpop.permute.xlu0 %3695
    %3697 = vrot.lane.b32.xlu0 %v3347, 122
    %v3698 = vpop.permute.xlu0 %3697
    %3699 = vrot.lane.b32.xlu0 %v3492, 122
    %v3700 = vpop.permute.xlu0 %3699
    %3701 = vrot.lane.b32.xlu0 %v3350, 122
    %v3702 = vpop.permute.xlu0 %3701
    %3703 = vrot.lane.b32.xlu0 %v3493, 122
    %v3704 = vpop.permute.xlu0 %3703
    %3705 = vrot.lane.b32.xlu0 %v3353, 122
    %v3706 = vpop.permute.xlu0 %3705
    %3707 = vrot.lane.b32.xlu0 %v3494, 122
    %v3708 = vpop.permute.xlu0 %3707
    %3709 = vrot.lane.b32.xlu0 %v3356, 122
    %v3710 = vpop.permute.xlu0 %3709
    %3723 = vrot.lane.b32.xlu0 %v3489, 121
    %v3724 = vpop.permute.xlu0 %3723
    %3725 = vrot.lane.b32.xlu0 %v3341, 121
    %v3726 = vpop.permute.xlu0 %3725
    %3727 = vrot.lane.b32.xlu0 %v3490, 121
    %v3728 = vpop.permute.xlu0 %3727
    %3729 = vrot.lane.b32.xlu0 %v3344, 121
    %v3730 = vpop.permute.xlu0 %3729
    %3731 = vrot.lane.b32.xlu0 %v3491, 121
    %v3732 = vpop.permute.xlu0 %3731
    %3733 = vrot.lane.b32.xlu0 %v3347, 121
    %v3734 = vpop.permute.xlu0 %3733
    %3735 = vrot.lane.b32.xlu0 %v3492, 121
    %v3736 = vpop.permute.xlu0 %3735
    %3737 = vrot.lane.b32.xlu0 %v3350, 121
    %v3738 = vpop.permute.xlu0 %3737
    %3739 = vrot.lane.b32.xlu0 %v3493, 121
    %v3740 = vpop.permute.xlu0 %3739
    %3741 = vrot.lane.b32.xlu0 %v3353, 121
    %v3742 = vpop.permute.xlu0 %3741
    %3743 = vrot.lane.b32.xlu0 %v3494, 121
    %v3744 = vpop.permute.xlu0 %3743
    %3745 = vrot.lane.b32.xlu0 %v3356, 121
    %v3746 = vpop.permute.xlu0 %3745
    %3759 = vrot.lane.b32.xlu0 %v3489, 120
    %v3760 = vpop.permute.xlu0 %3759
    %3761 = vrot.lane.b32.xlu0 %v3341, 120
    %v3762 = vpop.permute.xlu0 %3761
    %3763 = vrot.lane.b32.xlu0 %v3490, 120
    %v3764 = vpop.permute.xlu0 %3763
    %3765 = vrot.lane.b32.xlu0 %v3344, 120
    %v3766 = vpop.permute.xlu0 %3765
    %3767 = vrot.lane.b32.xlu0 %v3491, 120
    %v3768 = vpop.permute.xlu0 %3767
    %3769 = vrot.lane.b32.xlu0 %v3347, 120
    %v3770 = vpop.permute.xlu0 %3769
    %3771 = vrot.lane.b32.xlu0 %v3492, 120
    %v3772 = vpop.permute.xlu0 %3771
    %3773 = vrot.lane.b32.xlu0 %v3350, 120
    %v3774 = vpop.permute.xlu0 %3773
    %3775 = vrot.lane.b32.xlu0 %v3493, 120
    %v3776 = vpop.permute.xlu0 %3775
    %3777 = vrot.lane.b32.xlu0 %v3353, 120
    %v3778 = vpop.permute.xlu0 %3777
    %3779 = vrot.lane.b32.xlu0 %v3494, 120
    %v3780 = vpop.permute.xlu0 %3779
    %3781 = vrot.lane.b32.xlu0 %v3356, 120
    %v3782 = vpop.permute.xlu0 %3781
    %v3795 = vsel %vm2001, %v3489, %v3508
    %v3796 = vsel %vm2001, %v3341, %v3510
    %v3797 = vsel %vm2001, %v3490, %v3512
    %v3798 = vsel %vm2001, %v3344, %v3514
    %v3799 = vsel %vm2001, %v3491, %v3516
    %v3800 = vsel %vm2001, %v3347, %v3518
    %v3801 = vsel %vm2001, %v3492, %v3520
    %v3802 = vsel %vm2001, %v3350, %v3522
    %v3803 = vsel %vm2001, %v3493, %v3524
    %v3804 = vsel %vm2001, %v3353, %v3526
    %v3805 = vsel %vm2001, %v3494, %v3528
    %v3806 = vsel %vm2001, %v3356, %v3530
    %v3807 = vsel %vm2014, %v3795, %v3544
    %v3808 = vsel %vm2014, %v3796, %v3546
    %v3809 = vsel %vm2014, %v3797, %v3548
    %v3810 = vsel %vm2014, %v3798, %v3550
    %v3811 = vsel %vm2014, %v3799, %v3552
    %v3812 = vsel %vm2014, %v3800, %v3554
    %v3813 = vsel %vm2014, %v3801, %v3556
    %v3814 = vsel %vm2014, %v3802, %v3558
    %v3815 = vsel %vm2014, %v3803, %v3560
    %v3816 = vsel %vm2014, %v3804, %v3562
    %v3817 = vsel %vm2014, %v3805, %v3564
    %v3818 = vsel %vm2014, %v3806, %v3566
    %v3819 = vsel %vm2027, %v3807, %v3580
    %v3820 = vsel %vm2027, %v3808, %v3582
    %v3821 = vsel %vm2027, %v3809, %v3584
    %v3822 = vsel %vm2027, %v3810, %v3586
    %v3823 = vsel %vm2027, %v3811, %v3588
    %v3824 = vsel %vm2027, %v3812, %v3590
    %v3825 = vsel %vm2027, %v3813, %v3592
    %v3826 = vsel %vm2027, %v3814, %v3594
    %v3827 = vsel %vm2027, %v3815, %v3596
    %v3828 = vsel %vm2027, %v3816, %v3598
    %v3829 = vsel %vm2027, %v3817, %v3600
    %v3830 = vsel %vm2027, %v3818, %v3602
    %v3831 = vsel %vm2040, %v3819, %v3616
    %v3832 = vsel %vm2040, %v3820, %v3618
    %v3833 = vsel %vm2040, %v3821, %v3620
    %v3834 = vsel %vm2040, %v3822, %v3622
    %v3835 = vsel %vm2040, %v3823, %v3624
    %v3836 = vsel %vm2040, %v3824, %v3626
    %v3837 = vsel %vm2040, %v3825, %v3628
    %v3838 = vsel %vm2040, %v3826, %v3630
    %v3839 = vsel %vm2040, %v3827, %v3632
    %v3840 = vsel %vm2040, %v3828, %v3634
    %v3841 = vsel %vm2040, %v3829, %v3636
    %v3842 = vsel %vm2040, %v3830, %v3638
    %v3843 = vsel %vm2053, %v3831, %v3652
    %v3844 = vsel %vm2053, %v3832, %v3654
    %v3845 = vsel %vm2053, %v3833, %v3656
    %v3846 = vsel %vm2053, %v3834, %v3658
    %v3847 = vsel %vm2053, %v3835, %v3660
    %v3848 = vsel %vm2053, %v3836, %v3662
    %v3849 = vsel %vm2053, %v3837, %v3664
    %v3850 = vsel %vm2053, %v3838, %v3666
    %v3851 = vsel %vm2053, %v3839, %v3668
    %v3852 = vsel %vm2053, %v3840, %v3670
    %v3853 = vsel %vm2053, %v3841, %v3672
    %v3854 = vsel %vm2053, %v3842, %v3674
    %v3855 = vsel %vm2066, %v3843, %v3688
    %v3856 = vsel %vm2066, %v3844, %v3690
    %v3857 = vsel %vm2066, %v3845, %v3692
    %v3858 = vsel %vm2066, %v3846, %v3694
    %v3859 = vsel %vm2066, %v3847, %v3696
    %v3860 = vsel %vm2066, %v3848, %v3698
    %v3861 = vsel %vm2066, %v3849, %v3700
    %v3862 = vsel %vm2066, %v3850, %v3702
    %v3863 = vsel %vm2066, %v3851, %v3704
    %v3864 = vsel %vm2066, %v3852, %v3706
    %v3865 = vsel %vm2066, %v3853, %v3708
    %v3866 = vsel %vm2066, %v3854, %v3710
    %v3867 = vsel %vm2079, %v3855, %v3724
    %v3868 = vsel %vm2079, %v3856, %v3726
    %v3869 = vsel %vm2079, %v3857, %v3728
    %v3870 = vsel %vm2079, %v3858, %v3730
    %v3871 = vsel %vm2079, %v3859, %v3732
    %v3872 = vsel %vm2079, %v3860, %v3734
    %v3873 = vsel %vm2079, %v3861, %v3736
    %v3874 = vsel %vm2079, %v3862, %v3738
    %v3875 = vsel %vm2079, %v3863, %v3740
    %v3876 = vsel %vm2079, %v3864, %v3742
    %v3877 = vsel %vm2079, %v3865, %v3744
    %v3878 = vsel %vm2079, %v3866, %v3746
    %v3879 = vsel %vm2092, %v3867, %v3760
    %v3880 = vsel %vm2092, %v3868, %v3762
    %v3881 = vsel %vm2092, %v3869, %v3764
    %v3882 = vsel %vm2092, %v3870, %v3766
    %v3883 = vsel %vm2092, %v3871, %v3768
    %v3884 = vsel %vm2092, %v3872, %v3770
    %v3885 = vsel %vm2092, %v3873, %v3772
    %v3886 = vsel %vm2092, %v3874, %v3774
    %v3887 = vsel %vm2092, %v3875, %v3776
    %v3888 = vsel %vm2092, %v3876, %v3778
    %v3889 = vsel %vm2092, %v3877, %v3780
    %v3890 = vsel %vm2092, %v3878, %v3782
    %3891 = vst.msk [vmem:[#allocation3] sm:$0xff] %vm2001, -inf
    %vm3892 = vcmask 0
    %3893 = vst.msk [vmem:[#allocation3 + $0x8] sm:$0x1] %vm3892, -inf
    %3894 = vst.msk [vmem:[#allocation3 + $0x10] sm:$0xff] %vm2001, -inf
    %3895 = vst.msk [vmem:[#allocation3 + $0x18] sm:$0x1] %vm3892, -inf
    %3896 = vst.msk [vmem:[#allocation3 + $0x20] sm:$0xff] %vm2001, -inf
    %3897 = vst.msk [vmem:[#allocation3 + $0x28] sm:$0x1] %vm3892, -inf
    %3898 = vst.msk [vmem:[#allocation3 + $0x30] sm:$0xff] %vm2001, -inf
    %3899 = vst.msk [vmem:[#allocation3 + $0x38] sm:$0x1] %vm3892, -inf
    %3900 = vst.msk [vmem:[#allocation3 + $0x40] sm:$0xff] %vm2001, -inf
    %3901 = vst.msk [vmem:[#allocation3 + $0x48] sm:$0x1] %vm3892, -inf
    %3902 = vst.msk [vmem:[#allocation3 + $0x50] sm:$0xff] %vm2001, -inf
    %3903 = vst.msk [vmem:[#allocation3 + $0x58] sm:$0x1] %vm3892, -inf
    %vm3904 = vcmask 89168
    %3905 = vst.msk [vmem:[#allocation3] sm:$0xff] %vm3904, -inf
    %vm3906 = vcmask 82000
    %3907 = vst.msk [vmem:[#allocation3 + $0x8] sm:$0x1] %vm3906, -inf
    %3908 = vst.msk [vmem:[#allocation3 + $0x10] sm:$0xff] %vm3904, -inf
    %3909 = vst.msk [vmem:[#allocation3 + $0x18] sm:$0x1] %vm3906, -inf
    %3910 = vst.msk [vmem:[#allocation3 + $0x20] sm:$0xff] %vm3904, -inf
    %3911 = vst.msk [vmem:[#allocation3 + $0x28] sm:$0x1] %vm3906, -inf
    %3912 = vst.msk [vmem:[#allocation3 + $0x30] sm:$0xff] %vm3904, -inf
    %3913 = vst.msk [vmem:[#allocation3 + $0x38] sm:$0x1] %vm3906, -inf
    %3914 = vst.msk [vmem:[#allocation3 + $0x40] sm:$0xff] %vm3904, -inf
    %3915 = vst.msk [vmem:[#allocation3 + $0x48] sm:$0x1] %vm3906, -inf
    %3916 = vst.msk [vmem:[#allocation3 + $0x50] sm:$0xff] %vm3904, -inf
    %3917 = vst.msk [vmem:[#allocation3 + $0x58] sm:$0x1] %vm3906, -inf
    %3930 = vrot.lane.b32.xlu0 %v3879, 1
    %v3931 = vpop.permute.xlu0 %3930
    %3932 = vrot.lane.b32.xlu0 %v3880, 1
    %v3933 = vpop.permute.xlu0 %3932
    %3934 = vrot.lane.b32.xlu0 %v3881, 1
    %v3935 = vpop.permute.xlu0 %3934
    %3936 = vrot.lane.b32.xlu0 %v3882, 1
    %v3937 = vpop.permute.xlu0 %3936
    %3938 = vrot.lane.b32.xlu0 %v3883, 1
    %v3939 = vpop.permute.xlu0 %3938
    %3940 = vrot.lane.b32.xlu0 %v3884, 1
    %v3941 = vpop.permute.xlu0 %3940
    %3942 = vrot.lane.b32.xlu0 %v3885, 1
    %v3943 = vpop.permute.xlu0 %3942
    %3944 = vrot.lane.b32.xlu0 %v3886, 1
    %v3945 = vpop.permute.xlu0 %3944
    %3946 = vrot.lane.b32.xlu0 %v3887, 1
    %v3947 = vpop.permute.xlu0 %3946
    %3948 = vrot.lane.b32.xlu0 %v3888, 1
    %v3949 = vpop.permute.xlu0 %3948
    %3950 = vrot.lane.b32.xlu0 %v3889, 1
    %v3951 = vpop.permute.xlu0 %3950
    %3952 = vrot.lane.b32.xlu0 %v3890, 1
    %v3953 = vpop.permute.xlu0 %3952
    %vm3966 = vcmask 80904
    %3967 = vst.msk [vmem:[#allocation3] sm:$0xff] %vm3966, %v3931
    %vm3968 = vcmask 73736
    %3969 = vst.msk [vmem:[#allocation3 + $0x8] sm:$0x1] %vm3968, %v3933
    %3970 = vst.msk [vmem:[#allocation3 + $0x10] sm:$0xff] %vm3966, %v3935
    %3971 = vst.msk [vmem:[#allocation3 + $0x18] sm:$0x1] %vm3968, %v3937
    %3972 = vst.msk [vmem:[#allocation3 + $0x20] sm:$0xff] %vm3966, %v3939
    %3973 = vst.msk [vmem:[#allocation3 + $0x28] sm:$0x1] %vm3968, %v3941
    %3974 = vst.msk [vmem:[#allocation3 + $0x30] sm:$0xff] %vm3966, %v3943
    %3975 = vst.msk [vmem:[#allocation3 + $0x38] sm:$0x1] %vm3968, %v3945
    %3976 = vst.msk [vmem:[#allocation3 + $0x40] sm:$0xff] %vm3966, %v3947
    %3977 = vst.msk [vmem:[#allocation3 + $0x48] sm:$0x1] %vm3968, %v3949
    %3978 = vst.msk [vmem:[#allocation3 + $0x50] sm:$0xff] %vm3966, %v3951
    %3979 = vst.msk [vmem:[#allocation3 + $0x58] sm:$0x1] %vm3968, %v3953
    %v3980 = vld [vmem:[#allocation3] sm:$0xff]
    %v3981 = vld [vmem:[#allocation3 + $0x8] sm:$0x1]
    %v3982 = vld [vmem:[#allocation3 + $0x10] sm:$0xff]
    %v3983 = vld [vmem:[#allocation3 + $0x18] sm:$0x1]
    %v3984 = vld [vmem:[#allocation3 + $0x20] sm:$0xff]
    %v3985 = vld [vmem:[#allocation3 + $0x28] sm:$0x1]
    %v3986 = vld [vmem:[#allocation3 + $0x30] sm:$0xff]
    %v3987 = vld [vmem:[#allocation3 + $0x38] sm:$0x1]
    %v3988 = vld [vmem:[#allocation3 + $0x40] sm:$0xff]
    %v3989 = vld [vmem:[#allocation3 + $0x48] sm:$0x1]
    %v3990 = vld [vmem:[#allocation3 + $0x50] sm:$0xff]
    %v3991 = vld [vmem:[#allocation3 + $0x58] sm:$0x1]
    %4004 = vrot.lane.b32.xlu0 %v3980, 127
    %v4005 = vpop.permute.xlu0 %4004
    %4006 = vrot.lane.b32.xlu0 %v3981, 127
    %v4007 = vpop.permute.xlu0 %4006
    %4008 = vrot.lane.b32.xlu0 %v3982, 127
    %v4009 = vpop.permute.xlu0 %4008
    %4010 = vrot.lane.b32.xlu0 %v3983, 127
    %v4011 = vpop.permute.xlu0 %4010
    %4012 = vrot.lane.b32.xlu0 %v3984, 127
    %v4013 = vpop.permute.xlu0 %4012
    %4014 = vrot.lane.b32.xlu0 %v3985, 127
    %v4015 = vpop.permute.xlu0 %4014
    %4016 = vrot.lane.b32.xlu0 %v3986, 127
    %v4017 = vpop.permute.xlu0 %4016
    %4018 = vrot.lane.b32.xlu0 %v3987, 127
    %v4019 = vpop.permute.xlu0 %4018
    %4020 = vrot.lane.b32.xlu0 %v3988, 127
    %v4021 = vpop.permute.xlu0 %4020
    %4022 = vrot.lane.b32.xlu0 %v3989, 127
    %v4023 = vpop.permute.xlu0 %4022
    %4024 = vrot.lane.b32.xlu0 %v3990, 127
    %v4025 = vpop.permute.xlu0 %4024
    %4026 = vrot.lane.b32.xlu0 %v3991, 127
    %v4027 = vpop.permute.xlu0 %4026
    %v4040 = vmax.f32 %v3980, %v4005
    %v4041 = vmax.f32 %v3981, %v4007
    %v4042 = vmax.f32 %v3982, %v4009
    %v4043 = vmax.f32 %v3983, %v4011
    %v4044 = vmax.f32 %v3984, %v4013
    %v4045 = vmax.f32 %v3985, %v4015
    %v4046 = vmax.f32 %v3986, %v4017
    %v4047 = vmax.f32 %v3987, %v4019
    %v4048 = vmax.f32 %v3988, %v4021
    %v4049 = vmax.f32 %v3989, %v4023
    %v4050 = vmax.f32 %v3990, %v4025
    %v4051 = vmax.f32 %v3991, %v4027
    %4052 = vrot.lane.b32.xlu0 %v3980, 126
    %v4053 = vpop.permute.xlu0 %4052
    %4054 = vrot.lane.b32.xlu0 %v3981, 126
    %v4055 = vpop.permute.xlu0 %4054
    %4056 = vrot.lane.b32.xlu0 %v3982, 126
    %v4057 = vpop.permute.xlu0 %4056
    %4058 = vrot.lane.b32.xlu0 %v3983, 126
    %v4059 = vpop.permute.xlu0 %4058
    %4060 = vrot.lane.b32.xlu0 %v3984, 126
    %v4061 = vpop.permute.xlu0 %4060
    %4062 = vrot.lane.b32.xlu0 %v3985, 126
    %v4063 = vpop.permute.xlu0 %4062
    %4064 = vrot.lane.b32.xlu0 %v3986, 126
    %v4065 = vpop.permute.xlu0 %4064
    %4066 = vrot.lane.b32.xlu0 %v3987, 126
    %v4067 = vpop.permute.xlu0 %4066
    %4068 = vrot.lane.b32.xlu0 %v3988, 126
    %v4069 = vpop.permute.xlu0 %4068
    %4070 = vrot.lane.b32.xlu0 %v3989, 126
    %v4071 = vpop.permute.xlu0 %4070
    %4072 = vrot.lane.b32.xlu0 %v3990, 126
    %v4073 = vpop.permute.xlu0 %4072
    %4074 = vrot.lane.b32.xlu0 %v3991, 126
    %v4075 = vpop.permute.xlu0 %4074
    %v4088 = vmax.f32 %v4040, %v4053
    %v4089 = vmax.f32 %v4041, %v4055
    %v4090 = vmax.f32 %v4042, %v4057
    %v4091 = vmax.f32 %v4043, %v4059
    %v4092 = vmax.f32 %v4044, %v4061
    %v4093 = vmax.f32 %v4045, %v4063
    %v4094 = vmax.f32 %v4046, %v4065
    %v4095 = vmax.f32 %v4047, %v4067
    %v4096 = vmax.f32 %v4048, %v4069
    %v4097 = vmax.f32 %v4049, %v4071
    %v4098 = vmax.f32 %v4050, %v4073
    %v4099 = vmax.f32 %v4051, %v4075
    %vm4100 = vcmask 98304
    %4101 = vst.msk [vmem:[#allocation4] sm:$0x1] %vm4100, -inf
    %4102 = vst.msk [vmem:[#allocation4 + $0x10] sm:$0x1] %vm4100, -inf
    %4103 = vst.msk [vmem:[#allocation4 + $0x20] sm:$0x1] %vm4100, -inf
    %4104 = vst.msk [vmem:[#allocation4 + $0x30] sm:$0x1] %vm4100, -inf
    %4105 = vst.msk [vmem:[#allocation4 + $0x40] sm:$0x1] %vm4100, -inf
    %4106 = vst.msk [vmem:[#allocation4 + $0x50] sm:$0x1] %vm4100, -inf
    %4107 = vst.msk [vmem:[#allocation4 + $0xa] sm:$0x1] %vm4100, -inf
    %4108 = vst.msk [vmem:[#allocation4 + $0x1a] sm:$0x1] %vm4100, -inf
    %4109 = vst.msk [vmem:[#allocation4 + $0x2a] sm:$0x1] %vm4100, -inf
    %4110 = vst.msk [vmem:[#allocation4 + $0x3a] sm:$0x1] %vm4100, -inf
    %4111 = vst.msk [vmem:[#allocation4 + $0x4a] sm:$0x1] %vm4100, -inf
    %4112 = vst.msk [vmem:[#allocation4 + $0x5a] sm:$0x1] %vm4100, -inf
    %4113 = vst.msk [vmem:[#allocation4 + $0x1] sm:$0xff] %vm2014, -inf
    %vm4114 = vcmask 8192
    %4115 = vst.msk [vmem:[#allocation4 + $0x9] sm:$0x1] %vm4114, -inf
    %4116 = vst.msk [vmem:[#allocation4 + $0x11] sm:$0xff] %vm2014, -inf
    %4117 = vst.msk [vmem:[#allocation4 + $0x19] sm:$0x1] %vm4114, -inf
    %4118 = vst.msk [vmem:[#allocation4 + $0x21] sm:$0xff] %vm2014, -inf
    %4119 = vst.msk [vmem:[#allocation4 + $0x29] sm:$0x1] %vm4114, -inf
    %4120 = vst.msk [vmem:[#allocation4 + $0x31] sm:$0xff] %vm2014, -inf
    %4121 = vst.msk [vmem:[#allocation4 + $0x39] sm:$0x1] %vm4114, -inf
    %4122 = vst.msk [vmem:[#allocation4 + $0x41] sm:$0xff] %vm2014, -inf
    %4123 = vst.msk [vmem:[#allocation4 + $0x49] sm:$0x1] %vm4114, -inf
    %4124 = vst.msk [vmem:[#allocation4 + $0x51] sm:$0xff] %vm2014, -inf
    %4125 = vst.msk [vmem:[#allocation4 + $0x59] sm:$0x1] %vm4114, -inf
    %vm4126 = vcmask 105560
    %4127 = vst.msk [vmem:[#allocation4 + $0x1] sm:$0xff] %vm4126, -inf
    %vm4128 = vcmask 98392
    %4129 = vst.msk [vmem:[#allocation4 + $0x9] sm:$0x1] %vm4128, -inf
    %4130 = vst.msk [vmem:[#allocation4 + $0x11] sm:$0xff] %vm4126, -inf
    %4131 = vst.msk [vmem:[#allocation4 + $0x19] sm:$0x1] %vm4128, -inf
    %4132 = vst.msk [vmem:[#allocation4 + $0x21] sm:$0xff] %vm4126, -inf
    %4133 = vst.msk [vmem:[#allocation4 + $0x29] sm:$0x1] %vm4128, -inf
    %4134 = vst.msk [vmem:[#allocation4 + $0x31] sm:$0xff] %vm4126, -inf
    %4135 = vst.msk [vmem:[#allocation4 + $0x39] sm:$0x1] %vm4128, -inf
    %4136 = vst.msk [vmem:[#allocation4 + $0x41] sm:$0xff] %vm4126, -inf
    %4137 = vst.msk [vmem:[#allocation4 + $0x49] sm:$0x1] %vm4128, -inf
    %4138 = vst.msk [vmem:[#allocation4 + $0x51] sm:$0xff] %vm4126, -inf
    %4139 = vst.msk [vmem:[#allocation4 + $0x59] sm:$0x1] %vm4128, -inf
    %4152 = vrot.lane.b32.xlu0 %v4088, 2
    %v4153 = vpop.permute.xlu0 %4152
    %4154 = vrot.lane.b32.xlu0 %v4089, 2
    %v4155 = vpop.permute.xlu0 %4154
    %4156 = vrot.lane.b32.xlu0 %v4090, 2
    %v4157 = vpop.permute.xlu0 %4156
    %4158 = vrot.lane.b32.xlu0 %v4091, 2
    %v4159 = vpop.permute.xlu0 %4158
    %4160 = vrot.lane.b32.xlu0 %v4092, 2
    %v4161 = vpop.permute.xlu0 %4160
    %4162 = vrot.lane.b32.xlu0 %v4093, 2
    %v4163 = vpop.permute.xlu0 %4162
    %4164 = vrot.lane.b32.xlu0 %v4094, 2
    %v4165 = vpop.permute.xlu0 %4164
    %4166 = vrot.lane.b32.xlu0 %v4095, 2
    %v4167 = vpop.permute.xlu0 %4166
    %4168 = vrot.lane.b32.xlu0 %v4096, 2
    %v4169 = vpop.permute.xlu0 %4168
    %4170 = vrot.lane.b32.xlu0 %v4097, 2
    %v4171 = vpop.permute.xlu0 %4170
    %4172 = vrot.lane.b32.xlu0 %v4098, 2
    %v4173 = vpop.permute.xlu0 %4172
    %4174 = vrot.lane.b32.xlu0 %v4099, 2
    %v4175 = vpop.permute.xlu0 %4174
    %vm4188 = vcmask 89104
    %4189 = vst.msk [vmem:[#allocation4 + $0x1] sm:$0xff] %vm4188, %v4153
    %vm4190 = vcmask 81936
    %4191 = vst.msk [vmem:[#allocation4 + $0x9] sm:$0x1] %vm4190, %v4155
    %4192 = vst.msk [vmem:[#allocation4 + $0x11] sm:$0xff] %vm4188, %v4157
    %4193 = vst.msk [vmem:[#allocation4 + $0x19] sm:$0x1] %vm4190, %v4159
    %4194 = vst.msk [vmem:[#allocation4 + $0x21] sm:$0xff] %vm4188, %v4161
    %4195 = vst.msk [vmem:[#allocation4 + $0x29] sm:$0x1] %vm4190, %v4163
    %4196 = vst.msk [vmem:[#allocation4 + $0x31] sm:$0xff] %vm4188, %v4165
    %4197 = vst.msk [vmem:[#allocation4 + $0x39] sm:$0x1] %vm4190, %v4167
    %4198 = vst.msk [vmem:[#allocation4 + $0x41] sm:$0xff] %vm4188, %v4169
    %4199 = vst.msk [vmem:[#allocation4 + $0x49] sm:$0x1] %vm4190, %v4171
    %4200 = vst.msk [vmem:[#allocation4 + $0x51] sm:$0xff] %vm4188, %v4173
    %4201 = vst.msk [vmem:[#allocation4 + $0x59] sm:$0x1] %vm4190, %v4175
    %v4202 = vld [vmem:[#allocation4] sm:$0xff]
    %v4203 = vld [vmem:[#allocation4 + $0x10] sm:$0xff]
    %v4204 = vld [vmem:[#allocation4 + $0x20] sm:$0xff]
    %v4205 = vld [vmem:[#allocation4 + $0x30] sm:$0xff]
    %v4206 = vld [vmem:[#allocation4 + $0x40] sm:$0xff]
    %v4207 = vld [vmem:[#allocation4 + $0x50] sm:$0xff]
    %4214 = vrot.lane.b32.xlu0 %v4202, 127
    %v4215 = vpop.permute.xlu0 %4214
    %4216 = vrot.lane.b32.xlu0 %v4203, 127
    %v4217 = vpop.permute.xlu0 %4216
    %4218 = vrot.lane.b32.xlu0 %v4204, 127
    %v4219 = vpop.permute.xlu0 %4218
    %4220 = vrot.lane.b32.xlu0 %v4205, 127
    %v4221 = vpop.permute.xlu0 %4220
    %4222 = vrot.lane.b32.xlu0 %v4206, 127
    %v4223 = vpop.permute.xlu0 %4222
    %4224 = vrot.lane.b32.xlu0 %v4207, 127
    %v4225 = vpop.permute.xlu0 %4224
    %v4232 = vmax.f32 %v4202, %v4215
    %v4233 = vmax.f32 %v4203, %v4217
    %v4234 = vmax.f32 %v4204, %v4219
    %v4235 = vmax.f32 %v4205, %v4221
    %v4236 = vmax.f32 %v4206, %v4223
    %v4237 = vmax.f32 %v4207, %v4225
    %4238 = vrot.lane.b32.xlu0 %v4202, 126
    %v4239 = vpop.permute.xlu0 %4238
    %4240 = vrot.lane.b32.xlu0 %v4203, 126
    %v4241 = vpop.permute.xlu0 %4240
    %4242 = vrot.lane.b32.xlu0 %v4204, 126
    %v4243 = vpop.permute.xlu0 %4242
    %4244 = vrot.lane.b32.xlu0 %v4205, 126
    %v4245 = vpop.permute.xlu0 %4244
    %4246 = vrot.lane.b32.xlu0 %v4206, 126
    %v4247 = vpop.permute.xlu0 %4246
    %4248 = vrot.lane.b32.xlu0 %v4207, 126
    %v4249 = vpop.permute.xlu0 %4248
    %v4256 = vmax.f32 %v4232, %v4239
    %v4257 = vmax.f32 %v4233, %v4241
    %v4258 = vmax.f32 %v4234, %v4243
    %v4259 = vmax.f32 %v4235, %v4245
    %v4260 = vmax.f32 %v4236, %v4247
    %v4261 = vmax.f32 %v4237, %v4249
    %4262 = vrot.lane.b32.xlu0 %v4202, 125
    %v4263 = vpop.permute.xlu0 %4262
    %4264 = vrot.lane.b32.xlu0 %v4203, 125
    %v4265 = vpop.permute.xlu0 %4264
    %4266 = vrot.lane.b32.xlu0 %v4204, 125
    %v4267 = vpop.permute.xlu0 %4266
    %4268 = vrot.lane.b32.xlu0 %v4205, 125
    %v4269 = vpop.permute.xlu0 %4268
    %4270 = vrot.lane.b32.xlu0 %v4206, 125
    %v4271 = vpop.permute.xlu0 %4270
    %4272 = vrot.lane.b32.xlu0 %v4207, 125
    %v4273 = vpop.permute.xlu0 %4272
    %v4280 = vmax.f32 %v4256, %v4263
    %v4281 = vmax.f32 %v4257, %v4265
    %v4282 = vmax.f32 %v4258, %v4267
    %v4283 = vmax.f32 %v4259, %v4269
    %v4284 = vmax.f32 %v4260, %v4271
    %v4285 = vmax.f32 %v4261, %v4273
    %4286 = vrot.lane.b32.xlu0 %v4202, 124
    %v4287 = vpop.permute.xlu0 %4286
    %4288 = vrot.lane.b32.xlu0 %v4203, 124
    %v4289 = vpop.permute.xlu0 %4288
    %4290 = vrot.lane.b32.xlu0 %v4204, 124
    %v4291 = vpop.permute.xlu0 %4290
    %4292 = vrot.lane.b32.xlu0 %v4205, 124
    %v4293 = vpop.permute.xlu0 %4292
    %4294 = vrot.lane.b32.xlu0 %v4206, 124
    %v4295 = vpop.permute.xlu0 %4294
    %4296 = vrot.lane.b32.xlu0 %v4207, 124
    %v4297 = vpop.permute.xlu0 %4296
    %v4304 = vmax.f32 %v4280, %v4287
    %v4305 = vmax.f32 %v4281, %v4289
    %v4306 = vmax.f32 %v4282, %v4291
    %v4307 = vmax.f32 %v4283, %v4293
    %v4308 = vmax.f32 %v4284, %v4295
    %v4309 = vmax.f32 %v4285, %v4297
    %v4310 = vld [vmem:[#allocation4 + $0x1] sm:$0xff]
    %v4311 = vld [vmem:[#allocation4 + $0x11] sm:$0xff]
    %v4312 = vld [vmem:[#allocation4 + $0x21] sm:$0xff]
    %v4313 = vld [vmem:[#allocation4 + $0x31] sm:$0xff]
    %v4314 = vld [vmem:[#allocation4 + $0x41] sm:$0xff]
    %v4315 = vld [vmem:[#allocation4 + $0x51] sm:$0xff]
    %v4316 = vmax.f32 %v4304, %v4310
    %v4317 = vmax.f32 %v4305, %v4311
    %v4318 = vmax.f32 %v4306, %v4312
    %v4319 = vmax.f32 %v4307, %v4313
    %v4320 = vmax.f32 %v4308, %v4314
    %v4321 = vmax.f32 %v4309, %v4315
    %4328 = vrot.lane.b32.xlu0 %v4310, 127
    %v4329 = vpop.permute.xlu0 %4328
    %4330 = vrot.lane.b32.xlu0 %v4311, 127
    %v4331 = vpop.permute.xlu0 %4330
    %4332 = vrot.lane.b32.xlu0 %v4312, 127
    %v4333 = vpop.permute.xlu0 %4332
    %4334 = vrot.lane.b32.xlu0 %v4313, 127
    %v4335 = vpop.permute.xlu0 %4334
    %4336 = vrot.lane.b32.xlu0 %v4314, 127
    %v4337 = vpop.permute.xlu0 %4336
    %4338 = vrot.lane.b32.xlu0 %v4315, 127
    %v4339 = vpop.permute.xlu0 %4338
    %v4346 = vmax.f32 %v4316, %v4329
    %v4347 = vmax.f32 %v4317, %v4331
    %v4348 = vmax.f32 %v4318, %v4333
    %v4349 = vmax.f32 %v4319, %v4335
    %v4350 = vmax.f32 %v4320, %v4337
    %v4351 = vmax.f32 %v4321, %v4339
    %4352 = vrot.lane.b32.xlu0 %v4310, 126
    %v4353 = vpop.permute.xlu0 %4352
    %4354 = vrot.lane.b32.xlu0 %v4311, 126
    %v4355 = vpop.permute.xlu0 %4354
    %4356 = vrot.lane.b32.xlu0 %v4312, 126
    %v4357 = vpop.permute.xlu0 %4356
    %4358 = vrot.lane.b32.xlu0 %v4313, 126
    %v4359 = vpop.permute.xlu0 %4358
    %4360 = vrot.lane.b32.xlu0 %v4314, 126
    %v4361 = vpop.permute.xlu0 %4360
    %4362 = vrot.lane.b32.xlu0 %v4315, 126
    %v4363 = vpop.permute.xlu0 %4362
    %v4370 = vmax.f32 %v4346, %v4353
    %v4371 = vmax.f32 %v4347, %v4355
    %v4372 = vmax.f32 %v4348, %v4357
    %v4373 = vmax.f32 %v4349, %v4359
    %v4374 = vmax.f32 %v4350, %v4361
    %v4375 = vmax.f32 %v4351, %v4363
    %4376 = vrot.lane.b32.xlu0 %v4310, 125
    %v4377 = vpop.permute.xlu0 %4376
    %4378 = vrot.lane.b32.xlu0 %v4311, 125
    %v4379 = vpop.permute.xlu0 %4378
    %4380 = vrot.lane.b32.xlu0 %v4312, 125
    %v4381 = vpop.permute.xlu0 %4380
    %4382 = vrot.lane.b32.xlu0 %v4313, 125
    %v4383 = vpop.permute.xlu0 %4382
    %4384 = vrot.lane.b32.xlu0 %v4314, 125
    %v4385 = vpop.permute.xlu0 %4384
    %4386 = vrot.lane.b32.xlu0 %v4315, 125
    %v4387 = vpop.permute.xlu0 %4386
    %v4394 = vmax.f32 %v4370, %v4377
    %v4395 = vmax.f32 %v4371, %v4379
    %v4396 = vmax.f32 %v4372, %v4381
    %v4397 = vmax.f32 %v4373, %v4383
    %v4398 = vmax.f32 %v4374, %v4385
    %v4399 = vmax.f32 %v4375, %v4387
    %4400 = vrot.lane.b32.xlu0 %v4310, 124
    %v4401 = vpop.permute.xlu0 %4400
    %4402 = vrot.lane.b32.xlu0 %v4311, 124
    %v4403 = vpop.permute.xlu0 %4402
    %4404 = vrot.lane.b32.xlu0 %v4312, 124
    %v4405 = vpop.permute.xlu0 %4404
    %4406 = vrot.lane.b32.xlu0 %v4313, 124
    %v4407 = vpop.permute.xlu0 %4406
    %4408 = vrot.lane.b32.xlu0 %v4314, 124
    %v4409 = vpop.permute.xlu0 %4408
    %4410 = vrot.lane.b32.xlu0 %v4315, 124
    %v4411 = vpop.permute.xlu0 %4410
    %v4418 = vmax.f32 %v4394, %v4401
    %v4419 = vmax.f32 %v4395, %v4403
    %v4420 = vmax.f32 %v4396, %v4405
    %v4421 = vmax.f32 %v4397, %v4407
    %v4422 = vmax.f32 %v4398, %v4409
    %v4423 = vmax.f32 %v4399, %v4411
    %v4424 = vld [vmem:[#allocation4 + $0x2] sm:$0xff]
    %v4425 = vld [vmem:[#allocation4 + $0x12] sm:$0xff]
    %v4426 = vld [vmem:[#allocation4 + $0x22] sm:$0xff]
    %v4427 = vld [vmem:[#allocation4 + $0x32] sm:$0xff]
    %v4428 = vld [vmem:[#allocation4 + $0x42] sm:$0xff]
    %v4429 = vld [vmem:[#allocation4 + $0x52] sm:$0xff]
    %v4430 = vmax.f32 %v4418, %v4424
    %v4431 = vmax.f32 %v4419, %v4425
    %v4432 = vmax.f32 %v4420, %v4426
    %v4433 = vmax.f32 %v4421, %v4427
    %v4434 = vmax.f32 %v4422, %v4428
    %v4435 = vmax.f32 %v4423, %v4429
    %4442 = vrot.lane.b32.xlu0 %v4424, 127
    %v4443 = vpop.permute.xlu0 %4442
    %4444 = vrot.lane.b32.xlu0 %v4425, 127
    %v4445 = vpop.permute.xlu0 %4444
    %4446 = vrot.lane.b32.xlu0 %v4426, 127
    %v4447 = vpop.permute.xlu0 %4446
    %4448 = vrot.lane.b32.xlu0 %v4427, 127
    %v4449 = vpop.permute.xlu0 %4448
    %4450 = vrot.lane.b32.xlu0 %v4428, 127
    %v4451 = vpop.permute.xlu0 %4450
    %4452 = vrot.lane.b32.xlu0 %v4429, 127
    %v4453 = vpop.permute.xlu0 %4452
    %v4460 = vmax.f32 %v4430, %v4443
    %v4461 = vmax.f32 %v4431, %v4445
    %v4462 = vmax.f32 %v4432, %v4447
    %v4463 = vmax.f32 %v4433, %v4449
    %v4464 = vmax.f32 %v4434, %v4451
    %v4465 = vmax.f32 %v4435, %v4453
    %4466 = vrot.lane.b32.xlu0 %v4424, 126
    %v4467 = vpop.permute.xlu0 %4466
    %4468 = vrot.lane.b32.xlu0 %v4425, 126
    %v4469 = vpop.permute.xlu0 %4468
    %4470 = vrot.lane.b32.xlu0 %v4426, 126
    %v4471 = vpop.permute.xlu0 %4470
    %4472 = vrot.lane.b32.xlu0 %v4427, 126
    %v4473 = vpop.permute.xlu0 %4472
    %4474 = vrot.lane.b32.xlu0 %v4428, 126
    %v4475 = vpop.permute.xlu0 %4474
    %4476 = vrot.lane.b32.xlu0 %v4429, 126
    %v4477 = vpop.permute.xlu0 %4476
    %v4484 = vmax.f32 %v4460, %v4467
    %v4485 = vmax.f32 %v4461, %v4469
    %v4486 = vmax.f32 %v4462, %v4471
    %v4487 = vmax.f32 %v4463, %v4473
    %v4488 = vmax.f32 %v4464, %v4475
    %v4489 = vmax.f32 %v4465, %v4477
    %4490 = vrot.lane.b32.xlu0 %v4424, 125
    %v4491 = vpop.permute.xlu0 %4490
    %4492 = vrot.lane.b32.xlu0 %v4425, 125
    %v4493 = vpop.permute.xlu0 %4492
    %4494 = vrot.lane.b32.xlu0 %v4426, 125
    %v4495 = vpop.permute.xlu0 %4494
    %4496 = vrot.lane.b32.xlu0 %v4427, 125
    %v4497 = vpop.permute.xlu0 %4496
    %4498 = vrot.lane.b32.xlu0 %v4428, 125
    %v4499 = vpop.permute.xlu0 %4498
    %4500 = vrot.lane.b32.xlu0 %v4429, 125
    %v4501 = vpop.permute.xlu0 %4500
    %v4508 = vmax.f32 %v4484, %v4491
    %v4509 = vmax.f32 %v4485, %v4493
    %v4510 = vmax.f32 %v4486, %v4495
    %v4511 = vmax.f32 %v4487, %v4497
    %v4512 = vmax.f32 %v4488, %v4499
    %v4513 = vmax.f32 %v4489, %v4501
    %4514 = vrot.lane.b32.xlu0 %v4424, 124
    %v4515 = vpop.permute.xlu0 %4514
    %4516 = vrot.lane.b32.xlu0 %v4425, 124
    %v4517 = vpop.permute.xlu0 %4516
    %4518 = vrot.lane.b32.xlu0 %v4426, 124
    %v4519 = vpop.permute.xlu0 %4518
    %4520 = vrot.lane.b32.xlu0 %v4427, 124
    %v4521 = vpop.permute.xlu0 %4520
    %4522 = vrot.lane.b32.xlu0 %v4428, 124
    %v4523 = vpop.permute.xlu0 %4522
    %4524 = vrot.lane.b32.xlu0 %v4429, 124
    %v4525 = vpop.permute.xlu0 %4524
    %v4532 = vmax.f32 %v4508, %v4515
    %v4533 = vmax.f32 %v4509, %v4517
    %v4534 = vmax.f32 %v4510, %v4519
    %v4535 = vmax.f32 %v4511, %v4521
    %v4536 = vmax.f32 %v4512, %v4523
    %v4537 = vmax.f32 %v4513, %v4525
    %v4538 = vld [vmem:[#allocation4 + $0x3] sm:$0xff]
    %v4539 = vld [vmem:[#allocation4 + $0x13] sm:$0xff]
    %v4540 = vld [vmem:[#allocation4 + $0x23] sm:$0xff]
    %v4541 = vld [vmem:[#allocation4 + $0x33] sm:$0xff]
    %v4542 = vld [vmem:[#allocation4 + $0x43] sm:$0xff]
    %v4543 = vld [vmem:[#allocation4 + $0x53] sm:$0xff]
    %v4544 = vmax.f32 %v4532, %v4538
    %v4545 = vmax.f32 %v4533, %v4539
    %v4546 = vmax.f32 %v4534, %v4540
    %v4547 = vmax.f32 %v4535, %v4541
    %v4548 = vmax.f32 %v4536, %v4542
    %v4549 = vmax.f32 %v4537, %v4543
    %4556 = vrot.lane.b32.xlu0 %v4538, 127
    %v4557 = vpop.permute.xlu0 %4556
    %4558 = vrot.lane.b32.xlu0 %v4539, 127
    %v4559 = vpop.permute.xlu0 %4558
    %4560 = vrot.lane.b32.xlu0 %v4540, 127
    %v4561 = vpop.permute.xlu0 %4560
    %4562 = vrot.lane.b32.xlu0 %v4541, 127
    %v4563 = vpop.permute.xlu0 %4562
    %4564 = vrot.lane.b32.xlu0 %v4542, 127
    %v4565 = vpop.permute.xlu0 %4564
    %4566 = vrot.lane.b32.xlu0 %v4543, 127
    %v4567 = vpop.permute.xlu0 %4566
    %v4574 = vmax.f32 %v4544, %v4557
    %v4575 = vmax.f32 %v4545, %v4559
    %v4576 = vmax.f32 %v4546, %v4561
    %v4577 = vmax.f32 %v4547, %v4563
    %v4578 = vmax.f32 %v4548, %v4565
    %v4579 = vmax.f32 %v4549, %v4567
    %4580 = vrot.lane.b32.xlu0 %v4538, 126
    %v4581 = vpop.permute.xlu0 %4580
    %4582 = vrot.lane.b32.xlu0 %v4539, 126
    %v4583 = vpop.permute.xlu0 %4582
    %4584 = vrot.lane.b32.xlu0 %v4540, 126
    %v4585 = vpop.permute.xlu0 %4584
    %4586 = vrot.lane.b32.xlu0 %v4541, 126
    %v4587 = vpop.permute.xlu0 %4586
    %4588 = vrot.lane.b32.xlu0 %v4542, 126
    %v4589 = vpop.permute.xlu0 %4588
    %4590 = vrot.lane.b32.xlu0 %v4543, 126
    %v4591 = vpop.permute.xlu0 %4590
    %v4598 = vmax.f32 %v4574, %v4581
    %v4599 = vmax.f32 %v4575, %v4583
    %v4600 = vmax.f32 %v4576, %v4585
    %v4601 = vmax.f32 %v4577, %v4587
    %v4602 = vmax.f32 %v4578, %v4589
    %v4603 = vmax.f32 %v4579, %v4591
    %4604 = vrot.lane.b32.xlu0 %v4538, 125
    %v4605 = vpop.permute.xlu0 %4604
    %4606 = vrot.lane.b32.xlu0 %v4539, 125
    %v4607 = vpop.permute.xlu0 %4606
    %4608 = vrot.lane.b32.xlu0 %v4540, 125
    %v4609 = vpop.permute.xlu0 %4608
    %4610 = vrot.lane.b32.xlu0 %v4541, 125
    %v4611 = vpop.permute.xlu0 %4610
    %4612 = vrot.lane.b32.xlu0 %v4542, 125
    %v4613 = vpop.permute.xlu0 %4612
    %4614 = vrot.lane.b32.xlu0 %v4543, 125
    %v4615 = vpop.permute.xlu0 %4614
    %v4622 = vmax.f32 %v4598, %v4605
    %v4623 = vmax.f32 %v4599, %v4607
    %v4624 = vmax.f32 %v4600, %v4609
    %v4625 = vmax.f32 %v4601, %v4611
    %v4626 = vmax.f32 %v4602, %v4613
    %v4627 = vmax.f32 %v4603, %v4615
    %4628 = vrot.lane.b32.xlu0 %v4538, 124
    %v4629 = vpop.permute.xlu0 %4628
    %4630 = vrot.lane.b32.xlu0 %v4539, 124
    %v4631 = vpop.permute.xlu0 %4630
    %4632 = vrot.lane.b32.xlu0 %v4540, 124
    %v4633 = vpop.permute.xlu0 %4632
    %4634 = vrot.lane.b32.xlu0 %v4541, 124
    %v4635 = vpop.permute.xlu0 %4634
    %4636 = vrot.lane.b32.xlu0 %v4542, 124
    %v4637 = vpop.permute.xlu0 %4636
    %4638 = vrot.lane.b32.xlu0 %v4543, 124
    %v4639 = vpop.permute.xlu0 %4638
    %v4646 = vmax.f32 %v4622, %v4629
    %v4647 = vmax.f32 %v4623, %v4631
    %v4648 = vmax.f32 %v4624, %v4633
    %v4649 = vmax.f32 %v4625, %v4635
    %v4650 = vmax.f32 %v4626, %v4637
    %v4651 = vmax.f32 %v4627, %v4639
    %4658 = vrot.lane.b32.xlu0 %v4646, 127
    %v4659 = vpop.permute.xlu0 %4658
    %4660 = vrot.lane.b32.xlu0 %v4647, 127
    %v4661 = vpop.permute.xlu0 %4660
    %4662 = vrot.lane.b32.xlu0 %v4648, 127
    %v4663 = vpop.permute.xlu0 %4662
    %4664 = vrot.lane.b32.xlu0 %v4649, 127
    %v4665 = vpop.permute.xlu0 %4664
    %4666 = vrot.lane.b32.xlu0 %v4650, 127
    %v4667 = vpop.permute.xlu0 %4666
    %4668 = vrot.lane.b32.xlu0 %v4651, 127
    %v4669 = vpop.permute.xlu0 %4668
    %4676 = vrot.lane.b32.xlu0 %v4646, 126
    %v4677 = vpop.permute.xlu0 %4676
    %4678 = vrot.lane.b32.xlu0 %v4647, 126
    %v4679 = vpop.permute.xlu0 %4678
    %4680 = vrot.lane.b32.xlu0 %v4648, 126
    %v4681 = vpop.permute.xlu0 %4680
    %4682 = vrot.lane.b32.xlu0 %v4649, 126
    %v4683 = vpop.permute.xlu0 %4682
    %4684 = vrot.lane.b32.xlu0 %v4650, 126
    %v4685 = vpop.permute.xlu0 %4684
    %4686 = vrot.lane.b32.xlu0 %v4651, 126
    %v4687 = vpop.permute.xlu0 %4686
    %4694 = vrot.lane.b32.xlu0 %v4646, 125
    %v4695 = vpop.permute.xlu0 %4694
    %4696 = vrot.lane.b32.xlu0 %v4647, 125
    %v4697 = vpop.permute.xlu0 %4696
    %4698 = vrot.lane.b32.xlu0 %v4648, 125
    %v4699 = vpop.permute.xlu0 %4698
    %4700 = vrot.lane.b32.xlu0 %v4649, 125
    %v4701 = vpop.permute.xlu0 %4700
    %4702 = vrot.lane.b32.xlu0 %v4650, 125
    %v4703 = vpop.permute.xlu0 %4702
    %4704 = vrot.lane.b32.xlu0 %v4651, 125
    %v4705 = vpop.permute.xlu0 %4704
    %4712 = vrot.lane.b32.xlu0 %v4646, 124
    %v4713 = vpop.permute.xlu0 %4712
    %4714 = vrot.lane.b32.xlu0 %v4647, 124
    %v4715 = vpop.permute.xlu0 %4714
    %4716 = vrot.lane.b32.xlu0 %v4648, 124
    %v4717 = vpop.permute.xlu0 %4716
    %4718 = vrot.lane.b32.xlu0 %v4649, 124
    %v4719 = vpop.permute.xlu0 %4718
    %4720 = vrot.lane.b32.xlu0 %v4650, 124
    %v4721 = vpop.permute.xlu0 %4720
    %4722 = vrot.lane.b32.xlu0 %v4651, 124
    %v4723 = vpop.permute.xlu0 %4722
    %v4730 = vsel %vm2001, %v4646, %v4659
    %v4731 = vsel %vm2001, %v4647, %v4661
    %v4732 = vsel %vm2001, %v4648, %v4663
    %v4733 = vsel %vm2001, %v4649, %v4665
    %v4734 = vsel %vm2001, %v4650, %v4667
    %v4735 = vsel %vm2001, %v4651, %v4669
    %v4736 = vsel %vm2014, %v4730, %v4677
    %v4737 = vsel %vm2014, %v4731, %v4679
    %v4738 = vsel %vm2014, %v4732, %v4681
    %v4739 = vsel %vm2014, %v4733, %v4683
    %v4740 = vsel %vm2014, %v4734, %v4685
    %v4741 = vsel %vm2014, %v4735, %v4687
    %v4742 = vsel %vm2027, %v4736, %v4695
    %v4743 = vsel %vm2027, %v4737, %v4697
    %v4744 = vsel %vm2027, %v4738, %v4699
    %v4745 = vsel %vm2027, %v4739, %v4701
    %v4746 = vsel %vm2027, %v4740, %v4703
    %v4747 = vsel %vm2027, %v4741, %v4705
    %v4748 = vsel %vm2040, %v4742, %v4713
    %v4749 = vsel %vm2040, %v4743, %v4715
    %v4750 = vsel %vm2040, %v4744, %v4717
    %v4751 = vsel %vm2040, %v4745, %v4719
    %v4752 = vsel %vm2040, %v4746, %v4721
    %v4753 = vsel %vm2040, %v4747, %v4723
    %vm4754 = vcmask 49152
    %4755 = vst.msk [vmem:[#allocation5] sm:$0x1] %vm4754, -inf
    %4756 = vst.msk [vmem:[#allocation5 + $0x10] sm:$0x1] %vm4754, -inf
    %4757 = vst.msk [vmem:[#allocation5 + $0x20] sm:$0x1] %vm4754, -inf
    %4758 = vst.msk [vmem:[#allocation5 + $0x30] sm:$0x1] %vm4754, -inf
    %4759 = vst.msk [vmem:[#allocation5 + $0x40] sm:$0x1] %vm4754, -inf
    %4760 = vst.msk [vmem:[#allocation5 + $0x50] sm:$0x1] %vm4754, -inf
    %4761 = vst.msk [vmem:[#allocation5 + $0x9] sm:$0x1] %vm4754, -inf
    %4762 = vst.msk [vmem:[#allocation5 + $0x19] sm:$0x1] %vm4754, -inf
    %4763 = vst.msk [vmem:[#allocation5 + $0x29] sm:$0x1] %vm4754, -inf
    %4764 = vst.msk [vmem:[#allocation5 + $0x39] sm:$0x1] %vm4754, -inf
    %4765 = vst.msk [vmem:[#allocation5 + $0x49] sm:$0x1] %vm4754, -inf
    %4766 = vst.msk [vmem:[#allocation5 + $0x59] sm:$0x1] %vm4754, -inf
    %4767 = vst.msk [vmem:[#allocation5 + $0x1] sm:$0xff] %vm2001, -inf
    %4768 = vst.msk [vmem:[#allocation5 + $0x11] sm:$0xff] %vm2001, -inf
    %4769 = vst.msk [vmem:[#allocation5 + $0x21] sm:$0xff] %vm2001, -inf
    %4770 = vst.msk [vmem:[#allocation5 + $0x31] sm:$0xff] %vm2001, -inf
    %4771 = vst.msk [vmem:[#allocation5 + $0x41] sm:$0xff] %vm2001, -inf
    %4772 = vst.msk [vmem:[#allocation5 + $0x51] sm:$0xff] %vm2001, -inf
    %vm4773 = vcmask 56368
    %4774 = vst.msk [vmem:[#allocation5 + $0x1] sm:$0xff] %vm4773, -inf
    %4775 = vst.msk [vmem:[#allocation5 + $0x11] sm:$0xff] %vm4773, -inf
    %4776 = vst.msk [vmem:[#allocation5 + $0x21] sm:$0xff] %vm4773, -inf
    %4777 = vst.msk [vmem:[#allocation5 + $0x31] sm:$0xff] %vm4773, -inf
    %4778 = vst.msk [vmem:[#allocation5 + $0x41] sm:$0xff] %vm4773, -inf
    %4779 = vst.msk [vmem:[#allocation5 + $0x51] sm:$0xff] %vm4773, -inf
    %4786 = vrot.lane.b32.xlu0 %v4748, 1
    %v4787 = vpop.permute.xlu0 %4786
    %4788 = vrot.lane.b32.xlu0 %v4749, 1
    %v4789 = vpop.permute.xlu0 %4788
    %4790 = vrot.lane.b32.xlu0 %v4750, 1
    %v4791 = vpop.permute.xlu0 %4790
    %4792 = vrot.lane.b32.xlu0 %v4751, 1
    %v4793 = vpop.permute.xlu0 %4792
    %4794 = vrot.lane.b32.xlu0 %v4752, 1
    %v4795 = vpop.permute.xlu0 %4794
    %4796 = vrot.lane.b32.xlu0 %v4753, 1
    %v4797 = vpop.permute.xlu0 %4796
    %vm4804 = vcmask 48136
    %4805 = vst.msk [vmem:[#allocation5 + $0x1] sm:$0xff] %vm4804, %v4787
    %4806 = vst.msk [vmem:[#allocation5 + $0x11] sm:$0xff] %vm4804, %v4789
    %4807 = vst.msk [vmem:[#allocation5 + $0x21] sm:$0xff] %vm4804, %v4791
    %4808 = vst.msk [vmem:[#allocation5 + $0x31] sm:$0xff] %vm4804, %v4793
    %4809 = vst.msk [vmem:[#allocation5 + $0x41] sm:$0xff] %vm4804, %v4795
    %4810 = vst.msk [vmem:[#allocation5 + $0x51] sm:$0xff] %vm4804, %v4797
    %v4811 = vld [vmem:[#allocation5] sm:$0xff]
    %v4812 = vld [vmem:[#allocation5 + $0x8] sm:$0x1]
    %v4813 = vld [vmem:[#allocation5 + $0x10] sm:$0xff]
    %v4814 = vld [vmem:[#allocation5 + $0x18] sm:$0x1]
    %v4815 = vld [vmem:[#allocation5 + $0x20] sm:$0xff]
    %v4816 = vld [vmem:[#allocation5 + $0x28] sm:$0x1]
    %v4817 = vld [vmem:[#allocation5 + $0x30] sm:$0xff]
    %v4818 = vld [vmem:[#allocation5 + $0x38] sm:$0x1]
    %v4819 = vld [vmem:[#allocation5 + $0x40] sm:$0xff]
    %v4820 = vld [vmem:[#allocation5 + $0x48] sm:$0x1]
    %v4821 = vld [vmem:[#allocation5 + $0x50] sm:$0xff]
    %v4822 = vld [vmem:[#allocation5 + $0x58] sm:$0x1]
    %4835 = vrot.lane.b32.xlu0 %v4811, 126
    %v4836 = vpop.permute.xlu0 %4835
    %4837 = vrot.lane.b32.xlu0 %v4812, 126
    %v4838 = vpop.permute.xlu0 %4837
    %4839 = vrot.lane.b32.xlu0 %v4813, 126
    %v4840 = vpop.permute.xlu0 %4839
    %4841 = vrot.lane.b32.xlu0 %v4814, 126
    %v4842 = vpop.permute.xlu0 %4841
    %4843 = vrot.lane.b32.xlu0 %v4815, 126
    %v4844 = vpop.permute.xlu0 %4843
    %4845 = vrot.lane.b32.xlu0 %v4816, 126
    %v4846 = vpop.permute.xlu0 %4845
    %4847 = vrot.lane.b32.xlu0 %v4817, 126
    %v4848 = vpop.permute.xlu0 %4847
    %4849 = vrot.lane.b32.xlu0 %v4818, 126
    %v4850 = vpop.permute.xlu0 %4849
    %4851 = vrot.lane.b32.xlu0 %v4819, 126
    %v4852 = vpop.permute.xlu0 %4851
    %4853 = vrot.lane.b32.xlu0 %v4820, 126
    %v4854 = vpop.permute.xlu0 %4853
    %4855 = vrot.lane.b32.xlu0 %v4821, 126
    %v4856 = vpop.permute.xlu0 %4855
    %4857 = vrot.lane.b32.xlu0 %v4822, 126
    %v4858 = vpop.permute.xlu0 %4857
    %v4871 = vmax.f32 %v4811, %v4836
    %v4872 = vmax.f32 %v4812, %v4838
    %v4873 = vmax.f32 %v4813, %v4840
    %v4874 = vmax.f32 %v4814, %v4842
    %v4875 = vmax.f32 %v4815, %v4844
    %v4876 = vmax.f32 %v4816, %v4846
    %v4877 = vmax.f32 %v4817, %v4848
    %v4878 = vmax.f32 %v4818, %v4850
    %v4879 = vmax.f32 %v4819, %v4852
    %v4880 = vmax.f32 %v4820, %v4854
    %v4881 = vmax.f32 %v4821, %v4856
    %v4882 = vmax.f32 %v4822, %v4858
    %4883 = vrot.lane.b32.xlu0 %v4811, 124
    %v4884 = vpop.permute.xlu0 %4883
    %4885 = vrot.lane.b32.xlu0 %v4812, 124
    %v4886 = vpop.permute.xlu0 %4885
    %4887 = vrot.lane.b32.xlu0 %v4813, 124
    %v4888 = vpop.permute.xlu0 %4887
    %4889 = vrot.lane.b32.xlu0 %v4814, 124
    %v4890 = vpop.permute.xlu0 %4889
    %4891 = vrot.lane.b32.xlu0 %v4815, 124
    %v4892 = vpop.permute.xlu0 %4891
    %4893 = vrot.lane.b32.xlu0 %v4816, 124
    %v4894 = vpop.permute.xlu0 %4893
    %4895 = vrot.lane.b32.xlu0 %v4817, 124
    %v4896 = vpop.permute.xlu0 %4895
    %4897 = vrot.lane.b32.xlu0 %v4818, 124
    %v4898 = vpop.permute.xlu0 %4897
    %4899 = vrot.lane.b32.xlu0 %v4819, 124
    %v4900 = vpop.permute.xlu0 %4899
    %4901 = vrot.lane.b32.xlu0 %v4820, 124
    %v4902 = vpop.permute.xlu0 %4901
    %4903 = vrot.lane.b32.xlu0 %v4821, 124
    %v4904 = vpop.permute.xlu0 %4903
    %4905 = vrot.lane.b32.xlu0 %v4822, 124
    %v4906 = vpop.permute.xlu0 %4905
    %v4919 = vmax.f32 %v4871, %v4884
    %v4920 = vmax.f32 %v4872, %v4886
    %v4921 = vmax.f32 %v4873, %v4888
    %v4922 = vmax.f32 %v4874, %v4890
    %v4923 = vmax.f32 %v4875, %v4892
    %v4924 = vmax.f32 %v4876, %v4894
    %v4925 = vmax.f32 %v4877, %v4896
    %v4926 = vmax.f32 %v4878, %v4898
    %v4927 = vmax.f32 %v4879, %v4900
    %v4928 = vmax.f32 %v4880, %v4902
    %v4929 = vmax.f32 %v4881, %v4904
    %v4930 = vmax.f32 %v4882, %v4906
    %v4931 = vld [vmem:[#allocation5 + $0x1] sm:$0xff]
    %v4932 = vld [vmem:[#allocation5 + $0x9] sm:$0x1]
    %v4933 = vld [vmem:[#allocation5 + $0x11] sm:$0xff]
    %v4934 = vld [vmem:[#allocation5 + $0x19] sm:$0x1]
    %v4935 = vld [vmem:[#allocation5 + $0x21] sm:$0xff]
    %v4936 = vld [vmem:[#allocation5 + $0x29] sm:$0x1]
    %v4937 = vld [vmem:[#allocation5 + $0x31] sm:$0xff]
    %v4938 = vld [vmem:[#allocation5 + $0x39] sm:$0x1]
    %v4939 = vld [vmem:[#allocation5 + $0x41] sm:$0xff]
    %v4940 = vld [vmem:[#allocation5 + $0x49] sm:$0x1]
    %v4941 = vld [vmem:[#allocation5 + $0x51] sm:$0xff]
    %v4942 = vld [vmem:[#allocation5 + $0x59] sm:$0x1]
    %v4943 = vmax.f32 %v4919, %v4931
    %v4944 = vmax.f32 %v4920, %v4932
    %v4945 = vmax.f32 %v4921, %v4933
    %v4946 = vmax.f32 %v4922, %v4934
    %v4947 = vmax.f32 %v4923, %v4935
    %v4948 = vmax.f32 %v4924, %v4936
    %v4949 = vmax.f32 %v4925, %v4937
    %v4950 = vmax.f32 %v4926, %v4938
    %v4951 = vmax.f32 %v4927, %v4939
    %v4952 = vmax.f32 %v4928, %v4940
    %v4953 = vmax.f32 %v4929, %v4941
    %v4954 = vmax.f32 %v4930, %v4942
    %4967 = vrot.lane.b32.xlu0 %v4931, 126
    %v4968 = vpop.permute.xlu0 %4967
    %4969 = vrot.lane.b32.xlu0 %v4932, 126
    %v4970 = vpop.permute.xlu0 %4969
    %4971 = vrot.lane.b32.xlu0 %v4933, 126
    %v4972 = vpop.permute.xlu0 %4971
    %4973 = vrot.lane.b32.xlu0 %v4934, 126
    %v4974 = vpop.permute.xlu0 %4973
    %4975 = vrot.lane.b32.xlu0 %v4935, 126
    %v4976 = vpop.permute.xlu0 %4975
    %4977 = vrot.lane.b32.xlu0 %v4936, 126
    %v4978 = vpop.permute.xlu0 %4977
    %4979 = vrot.lane.b32.xlu0 %v4937, 126
    %v4980 = vpop.permute.xlu0 %4979
    %4981 = vrot.lane.b32.xlu0 %v4938, 126
    %v4982 = vpop.permute.xlu0 %4981
    %4983 = vrot.lane.b32.xlu0 %v4939, 126
    %v4984 = vpop.permute.xlu0 %4983
    %4985 = vrot.lane.b32.xlu0 %v4940, 126
    %v4986 = vpop.permute.xlu0 %4985
    %4987 = vrot.lane.b32.xlu0 %v4941, 126
    %v4988 = vpop.permute.xlu0 %4987
    %4989 = vrot.lane.b32.xlu0 %v4942, 126
    %v4990 = vpop.permute.xlu0 %4989
    %v5003 = vmax.f32 %v4943, %v4968
    %v5004 = vmax.f32 %v4944, %v4970
    %v5005 = vmax.f32 %v4945, %v4972
    %v5006 = vmax.f32 %v4946, %v4974
    %v5007 = vmax.f32 %v4947, %v4976
    %v5008 = vmax.f32 %v4948, %v4978
    %v5009 = vmax.f32 %v4949, %v4980
    %v5010 = vmax.f32 %v4950, %v4982
    %v5011 = vmax.f32 %v4951, %v4984
    %v5012 = vmax.f32 %v4952, %v4986
    %v5013 = vmax.f32 %v4953, %v4988
    %v5014 = vmax.f32 %v4954, %v4990
    %5015 = vrot.lane.b32.xlu0 %v4931, 124
    %v5016 = vpop.permute.xlu0 %5015
    %5017 = vrot.lane.b32.xlu0 %v4932, 124
    %v5018 = vpop.permute.xlu0 %5017
    %5019 = vrot.lane.b32.xlu0 %v4933, 124
    %v5020 = vpop.permute.xlu0 %5019
    %5021 = vrot.lane.b32.xlu0 %v4934, 124
    %v5022 = vpop.permute.xlu0 %5021
    %5023 = vrot.lane.b32.xlu0 %v4935, 124
    %v5024 = vpop.permute.xlu0 %5023
    %5025 = vrot.lane.b32.xlu0 %v4936, 124
    %v5026 = vpop.permute.xlu0 %5025
    %5027 = vrot.lane.b32.xlu0 %v4937, 124
    %v5028 = vpop.permute.xlu0 %5027
    %5029 = vrot.lane.b32.xlu0 %v4938, 124
    %v5030 = vpop.permute.xlu0 %5029
    %5031 = vrot.lane.b32.xlu0 %v4939, 124
    %v5032 = vpop.permute.xlu0 %5031
    %5033 = vrot.lane.b32.xlu0 %v4940, 124
    %v5034 = vpop.permute.xlu0 %5033
    %5035 = vrot.lane.b32.xlu0 %v4941, 124
    %v5036 = vpop.permute.xlu0 %5035
    %5037 = vrot.lane.b32.xlu0 %v4942, 124
    %v5038 = vpop.permute.xlu0 %5037
    %v5051 = vmax.f32 %v5003, %v5016
    %v5052 = vmax.f32 %v5004, %v5018
    %v5053 = vmax.f32 %v5005, %v5020
    %v5054 = vmax.f32 %v5006, %v5022
    %v5055 = vmax.f32 %v5007, %v5024
    %v5056 = vmax.f32 %v5008, %v5026
    %v5057 = vmax.f32 %v5009, %v5028
    %v5058 = vmax.f32 %v5010, %v5030
    %v5059 = vmax.f32 %v5011, %v5032
    %v5060 = vmax.f32 %v5012, %v5034
    %v5061 = vmax.f32 %v5013, %v5036
    %v5062 = vmax.f32 %v5014, %v5038
    %5063 = vst.msk [vmem:[#allocation6] sm:$0xff] %vm2027, %v5051
    %vm5064 = vcmask 16384
    %5065 = vst.msk [vmem:[#allocation6 + $0x8] sm:$0x1] %vm5064, %v5052
    %5066 = vst.msk [vmem:[#allocation6 + $0x10] sm:$0xff] %vm2027, %v5053
    %5067 = vst.msk [vmem:[#allocation6 + $0x18] sm:$0x1] %vm5064, %v5054
    %5068 = vst.msk [vmem:[#allocation6 + $0x20] sm:$0xff] %vm2027, %v5055
    %5069 = vst.msk [vmem:[#allocation6 + $0x28] sm:$0x1] %vm5064, %v5056
    %5070 = vst.msk [vmem:[#allocation6 + $0x30] sm:$0xff] %vm2027, %v5057
    %5071 = vst.msk [vmem:[#allocation6 + $0x38] sm:$0x1] %vm5064, %v5058
    %5072 = vst.msk [vmem:[#allocation6 + $0x40] sm:$0xff] %vm2027, %v5059
    %5073 = vst.msk [vmem:[#allocation6 + $0x48] sm:$0x1] %vm5064, %v5060
    %5074 = vst.msk [vmem:[#allocation6 + $0x50] sm:$0xff] %vm2027, %v5061
    %5075 = vst.msk [vmem:[#allocation6 + $0x58] sm:$0x1] %vm5064, %v5062
    %v5076 = vld [vmem:[#allocation6] sm:$0xff]
    %v5077 = vld [vmem:[#allocation6 + $0x10] sm:$0xff]
    %v5078 = vld [vmem:[#allocation6 + $0x20] sm:$0xff]
    %v5079 = vld [vmem:[#allocation6 + $0x30] sm:$0xff]
    %v5080 = vld [vmem:[#allocation6 + $0x40] sm:$0xff]
    %v5081 = vld [vmem:[#allocation6 + $0x50] sm:$0xff]
    %5088 = vrot.lane.b32.xlu0 %v5076, 127
    %v5089 = vpop.permute.xlu0 %5088
    %5090 = vrot.lane.b32.xlu0 %v5077, 127
    %v5091 = vpop.permute.xlu0 %5090
    %5092 = vrot.lane.b32.xlu0 %v5078, 127
    %v5093 = vpop.permute.xlu0 %5092
    %5094 = vrot.lane.b32.xlu0 %v5079, 127
    %v5095 = vpop.permute.xlu0 %5094
    %5096 = vrot.lane.b32.xlu0 %v5080, 127
    %v5097 = vpop.permute.xlu0 %5096
    %5098 = vrot.lane.b32.xlu0 %v5081, 127
    %v5099 = vpop.permute.xlu0 %5098
    %v5106 = vmax.f32 %v5076, %v5089
    %v5107 = vmax.f32 %v5077, %v5091
    %v5108 = vmax.f32 %v5078, %v5093
    %v5109 = vmax.f32 %v5079, %v5095
    %v5110 = vmax.f32 %v5080, %v5097
    %v5111 = vmax.f32 %v5081, %v5099
    %v5112 = vld [vmem:[#allocation6 + $0x1] sm:$0xff]
    %v5113 = vld [vmem:[#allocation6 + $0x11] sm:$0xff]
    %v5114 = vld [vmem:[#allocation6 + $0x21] sm:$0xff]
    %v5115 = vld [vmem:[#allocation6 + $0x31] sm:$0xff]
    %v5116 = vld [vmem:[#allocation6 + $0x41] sm:$0xff]
    %v5117 = vld [vmem:[#allocation6 + $0x51] sm:$0xff]
    %v5118 = vmax.f32 %v5106, %v5112
    %v5119 = vmax.f32 %v5107, %v5113
    %v5120 = vmax.f32 %v5108, %v5114
    %v5121 = vmax.f32 %v5109, %v5115
    %v5122 = vmax.f32 %v5110, %v5116
    %v5123 = vmax.f32 %v5111, %v5117
    %5130 = vrot.lane.b32.xlu0 %v5112, 127
    %v5131 = vpop.permute.xlu0 %5130
    %5132 = vrot.lane.b32.xlu0 %v5113, 127
    %v5133 = vpop.permute.xlu0 %5132
    %5134 = vrot.lane.b32.xlu0 %v5114, 127
    %v5135 = vpop.permute.xlu0 %5134
    %5136 = vrot.lane.b32.xlu0 %v5115, 127
    %v5137 = vpop.permute.xlu0 %5136
    %5138 = vrot.lane.b32.xlu0 %v5116, 127
    %v5139 = vpop.permute.xlu0 %5138
    %5140 = vrot.lane.b32.xlu0 %v5117, 127
    %v5141 = vpop.permute.xlu0 %5140
    %v5148 = vmax.f32 %v5118, %v5131
    %v5149 = vmax.f32 %v5119, %v5133
    %v5150 = vmax.f32 %v5120, %v5135
    %v5151 = vmax.f32 %v5121, %v5137
    %v5152 = vmax.f32 %v5122, %v5139
    %v5153 = vmax.f32 %v5123, %v5141
    %vm5154 = vcmask 41984
    %5155 = vst.msk [vmem:[#allocation7] sm:$0x3] %vm5154, -inf
    %5156 = vst.msk [vmem:[#allocation7 + $0x10] sm:$0x3] %vm5154, -inf
    %5157 = vst.msk [vmem:[#allocation7 + $0x20] sm:$0x3] %vm5154, -inf
    %5158 = vst.msk [vmem:[#allocation7 + $0x30] sm:$0x3] %vm5154, -inf
    %5159 = vst.msk [vmem:[#allocation7 + $0x40] sm:$0x3] %vm5154, -inf
    %5160 = vst.msk [vmem:[#allocation7 + $0x50] sm:$0x3] %vm5154, -inf
    %5161 = vst.msk [vmem:[#allocation7 + $0xa] sm:$0x3] %vm5154, -inf
    %5162 = vst.msk [vmem:[#allocation7 + $0x1a] sm:$0x3] %vm5154, -inf
    %5163 = vst.msk [vmem:[#allocation7 + $0x2a] sm:$0x3] %vm5154, -inf
    %5164 = vst.msk [vmem:[#allocation7 + $0x3a] sm:$0x3] %vm5154, -inf
    %5165 = vst.msk [vmem:[#allocation7 + $0x4a] sm:$0x3] %vm5154, -inf
    %5166 = vst.msk [vmem:[#allocation7 + $0x5a] sm:$0x3] %vm5154, -inf
    %5167 = vst.msk [vmem:[#allocation7 + $0x2] sm:$0xff] %vm2014, -inf
    %5168 = vst.msk [vmem:[#allocation7 + $0x12] sm:$0xff] %vm2014, -inf
    %5169 = vst.msk [vmem:[#allocation7 + $0x22] sm:$0xff] %vm2014, -inf
    %5170 = vst.msk [vmem:[#allocation7 + $0x32] sm:$0xff] %vm2014, -inf
    %5171 = vst.msk [vmem:[#allocation7 + $0x42] sm:$0xff] %vm2014, -inf
    %5172 = vst.msk [vmem:[#allocation7 + $0x52] sm:$0xff] %vm2014, -inf
    %vm5173 = vcmask 48160
    %5174 = vst.msk [vmem:[#allocation7 + $0x2] sm:$0xff] %vm5173, -inf
    %5175 = vst.msk [vmem:[#allocation7 + $0x12] sm:$0xff] %vm5173, -inf
    %5176 = vst.msk [vmem:[#allocation7 + $0x22] sm:$0xff] %vm5173, -inf
    %5177 = vst.msk [vmem:[#allocation7 + $0x32] sm:$0xff] %vm5173, -inf
    %5178 = vst.msk [vmem:[#allocation7 + $0x42] sm:$0xff] %vm5173, -inf
    %5179 = vst.msk [vmem:[#allocation7 + $0x52] sm:$0xff] %vm5173, -inf
    %5186 = vrot.lane.b32.xlu0 %v5148, 2
    %v5187 = vpop.permute.xlu0 %5186
    %5188 = vrot.lane.b32.xlu0 %v5149, 2
    %v5189 = vpop.permute.xlu0 %5188
    %5190 = vrot.lane.b32.xlu0 %v5150, 2
    %v5191 = vpop.permute.xlu0 %5190
    %5192 = vrot.lane.b32.xlu0 %v5151, 2
    %v5193 = vpop.permute.xlu0 %5192
    %5194 = vrot.lane.b32.xlu0 %v5152, 2
    %v5195 = vpop.permute.xlu0 %5194
    %5196 = vrot.lane.b32.xlu0 %v5153, 2
    %v5197 = vpop.permute.xlu0 %5196
    %vm5204 = vcmask 31760
    %5205 = vst.msk [vmem:[#allocation7 + $0x2] sm:$0xff] %vm5204, %v5187
    %5206 = vst.msk [vmem:[#allocation7 + $0x12] sm:$0xff] %vm5204, %v5189
    %5207 = vst.msk [vmem:[#allocation7 + $0x22] sm:$0xff] %vm5204, %v5191
    %5208 = vst.msk [vmem:[#allocation7 + $0x32] sm:$0xff] %vm5204, %v5193
    %5209 = vst.msk [vmem:[#allocation7 + $0x42] sm:$0xff] %vm5204, %v5195
    %5210 = vst.msk [vmem:[#allocation7 + $0x52] sm:$0xff] %vm5204, %v5197
    %v5211 = vlaneseq
    %v5212 = vshrl.u32 %v5211, 7
    %v5213 = vlaneseq
    %v5214 = vand.u32 %v5213, 127
    %v5215 = vmul.u32 %v5212, 2
    %v5216 = vadd.s32 %v5215, %v5214
    %v5217 = vld [vmem:[#allocation7] sm:$0xff]
    %v5218 = vld [vmem:[#allocation7 + $0x10] sm:$0xff]
    %v5219 = vld [vmem:[#allocation7 + $0x20] sm:$0xff]
    %v5220 = vld [vmem:[#allocation7 + $0x30] sm:$0xff]
    %v5221 = vld [vmem:[#allocation7 + $0x40] sm:$0xff]
    %v5222 = vld [vmem:[#allocation7 + $0x50] sm:$0xff]
    %vm5223 = vcmp.gt.f32.partialorder %v5217, -inf
    %vm5224 = vcmp.gt.f32.partialorder %v5218, -inf
    %vm5225 = vcmp.gt.f32.partialorder %v5219, -inf
    %vm5226 = vcmp.gt.f32.partialorder %v5220, -inf
    %vm5227 = vcmp.gt.f32.partialorder %v5221, -inf
    %vm5228 = vcmp.gt.f32.partialorder %v5222, -inf
    %v5229 = vadd.s32 %v5216, 4294967290
    %v5230 = vsel %vm5223, %v5229, 0
    %v5231 = vsel %vm5224, %v5229, 0
    %v5232 = vsel %vm5225, %v5229, 0
    %v5233 = vsel %vm5226, %v5229, 0
    %v5234 = vsel %vm5227, %v5229, 0
    %v5235 = vsel %vm5228, %v5229, 0
    %v5236 = vsel %vm5223, %v5217, -inf
    %v5237 = vsel %vm5224, %v5218, -inf
    %v5238 = vsel %vm5225, %v5219, -inf
    %v5239 = vsel %vm5226, %v5220, -inf
    %v5240 = vsel %vm5227, %v5221, -inf
    %v5241 = vsel %vm5228, %v5222, -inf
    %5248 = vrot.lane.b32.xlu0 %v5236, 1
    %v5249 = vpop.permute.xlu0 %5248
    %5250 = vrot.lane.b32.xlu0 %v5237, 1
    %v5251 = vpop.permute.xlu0 %5250
    %5252 = vrot.lane.b32.xlu0 %v5238, 1
    %v5253 = vpop.permute.xlu0 %5252
    %5254 = vrot.lane.b32.xlu0 %v5239, 1
    %v5255 = vpop.permute.xlu0 %5254
    %5256 = vrot.lane.b32.xlu0 %v5240, 1
    %v5257 = vpop.permute.xlu0 %5256
    %5258 = vrot.lane.b32.xlu0 %v5241, 1
    %v5259 = vpop.permute.xlu0 %5258
    %vm5266 = vcmp.gt.f32.partialorder %v5217, %v5249
    %vm5267 = vcmp.gt.f32.partialorder %v5218, %v5251
    %vm5268 = vcmp.gt.f32.partialorder %v5219, %v5253
    %vm5269 = vcmp.gt.f32.partialorder %v5220, %v5255
    %vm5270 = vcmp.gt.f32.partialorder %v5221, %v5257
    %vm5271 = vcmp.gt.f32.partialorder %v5222, %v5259
    %v5272 = vadd.s32 %v5216, 4294967291
    %5273 = vrot.lane.b32.xlu0 %v5272, 1
    %v5274 = vpop.permute.xlu0 %5273
    %5275 = vrot.lane.b32.xlu0 %v5230, 1
    %v5276 = vpop.permute.xlu0 %5275
    %5277 = vrot.lane.b32.xlu0 %v5231, 1
    %v5278 = vpop.permute.xlu0 %5277
    %5279 = vrot.lane.b32.xlu0 %v5232, 1
    %v5280 = vpop.permute.xlu0 %5279
    %5281 = vrot.lane.b32.xlu0 %v5233, 1
    %v5282 = vpop.permute.xlu0 %5281
    %5283 = vrot.lane.b32.xlu0 %v5234, 1
    %v5284 = vpop.permute.xlu0 %5283
    %5285 = vrot.lane.b32.xlu0 %v5235, 1
    %v5286 = vpop.permute.xlu0 %5285
    %v5287 = vsel %vm5266, %v5274, %v5276
    %v5288 = vsel %vm5267, %v5274, %v5278
    %v5289 = vsel %vm5268, %v5274, %v5280
    %v5290 = vsel %vm5269, %v5274, %v5282
    %v5291 = vsel %vm5270, %v5274, %v5284
    %v5292 = vsel %vm5271, %v5274, %v5286
    %v5293 = vsel %vm5266, %v5217, %v5249
    %v5294 = vsel %vm5267, %v5218, %v5251
    %v5295 = vsel %vm5268, %v5219, %v5253
    %v5296 = vsel %vm5269, %v5220, %v5255
    %v5297 = vsel %vm5270, %v5221, %v5257
    %v5298 = vsel %vm5271, %v5222, %v5259
    %5305 = vrot.lane.b32.xlu0 %v5293, 1
    %v5306 = vpop.permute.xlu0 %5305
    %5307 = vrot.lane.b32.xlu0 %v5294, 1
    %v5308 = vpop.permute.xlu0 %5307
    %5309 = vrot.lane.b32.xlu0 %v5295, 1
    %v5310 = vpop.permute.xlu0 %5309
    %5311 = vrot.lane.b32.xlu0 %v5296, 1
    %v5312 = vpop.permute.xlu0 %5311
    %5313 = vrot.lane.b32.xlu0 %v5297, 1
    %v5314 = vpop.permute.xlu0 %5313
    %5315 = vrot.lane.b32.xlu0 %v5298, 1
    %v5316 = vpop.permute.xlu0 %5315
    %vm5323 = vcmp.gt.f32.partialorder %v5217, %v5306
    %vm5324 = vcmp.gt.f32.partialorder %v5218, %v5308
    %vm5325 = vcmp.gt.f32.partialorder %v5219, %v5310
    %vm5326 = vcmp.gt.f32.partialorder %v5220, %v5312
    %vm5327 = vcmp.gt.f32.partialorder %v5221, %v5314
    %vm5328 = vcmp.gt.f32.partialorder %v5222, %v5316
    %v5329 = vadd.s32 %v5216, 4294967292
    %5330 = vrot.lane.b32.xlu0 %v5329, 2
    %v5331 = vpop.permute.xlu0 %5330
    %5332 = vrot.lane.b32.xlu0 %v5287, 1
    %v5333 = vpop.permute.xlu0 %5332
    %5334 = vrot.lane.b32.xlu0 %v5288, 1
    %v5335 = vpop.permute.xlu0 %5334
    %5336 = vrot.lane.b32.xlu0 %v5289, 1
    %v5337 = vpop.permute.xlu0 %5336
    %5338 = vrot.lane.b32.xlu0 %v5290, 1
    %v5339 = vpop.permute.xlu0 %5338
    %5340 = vrot.lane.b32.xlu0 %v5291, 1
    %v5341 = vpop.permute.xlu0 %5340
    %5342 = vrot.lane.b32.xlu0 %v5292, 1
    %v5343 = vpop.permute.xlu0 %5342
    %v5344 = vsel %vm5323, %v5331, %v5333
    %v5345 = vsel %vm5324, %v5331, %v5335
    %v5346 = vsel %vm5325, %v5331, %v5337
    %v5347 = vsel %vm5326, %v5331, %v5339
    %v5348 = vsel %vm5327, %v5331, %v5341
    %v5349 = vsel %vm5328, %v5331, %v5343
    %v5350 = vsel %vm5323, %v5217, %v5306
    %v5351 = vsel %vm5324, %v5218, %v5308
    %v5352 = vsel %vm5325, %v5219, %v5310
    %v5353 = vsel %vm5326, %v5220, %v5312
    %v5354 = vsel %vm5327, %v5221, %v5314
    %v5355 = vsel %vm5328, %v5222, %v5316
    %5362 = vrot.lane.b32.xlu0 %v5350, 1
    %v5363 = vpop.permute.xlu0 %5362
    %5364 = vrot.lane.b32.xlu0 %v5351, 1
    %v5365 = vpop.permute.xlu0 %5364
    %5366 = vrot.lane.b32.xlu0 %v5352, 1
    %v5367 = vpop.permute.xlu0 %5366
    %5368 = vrot.lane.b32.xlu0 %v5353, 1
    %v5369 = vpop.permute.xlu0 %5368
    %5370 = vrot.lane.b32.xlu0 %v5354, 1
    %v5371 = vpop.permute.xlu0 %5370
    %5372 = vrot.lane.b32.xlu0 %v5355, 1
    %v5373 = vpop.permute.xlu0 %5372
    %vm5380 = vcmp.gt.f32.partialorder %v5217, %v5363
    %vm5381 = vcmp.gt.f32.partialorder %v5218, %v5365
    %vm5382 = vcmp.gt.f32.partialorder %v5219, %v5367
    %vm5383 = vcmp.gt.f32.partialorder %v5220, %v5369
    %vm5384 = vcmp.gt.f32.partialorder %v5221, %v5371
    %vm5385 = vcmp.gt.f32.partialorder %v5222, %v5373
    %v5386 = vadd.s32 %v5216, 4294967293
    %5387 = vrot.lane.b32.xlu0 %v5386, 3
    %v5388 = vpop.permute.xlu0 %5387
    %5389 = vrot.lane.b32.xlu0 %v5344, 1
    %v5390 = vpop.permute.xlu0 %5389
    %5391 = vrot.lane.b32.xlu0 %v5345, 1
    %v5392 = vpop.permute.xlu0 %5391
    %5393 = vrot.lane.b32.xlu0 %v5346, 1
    %v5394 = vpop.permute.xlu0 %5393
    %5395 = vrot.lane.b32.xlu0 %v5347, 1
    %v5396 = vpop.permute.xlu0 %5395
    %5397 = vrot.lane.b32.xlu0 %v5348, 1
    %v5398 = vpop.permute.xlu0 %5397
    %5399 = vrot.lane.b32.xlu0 %v5349, 1
    %v5400 = vpop.permute.xlu0 %5399
    %v5401 = vsel %vm5380, %v5388, %v5390
    %v5402 = vsel %vm5381, %v5388, %v5392
    %v5403 = vsel %vm5382, %v5388, %v5394
    %v5404 = vsel %vm5383, %v5388, %v5396
    %v5405 = vsel %vm5384, %v5388, %v5398
    %v5406 = vsel %vm5385, %v5388, %v5400
    %v5407 = vsel %vm5380, %v5217, %v5363
    %v5408 = vsel %vm5381, %v5218, %v5365
    %v5409 = vsel %vm5382, %v5219, %v5367
    %v5410 = vsel %vm5383, %v5220, %v5369
    %v5411 = vsel %vm5384, %v5221, %v5371
    %v5412 = vsel %vm5385, %v5222, %v5373
    %v5413 = vld [vmem:[#allocation7 + $0x1] sm:$0xff]
    %v5414 = vld [vmem:[#allocation7 + $0x11] sm:$0xff]
    %v5415 = vld [vmem:[#allocation7 + $0x21] sm:$0xff]
    %v5416 = vld [vmem:[#allocation7 + $0x31] sm:$0xff]
    %v5417 = vld [vmem:[#allocation7 + $0x41] sm:$0xff]
    %v5418 = vld [vmem:[#allocation7 + $0x51] sm:$0xff]
    %5425 = vrot.lane.b32.xlu0 %v5407, 125
    %v5426 = vpop.permute.xlu0 %5425
    %5427 = vrot.lane.b32.xlu0 %v5408, 125
    %v5428 = vpop.permute.xlu0 %5427
    %5429 = vrot.lane.b32.xlu0 %v5409, 125
    %v5430 = vpop.permute.xlu0 %5429
    %5431 = vrot.lane.b32.xlu0 %v5410, 125
    %v5432 = vpop.permute.xlu0 %5431
    %5433 = vrot.lane.b32.xlu0 %v5411, 125
    %v5434 = vpop.permute.xlu0 %5433
    %5435 = vrot.lane.b32.xlu0 %v5412, 125
    %v5436 = vpop.permute.xlu0 %5435
    %vm5443 = vcmp.gt.f32.partialorder %v5413, %v5426
    %vm5444 = vcmp.gt.f32.partialorder %v5414, %v5428
    %vm5445 = vcmp.gt.f32.partialorder %v5415, %v5430
    %vm5446 = vcmp.gt.f32.partialorder %v5416, %v5432
    %vm5447 = vcmp.gt.f32.partialorder %v5417, %v5434
    %vm5448 = vcmp.gt.f32.partialorder %v5418, %v5436
    %5449 = vrot.lane.b32.xlu0 %v5401, 125
    %v5450 = vpop.permute.xlu0 %5449
    %5451 = vrot.lane.b32.xlu0 %v5402, 125
    %v5452 = vpop.permute.xlu0 %5451
    %5453 = vrot.lane.b32.xlu0 %v5403, 125
    %v5454 = vpop.permute.xlu0 %5453
    %5455 = vrot.lane.b32.xlu0 %v5404, 125
    %v5456 = vpop.permute.xlu0 %5455
    %5457 = vrot.lane.b32.xlu0 %v5405, 125
    %v5458 = vpop.permute.xlu0 %5457
    %5459 = vrot.lane.b32.xlu0 %v5406, 125
    %v5460 = vpop.permute.xlu0 %5459
    %v5461 = vsel %vm5443, %v5329, %v5450
    %v5462 = vsel %vm5444, %v5329, %v5452
    %v5463 = vsel %vm5445, %v5329, %v5454
    %v5464 = vsel %vm5446, %v5329, %v5456
    %v5465 = vsel %vm5447, %v5329, %v5458
    %v5466 = vsel %vm5448, %v5329, %v5460
    %v5467 = vsel %vm5443, %v5413, %v5426
    %v5468 = vsel %vm5444, %v5414, %v5428
    %v5469 = vsel %vm5445, %v5415, %v5430
    %v5470 = vsel %vm5446, %v5416, %v5432
    %v5471 = vsel %vm5447, %v5417, %v5434
    %v5472 = vsel %vm5448, %v5418, %v5436
    %5479 = vrot.lane.b32.xlu0 %v5467, 1
    %v5480 = vpop.permute.xlu0 %5479
    %5481 = vrot.lane.b32.xlu0 %v5468, 1
    %v5482 = vpop.permute.xlu0 %5481
    %5483 = vrot.lane.b32.xlu0 %v5469, 1
    %v5484 = vpop.permute.xlu0 %5483
    %5485 = vrot.lane.b32.xlu0 %v5470, 1
    %v5486 = vpop.permute.xlu0 %5485
    %5487 = vrot.lane.b32.xlu0 %v5471, 1
    %v5488 = vpop.permute.xlu0 %5487
    %5489 = vrot.lane.b32.xlu0 %v5472, 1
    %v5490 = vpop.permute.xlu0 %5489
    %vm5497 = vcmp.gt.f32.partialorder %v5413, %v5480
    %vm5498 = vcmp.gt.f32.partialorder %v5414, %v5482
    %vm5499 = vcmp.gt.f32.partialorder %v5415, %v5484
    %vm5500 = vcmp.gt.f32.partialorder %v5416, %v5486
    %vm5501 = vcmp.gt.f32.partialorder %v5417, %v5488
    %vm5502 = vcmp.gt.f32.partialorder %v5418, %v5490
    %5503 = vrot.lane.b32.xlu0 %v5386, 1
    %v5504 = vpop.permute.xlu0 %5503
    %5505 = vrot.lane.b32.xlu0 %v5461, 1
    %v5506 = vpop.permute.xlu0 %5505
    %5507 = vrot.lane.b32.xlu0 %v5462, 1
    %v5508 = vpop.permute.xlu0 %5507
    %5509 = vrot.lane.b32.xlu0 %v5463, 1
    %v5510 = vpop.permute.xlu0 %5509
    %5511 = vrot.lane.b32.xlu0 %v5464, 1
    %v5512 = vpop.permute.xlu0 %5511
    %5513 = vrot.lane.b32.xlu0 %v5465, 1
    %v5514 = vpop.permute.xlu0 %5513
    %5515 = vrot.lane.b32.xlu0 %v5466, 1
    %v5516 = vpop.permute.xlu0 %5515
    %v5517 = vsel %vm5497, %v5504, %v5506
    %v5518 = vsel %vm5498, %v5504, %v5508
    %v5519 = vsel %vm5499, %v5504, %v5510
    %v5520 = vsel %vm5500, %v5504, %v5512
    %v5521 = vsel %vm5501, %v5504, %v5514
    %v5522 = vsel %vm5502, %v5504, %v5516
    %v5523 = vsel %vm5497, %v5413, %v5480
    %v5524 = vsel %vm5498, %v5414, %v5482
    %v5525 = vsel %vm5499, %v5415, %v5484
    %v5526 = vsel %vm5500, %v5416, %v5486
    %v5527 = vsel %vm5501, %v5417, %v5488
    %v5528 = vsel %vm5502, %v5418, %v5490
    %5535 = vrot.lane.b32.xlu0 %v5523, 1
    %v5536 = vpop.permute.xlu0 %5535
    %5537 = vrot.lane.b32.xlu0 %v5524, 1
    %v5538 = vpop.permute.xlu0 %5537
    %5539 = vrot.lane.b32.xlu0 %v5525, 1
    %v5540 = vpop.permute.xlu0 %5539
    %5541 = vrot.lane.b32.xlu0 %v5526, 1
    %v5542 = vpop.permute.xlu0 %5541
    %5543 = vrot.lane.b32.xlu0 %v5527, 1
    %v5544 = vpop.permute.xlu0 %5543
    %5545 = vrot.lane.b32.xlu0 %v5528, 1
    %v5546 = vpop.permute.xlu0 %5545
    %vm5553 = vcmp.gt.f32.partialorder %v5413, %v5536
    %vm5554 = vcmp.gt.f32.partialorder %v5414, %v5538
    %vm5555 = vcmp.gt.f32.partialorder %v5415, %v5540
    %vm5556 = vcmp.gt.f32.partialorder %v5416, %v5542
    %vm5557 = vcmp.gt.f32.partialorder %v5417, %v5544
    %vm5558 = vcmp.gt.f32.partialorder %v5418, %v5546
    %v5559 = vadd.s32 %v5216, 4294967294
    %5560 = vrot.lane.b32.xlu0 %v5559, 2
    %v5561 = vpop.permute.xlu0 %5560
    %5562 = vrot.lane.b32.xlu0 %v5517, 1
    %v5563 = vpop.permute.xlu0 %5562
    %5564 = vrot.lane.b32.xlu0 %v5518, 1
    %v5565 = vpop.permute.xlu0 %5564
    %5566 = vrot.lane.b32.xlu0 %v5519, 1
    %v5567 = vpop.permute.xlu0 %5566
    %5568 = vrot.lane.b32.xlu0 %v5520, 1
    %v5569 = vpop.permute.xlu0 %5568
    %5570 = vrot.lane.b32.xlu0 %v5521, 1
    %v5571 = vpop.permute.xlu0 %5570
    %5572 = vrot.lane.b32.xlu0 %v5522, 1
    %v5573 = vpop.permute.xlu0 %5572
    %v5574 = vsel %vm5553, %v5561, %v5563
    %v5575 = vsel %vm5554, %v5561, %v5565
    %v5576 = vsel %vm5555, %v5561, %v5567
    %v5577 = vsel %vm5556, %v5561, %v5569
    %v5578 = vsel %vm5557, %v5561, %v5571
    %v5579 = vsel %vm5558, %v5561, %v5573
    %v5580 = vsel %vm5553, %v5413, %v5536
    %v5581 = vsel %vm5554, %v5414, %v5538
    %v5582 = vsel %vm5555, %v5415, %v5540
    %v5583 = vsel %vm5556, %v5416, %v5542
    %v5584 = vsel %vm5557, %v5417, %v5544
    %v5585 = vsel %vm5558, %v5418, %v5546
    %5592 = vrot.lane.b32.xlu0 %v5580, 1
    %v5593 = vpop.permute.xlu0 %5592
    %5594 = vrot.lane.b32.xlu0 %v5581, 1
    %v5595 = vpop.permute.xlu0 %5594
    %5596 = vrot.lane.b32.xlu0 %v5582, 1
    %v5597 = vpop.permute.xlu0 %5596
    %5598 = vrot.lane.b32.xlu0 %v5583, 1
    %v5599 = vpop.permute.xlu0 %5598
    %5600 = vrot.lane.b32.xlu0 %v5584, 1
    %v5601 = vpop.permute.xlu0 %5600
    %5602 = vrot.lane.b32.xlu0 %v5585, 1
    %v5603 = vpop.permute.xlu0 %5602
    %vm5610 = vcmp.gt.f32.partialorder %v5413, %v5593
    %vm5611 = vcmp.gt.f32.partialorder %v5414, %v5595
    %vm5612 = vcmp.gt.f32.partialorder %v5415, %v5597
    %vm5613 = vcmp.gt.f32.partialorder %v5416, %v5599
    %vm5614 = vcmp.gt.f32.partialorder %v5417, %v5601
    %vm5615 = vcmp.gt.f32.partialorder %v5418, %v5603
    %v5616 = vadd.s32 %v5216, 4294967295
    %5617 = vrot.lane.b32.xlu0 %v5616, 3
    %v5618 = vpop.permute.xlu0 %5617
    %5619 = vrot.lane.b32.xlu0 %v5574, 1
    %v5620 = vpop.permute.xlu0 %5619
    %5621 = vrot.lane.b32.xlu0 %v5575, 1
    %v5622 = vpop.permute.xlu0 %5621
    %5623 = vrot.lane.b32.xlu0 %v5576, 1
    %v5624 = vpop.permute.xlu0 %5623
    %5625 = vrot.lane.b32.xlu0 %v5577, 1
    %v5626 = vpop.permute.xlu0 %5625
    %5627 = vrot.lane.b32.xlu0 %v5578, 1
    %v5628 = vpop.permute.xlu0 %5627
    %5629 = vrot.lane.b32.xlu0 %v5579, 1
    %v5630 = vpop.permute.xlu0 %5629
    %v5631 = vsel %vm5610, %v5618, %v5620
    %v5632 = vsel %vm5611, %v5618, %v5622
    %v5633 = vsel %vm5612, %v5618, %v5624
    %v5634 = vsel %vm5613, %v5618, %v5626
    %v5635 = vsel %vm5614, %v5618, %v5628
    %v5636 = vsel %vm5615, %v5618, %v5630
    %v5637 = vsel %vm5610, %v5413, %v5593
    %v5638 = vsel %vm5611, %v5414, %v5595
    %v5639 = vsel %vm5612, %v5415, %v5597
    %v5640 = vsel %vm5613, %v5416, %v5599
    %v5641 = vsel %vm5614, %v5417, %v5601
    %v5642 = vsel %vm5615, %v5418, %v5603
    %v5643 = vld [vmem:[#allocation7 + $0x2] sm:$0xff]
    %v5644 = vld [vmem:[#allocation7 + $0x12] sm:$0xff]
    %v5645 = vld [vmem:[#allocation7 + $0x22] sm:$0xff]
    %v5646 = vld [vmem:[#allocation7 + $0x32] sm:$0xff]
    %v5647 = vld [vmem:[#allocation7 + $0x42] sm:$0xff]
    %v5648 = vld [vmem:[#allocation7 + $0x52] sm:$0xff]
    %5655 = vrot.lane.b32.xlu0 %v5637, 125
    %v5656 = vpop.permute.xlu0 %5655
    %5657 = vrot.lane.b32.xlu0 %v5638, 125
    %v5658 = vpop.permute.xlu0 %5657
    %5659 = vrot.lane.b32.xlu0 %v5639, 125
    %v5660 = vpop.permute.xlu0 %5659
    %5661 = vrot.lane.b32.xlu0 %v5640, 125
    %v5662 = vpop.permute.xlu0 %5661
    %5663 = vrot.lane.b32.xlu0 %v5641, 125
    %v5664 = vpop.permute.xlu0 %5663
    %5665 = vrot.lane.b32.xlu0 %v5642, 125
    %v5666 = vpop.permute.xlu0 %5665
    %vm5673 = vcmp.gt.f32.partialorder %v5643, %v5656
    %vm5674 = vcmp.gt.f32.partialorder %v5644, %v5658
    %vm5675 = vcmp.gt.f32.partialorder %v5645, %v5660
    %vm5676 = vcmp.gt.f32.partialorder %v5646, %v5662
    %vm5677 = vcmp.gt.f32.partialorder %v5647, %v5664
    %vm5678 = vcmp.gt.f32.partialorder %v5648, %v5666
    %5679 = vrot.lane.b32.xlu0 %v5631, 125
    %v5680 = vpop.permute.xlu0 %5679
    %5681 = vrot.lane.b32.xlu0 %v5632, 125
    %v5682 = vpop.permute.xlu0 %5681
    %5683 = vrot.lane.b32.xlu0 %v5633, 125
    %v5684 = vpop.permute.xlu0 %5683
    %5685 = vrot.lane.b32.xlu0 %v5634, 125
    %v5686 = vpop.permute.xlu0 %5685
    %5687 = vrot.lane.b32.xlu0 %v5635, 125
    %v5688 = vpop.permute.xlu0 %5687
    %5689 = vrot.lane.b32.xlu0 %v5636, 125
    %v5690 = vpop.permute.xlu0 %5689
    %v5691 = vsel %vm5673, %v5559, %v5680
    %v5692 = vsel %vm5674, %v5559, %v5682
    %v5693 = vsel %vm5675, %v5559, %v5684
    %v5694 = vsel %vm5676, %v5559, %v5686
    %v5695 = vsel %vm5677, %v5559, %v5688
    %v5696 = vsel %vm5678, %v5559, %v5690
    %v5697 = vsel %vm5673, %v5643, %v5656
    %v5698 = vsel %vm5674, %v5644, %v5658
    %v5699 = vsel %vm5675, %v5645, %v5660
    %v5700 = vsel %vm5676, %v5646, %v5662
    %v5701 = vsel %vm5677, %v5647, %v5664
    %v5702 = vsel %vm5678, %v5648, %v5666
    %5709 = vrot.lane.b32.xlu0 %v5697, 1
    %v5710 = vpop.permute.xlu0 %5709
    %5711 = vrot.lane.b32.xlu0 %v5698, 1
    %v5712 = vpop.permute.xlu0 %5711
    %5713 = vrot.lane.b32.xlu0 %v5699, 1
    %v5714 = vpop.permute.xlu0 %5713
    %5715 = vrot.lane.b32.xlu0 %v5700, 1
    %v5716 = vpop.permute.xlu0 %5715
    %5717 = vrot.lane.b32.xlu0 %v5701, 1
    %v5718 = vpop.permute.xlu0 %5717
    %5719 = vrot.lane.b32.xlu0 %v5702, 1
    %v5720 = vpop.permute.xlu0 %5719
    %vm5727 = vcmp.gt.f32.partialorder %v5643, %v5710
    %vm5728 = vcmp.gt.f32.partialorder %v5644, %v5712
    %vm5729 = vcmp.gt.f32.partialorder %v5645, %v5714
    %vm5730 = vcmp.gt.f32.partialorder %v5646, %v5716
    %vm5731 = vcmp.gt.f32.partialorder %v5647, %v5718
    %vm5732 = vcmp.gt.f32.partialorder %v5648, %v5720
    %5733 = vrot.lane.b32.xlu0 %v5616, 1
    %v5734 = vpop.permute.xlu0 %5733
    %5735 = vrot.lane.b32.xlu0 %v5691, 1
    %v5736 = vpop.permute.xlu0 %5735
    %5737 = vrot.lane.b32.xlu0 %v5692, 1
    %v5738 = vpop.permute.xlu0 %5737
    %5739 = vrot.lane.b32.xlu0 %v5693, 1
    %v5740 = vpop.permute.xlu0 %5739
    %5741 = vrot.lane.b32.xlu0 %v5694, 1
    %v5742 = vpop.permute.xlu0 %5741
    %5743 = vrot.lane.b32.xlu0 %v5695, 1
    %v5744 = vpop.permute.xlu0 %5743
    %5745 = vrot.lane.b32.xlu0 %v5696, 1
    %v5746 = vpop.permute.xlu0 %5745
    %v5747 = vsel %vm5727, %v5734, %v5736
    %v5748 = vsel %vm5728, %v5734, %v5738
    %v5749 = vsel %vm5729, %v5734, %v5740
    %v5750 = vsel %vm5730, %v5734, %v5742
    %v5751 = vsel %vm5731, %v5734, %v5744
    %v5752 = vsel %vm5732, %v5734, %v5746
    %v5753 = vsel %vm5727, %v5643, %v5710
    %v5754 = vsel %vm5728, %v5644, %v5712
    %v5755 = vsel %vm5729, %v5645, %v5714
    %v5756 = vsel %vm5730, %v5646, %v5716
    %v5757 = vsel %vm5731, %v5647, %v5718
    %v5758 = vsel %vm5732, %v5648, %v5720
    %5765 = vrot.lane.b32.xlu0 %v5753, 1
    %v5766 = vpop.permute.xlu0 %5765
    %5767 = vrot.lane.b32.xlu0 %v5754, 1
    %v5768 = vpop.permute.xlu0 %5767
    %5769 = vrot.lane.b32.xlu0 %v5755, 1
    %v5770 = vpop.permute.xlu0 %5769
    %5771 = vrot.lane.b32.xlu0 %v5756, 1
    %v5772 = vpop.permute.xlu0 %5771
    %5773 = vrot.lane.b32.xlu0 %v5757, 1
    %v5774 = vpop.permute.xlu0 %5773
    %5775 = vrot.lane.b32.xlu0 %v5758, 1
    %v5776 = vpop.permute.xlu0 %5775
    %vm5783 = vcmp.gt.f32.partialorder %v5643, %v5766
    %vm5784 = vcmp.gt.f32.partialorder %v5644, %v5768
    %vm5785 = vcmp.gt.f32.partialorder %v5645, %v5770
    %vm5786 = vcmp.gt.f32.partialorder %v5646, %v5772
    %vm5787 = vcmp.gt.f32.partialorder %v5647, %v5774
    %vm5788 = vcmp.gt.f32.partialorder %v5648, %v5776
    %5789 = vrot.lane.b32.xlu0 %v5216, 2
    %v5790 = vpop.permute.xlu0 %5789
    %5791 = vrot.lane.b32.xlu0 %v5747, 1
    %v5792 = vpop.permute.xlu0 %5791
    %5793 = vrot.lane.b32.xlu0 %v5748, 1
    %v5794 = vpop.permute.xlu0 %5793
    %5795 = vrot.lane.b32.xlu0 %v5749, 1
    %v5796 = vpop.permute.xlu0 %5795
    %5797 = vrot.lane.b32.xlu0 %v5750, 1
    %v5798 = vpop.permute.xlu0 %5797
    %5799 = vrot.lane.b32.xlu0 %v5751, 1
    %v5800 = vpop.permute.xlu0 %5799
    %5801 = vrot.lane.b32.xlu0 %v5752, 1
    %v5802 = vpop.permute.xlu0 %5801
    %v5803 = vsel %vm5783, %v5790, %v5792
    %v5804 = vsel %vm5784, %v5790, %v5794
    %v5805 = vsel %vm5785, %v5790, %v5796
    %v5806 = vsel %vm5786, %v5790, %v5798
    %v5807 = vsel %vm5787, %v5790, %v5800
    %v5808 = vsel %vm5788, %v5790, %v5802
    %v5809 = vsel %vm5783, %v5643, %v5766
    %v5810 = vsel %vm5784, %v5644, %v5768
    %v5811 = vsel %vm5785, %v5645, %v5770
    %v5812 = vsel %vm5786, %v5646, %v5772
    %v5813 = vsel %vm5787, %v5647, %v5774
    %v5814 = vsel %vm5788, %v5648, %v5776
    %5821 = vrot.lane.b32.xlu0 %v5809, 1
    %v5822 = vpop.permute.xlu0 %5821
    %5823 = vrot.lane.b32.xlu0 %v5810, 1
    %v5824 = vpop.permute.xlu0 %5823
    %5825 = vrot.lane.b32.xlu0 %v5811, 1
    %v5826 = vpop.permute.xlu0 %5825
    %5827 = vrot.lane.b32.xlu0 %v5812, 1
    %v5828 = vpop.permute.xlu0 %5827
    %5829 = vrot.lane.b32.xlu0 %v5813, 1
    %v5830 = vpop.permute.xlu0 %5829
    %5831 = vrot.lane.b32.xlu0 %v5814, 1
    %v5832 = vpop.permute.xlu0 %5831
    %vm5839 = vcmp.gt.f32.partialorder %v5643, %v5822
    %vm5840 = vcmp.gt.f32.partialorder %v5644, %v5824
    %vm5841 = vcmp.gt.f32.partialorder %v5645, %v5826
    %vm5842 = vcmp.gt.f32.partialorder %v5646, %v5828
    %vm5843 = vcmp.gt.f32.partialorder %v5647, %v5830
    %vm5844 = vcmp.gt.f32.partialorder %v5648, %v5832
    %v5845 = vadd.s32 %v5216, 1
    %5846 = vrot.lane.b32.xlu0 %v5845, 3
    %v5847 = vpop.permute.xlu0 %5846
    %5848 = vrot.lane.b32.xlu0 %v5803, 1
    %v5849 = vpop.permute.xlu0 %5848
    %5850 = vrot.lane.b32.xlu0 %v5804, 1
    %v5851 = vpop.permute.xlu0 %5850
    %5852 = vrot.lane.b32.xlu0 %v5805, 1
    %v5853 = vpop.permute.xlu0 %5852
    %5854 = vrot.lane.b32.xlu0 %v5806, 1
    %v5855 = vpop.permute.xlu0 %5854
    %5856 = vrot.lane.b32.xlu0 %v5807, 1
    %v5857 = vpop.permute.xlu0 %5856
    %5858 = vrot.lane.b32.xlu0 %v5808, 1
    %v5859 = vpop.permute.xlu0 %5858
    %v5860 = vsel %vm5839, %v5847, %v5849
    %v5861 = vsel %vm5840, %v5847, %v5851
    %v5862 = vsel %vm5841, %v5847, %v5853
    %v5863 = vsel %vm5842, %v5847, %v5855
    %v5864 = vsel %vm5843, %v5847, %v5857
    %v5865 = vsel %vm5844, %v5847, %v5859
    %v5866 = vsel %vm5839, %v5643, %v5822
    %v5867 = vsel %vm5840, %v5644, %v5824
    %v5868 = vsel %vm5841, %v5645, %v5826
    %v5869 = vsel %vm5842, %v5646, %v5828
    %v5870 = vsel %vm5843, %v5647, %v5830
    %v5871 = vsel %vm5844, %v5648, %v5832
    %v5872 = vld [vmem:[#allocation7 + $0x3] sm:$0xff]
    %v5873 = vld [vmem:[#allocation7 + $0x13] sm:$0xff]
    %v5874 = vld [vmem:[#allocation7 + $0x23] sm:$0xff]
    %v5875 = vld [vmem:[#allocation7 + $0x33] sm:$0xff]
    %v5876 = vld [vmem:[#allocation7 + $0x43] sm:$0xff]
    %v5877 = vld [vmem:[#allocation7 + $0x53] sm:$0xff]
    %5884 = vrot.lane.b32.xlu0 %v5866, 125
    %v5885 = vpop.permute.xlu0 %5884
    %5886 = vrot.lane.b32.xlu0 %v5867, 125
    %v5887 = vpop.permute.xlu0 %5886
    %5888 = vrot.lane.b32.xlu0 %v5868, 125
    %v5889 = vpop.permute.xlu0 %5888
    %5890 = vrot.lane.b32.xlu0 %v5869, 125
    %v5891 = vpop.permute.xlu0 %5890
    %5892 = vrot.lane.b32.xlu0 %v5870, 125
    %v5893 = vpop.permute.xlu0 %5892
    %5894 = vrot.lane.b32.xlu0 %v5871, 125
    %v5895 = vpop.permute.xlu0 %5894
    %vm5902 = vcmp.gt.f32.partialorder %v5872, %v5885
    %vm5903 = vcmp.gt.f32.partialorder %v5873, %v5887
    %vm5904 = vcmp.gt.f32.partialorder %v5874, %v5889
    %vm5905 = vcmp.gt.f32.partialorder %v5875, %v5891
    %vm5906 = vcmp.gt.f32.partialorder %v5876, %v5893
    %vm5907 = vcmp.gt.f32.partialorder %v5877, %v5895
    %5908 = vrot.lane.b32.xlu0 %v5860, 125
    %v5909 = vpop.permute.xlu0 %5908
    %5910 = vrot.lane.b32.xlu0 %v5861, 125
    %v5911 = vpop.permute.xlu0 %5910
    %5912 = vrot.lane.b32.xlu0 %v5862, 125
    %v5913 = vpop.permute.xlu0 %5912
    %5914 = vrot.lane.b32.xlu0 %v5863, 125
    %v5915 = vpop.permute.xlu0 %5914
    %5916 = vrot.lane.b32.xlu0 %v5864, 125
    %v5917 = vpop.permute.xlu0 %5916
    %5918 = vrot.lane.b32.xlu0 %v5865, 125
    %v5919 = vpop.permute.xlu0 %5918
    %v5920 = vsel %vm5902, %v5216, %v5909
    %v5921 = vsel %vm5903, %v5216, %v5911
    %v5922 = vsel %vm5904, %v5216, %v5913
    %v5923 = vsel %vm5905, %v5216, %v5915
    %v5924 = vsel %vm5906, %v5216, %v5917
    %v5925 = vsel %vm5907, %v5216, %v5919
    %v5926 = vsel %vm5902, %v5872, %v5885
    %v5927 = vsel %vm5903, %v5873, %v5887
    %v5928 = vsel %vm5904, %v5874, %v5889
    %v5929 = vsel %vm5905, %v5875, %v5891
    %v5930 = vsel %vm5906, %v5876, %v5893
    %v5931 = vsel %vm5907, %v5877, %v5895
    %5938 = vrot.lane.b32.xlu0 %v5926, 1
    %v5939 = vpop.permute.xlu0 %5938
    %5940 = vrot.lane.b32.xlu0 %v5927, 1
    %v5941 = vpop.permute.xlu0 %5940
    %5942 = vrot.lane.b32.xlu0 %v5928, 1
    %v5943 = vpop.permute.xlu0 %5942
    %5944 = vrot.lane.b32.xlu0 %v5929, 1
    %v5945 = vpop.permute.xlu0 %5944
    %5946 = vrot.lane.b32.xlu0 %v5930, 1
    %v5947 = vpop.permute.xlu0 %5946
    %5948 = vrot.lane.b32.xlu0 %v5931, 1
    %v5949 = vpop.permute.xlu0 %5948
    %vm5956 = vcmp.gt.f32.partialorder %v5872, %v5939
    %vm5957 = vcmp.gt.f32.partialorder %v5873, %v5941
    %vm5958 = vcmp.gt.f32.partialorder %v5874, %v5943
    %vm5959 = vcmp.gt.f32.partialorder %v5875, %v5945
    %vm5960 = vcmp.gt.f32.partialorder %v5876, %v5947
    %vm5961 = vcmp.gt.f32.partialorder %v5877, %v5949
    %5962 = vrot.lane.b32.xlu0 %v5845, 1
    %v5963 = vpop.permute.xlu0 %5962
    %5964 = vrot.lane.b32.xlu0 %v5920, 1
    %v5965 = vpop.permute.xlu0 %5964
    %5966 = vrot.lane.b32.xlu0 %v5921, 1
    %v5967 = vpop.permute.xlu0 %5966
    %5968 = vrot.lane.b32.xlu0 %v5922, 1
    %v5969 = vpop.permute.xlu0 %5968
    %5970 = vrot.lane.b32.xlu0 %v5923, 1
    %v5971 = vpop.permute.xlu0 %5970
    %5972 = vrot.lane.b32.xlu0 %v5924, 1
    %v5973 = vpop.permute.xlu0 %5972
    %5974 = vrot.lane.b32.xlu0 %v5925, 1
    %v5975 = vpop.permute.xlu0 %5974
    %v5976 = vsel %vm5956, %v5963, %v5965
    %v5977 = vsel %vm5957, %v5963, %v5967
    %v5978 = vsel %vm5958, %v5963, %v5969
    %v5979 = vsel %vm5959, %v5963, %v5971
    %v5980 = vsel %vm5960, %v5963, %v5973
    %v5981 = vsel %vm5961, %v5963, %v5975
    %v5982 = vsel %vm5956, %v5872, %v5939
    %v5983 = vsel %vm5957, %v5873, %v5941
    %v5984 = vsel %vm5958, %v5874, %v5943
    %v5985 = vsel %vm5959, %v5875, %v5945
    %v5986 = vsel %vm5960, %v5876, %v5947
    %v5987 = vsel %vm5961, %v5877, %v5949
    %5994 = vrot.lane.b32.xlu0 %v5982, 1
    %v5995 = vpop.permute.xlu0 %5994
    %5996 = vrot.lane.b32.xlu0 %v5983, 1
    %v5997 = vpop.permute.xlu0 %5996
    %5998 = vrot.lane.b32.xlu0 %v5984, 1
    %v5999 = vpop.permute.xlu0 %5998
    %6000 = vrot.lane.b32.xlu0 %v5985, 1
    %v6001 = vpop.permute.xlu0 %6000
    %6002 = vrot.lane.b32.xlu0 %v5986, 1
    %v6003 = vpop.permute.xlu0 %6002
    %6004 = vrot.lane.b32.xlu0 %v5987, 1
    %v6005 = vpop.permute.xlu0 %6004
    %vm6012 = vcmp.gt.f32.partialorder %v5872, %v5995
    %vm6013 = vcmp.gt.f32.partialorder %v5873, %v5997
    %vm6014 = vcmp.gt.f32.partialorder %v5874, %v5999
    %vm6015 = vcmp.gt.f32.partialorder %v5875, %v6001
    %vm6016 = vcmp.gt.f32.partialorder %v5876, %v6003
    %vm6017 = vcmp.gt.f32.partialorder %v5877, %v6005
    %v6018 = vadd.s32 %v5216, 2
    %6019 = vrot.lane.b32.xlu0 %v6018, 2
    %v6020 = vpop.permute.xlu0 %6019
    %6021 = vrot.lane.b32.xlu0 %v5976, 1
    %v6022 = vpop.permute.xlu0 %6021
    %6023 = vrot.lane.b32.xlu0 %v5977, 1
    %v6024 = vpop.permute.xlu0 %6023
    %6025 = vrot.lane.b32.xlu0 %v5978, 1
    %v6026 = vpop.permute.xlu0 %6025
    %6027 = vrot.lane.b32.xlu0 %v5979, 1
    %v6028 = vpop.permute.xlu0 %6027
    %6029 = vrot.lane.b32.xlu0 %v5980, 1
    %v6030 = vpop.permute.xlu0 %6029
    %6031 = vrot.lane.b32.xlu0 %v5981, 1
    %v6032 = vpop.permute.xlu0 %6031
    %v6033 = vsel %vm6012, %v6020, %v6022
    %v6034 = vsel %vm6013, %v6020, %v6024
    %v6035 = vsel %vm6014, %v6020, %v6026
    %v6036 = vsel %vm6015, %v6020, %v6028
    %v6037 = vsel %vm6016, %v6020, %v6030
    %v6038 = vsel %vm6017, %v6020, %v6032
    %v6039 = vsel %vm6012, %v5872, %v5995
    %v6040 = vsel %vm6013, %v5873, %v5997
    %v6041 = vsel %vm6014, %v5874, %v5999
    %v6042 = vsel %vm6015, %v5875, %v6001
    %v6043 = vsel %vm6016, %v5876, %v6003
    %v6044 = vsel %vm6017, %v5877, %v6005
    %6051 = vrot.lane.b32.xlu0 %v6039, 1
    %v6052 = vpop.permute.xlu0 %6051
    %6053 = vrot.lane.b32.xlu0 %v6040, 1
    %v6054 = vpop.permute.xlu0 %6053
    %6055 = vrot.lane.b32.xlu0 %v6041, 1
    %v6056 = vpop.permute.xlu0 %6055
    %6057 = vrot.lane.b32.xlu0 %v6042, 1
    %v6058 = vpop.permute.xlu0 %6057
    %6059 = vrot.lane.b32.xlu0 %v6043, 1
    %v6060 = vpop.permute.xlu0 %6059
    %6061 = vrot.lane.b32.xlu0 %v6044, 1
    %v6062 = vpop.permute.xlu0 %6061
    %vm6069 = vcmp.gt.f32.partialorder %v5872, %v6052
    %vm6070 = vcmp.gt.f32.partialorder %v5873, %v6054
    %vm6071 = vcmp.gt.f32.partialorder %v5874, %v6056
    %vm6072 = vcmp.gt.f32.partialorder %v5875, %v6058
    %vm6073 = vcmp.gt.f32.partialorder %v5876, %v6060
    %vm6074 = vcmp.gt.f32.partialorder %v5877, %v6062
    %v6075 = vadd.s32 %v5216, 3
    %6076 = vrot.lane.b32.xlu0 %v6075, 3
    %v6077 = vpop.permute.xlu0 %6076
    %6078 = vrot.lane.b32.xlu0 %v6033, 1
    %v6079 = vpop.permute.xlu0 %6078
    %6080 = vrot.lane.b32.xlu0 %v6034, 1
    %v6081 = vpop.permute.xlu0 %6080
    %6082 = vrot.lane.b32.xlu0 %v6035, 1
    %v6083 = vpop.permute.xlu0 %6082
    %6084 = vrot.lane.b32.xlu0 %v6036, 1
    %v6085 = vpop.permute.xlu0 %6084
    %6086 = vrot.lane.b32.xlu0 %v6037, 1
    %v6087 = vpop.permute.xlu0 %6086
    %6088 = vrot.lane.b32.xlu0 %v6038, 1
    %v6089 = vpop.permute.xlu0 %6088
    %v6090 = vsel %vm6069, %v6077, %v6079
    %v6091 = vsel %vm6070, %v6077, %v6081
    %v6092 = vsel %vm6071, %v6077, %v6083
    %v6093 = vsel %vm6072, %v6077, %v6085
    %v6094 = vsel %vm6073, %v6077, %v6087
    %v6095 = vsel %vm6074, %v6077, %v6089
    %v6096 = vsel %vm6069, %v5872, %v6052
    %v6097 = vsel %vm6070, %v5873, %v6054
    %v6098 = vsel %vm6071, %v5874, %v6056
    %v6099 = vsel %vm6072, %v5875, %v6058
    %v6100 = vsel %vm6073, %v5876, %v6060
    %v6101 = vsel %vm6074, %v5877, %v6062
    %v6102 = vld [vmem:[#allocation7 + $0x4] sm:$0xff]
    %v6103 = vld [vmem:[#allocation7 + $0x14] sm:$0xff]
    %v6104 = vld [vmem:[#allocation7 + $0x24] sm:$0xff]
    %v6105 = vld [vmem:[#allocation7 + $0x34] sm:$0xff]
    %v6106 = vld [vmem:[#allocation7 + $0x44] sm:$0xff]
    %v6107 = vld [vmem:[#allocation7 + $0x54] sm:$0xff]
    %6114 = vrot.lane.b32.xlu0 %v6096, 125
    %v6115 = vpop.permute.xlu0 %6114
    %6116 = vrot.lane.b32.xlu0 %v6097, 125
    %v6117 = vpop.permute.xlu0 %6116
    %6118 = vrot.lane.b32.xlu0 %v6098, 125
    %v6119 = vpop.permute.xlu0 %6118
    %6120 = vrot.lane.b32.xlu0 %v6099, 125
    %v6121 = vpop.permute.xlu0 %6120
    %6122 = vrot.lane.b32.xlu0 %v6100, 125
    %v6123 = vpop.permute.xlu0 %6122
    %6124 = vrot.lane.b32.xlu0 %v6101, 125
    %v6125 = vpop.permute.xlu0 %6124
    %vm6132 = vcmp.gt.f32.partialorder %v6102, %v6115
    %vm6133 = vcmp.gt.f32.partialorder %v6103, %v6117
    %vm6134 = vcmp.gt.f32.partialorder %v6104, %v6119
    %vm6135 = vcmp.gt.f32.partialorder %v6105, %v6121
    %vm6136 = vcmp.gt.f32.partialorder %v6106, %v6123
    %vm6137 = vcmp.gt.f32.partialorder %v6107, %v6125
    %6138 = vrot.lane.b32.xlu0 %v6090, 125
    %v6139 = vpop.permute.xlu0 %6138
    %6140 = vrot.lane.b32.xlu0 %v6091, 125
    %v6141 = vpop.permute.xlu0 %6140
    %6142 = vrot.lane.b32.xlu0 %v6092, 125
    %v6143 = vpop.permute.xlu0 %6142
    %6144 = vrot.lane.b32.xlu0 %v6093, 125
    %v6145 = vpop.permute.xlu0 %6144
    %6146 = vrot.lane.b32.xlu0 %v6094, 125
    %v6147 = vpop.permute.xlu0 %6146
    %6148 = vrot.lane.b32.xlu0 %v6095, 125
    %v6149 = vpop.permute.xlu0 %6148
    %v6150 = vsel %vm6132, %v6018, %v6139
    %v6151 = vsel %vm6133, %v6018, %v6141
    %v6152 = vsel %vm6134, %v6018, %v6143
    %v6153 = vsel %vm6135, %v6018, %v6145
    %v6154 = vsel %vm6136, %v6018, %v6147
    %v6155 = vsel %vm6137, %v6018, %v6149
    %v6156 = vsel %vm6132, %v6102, %v6115
    %v6157 = vsel %vm6133, %v6103, %v6117
    %v6158 = vsel %vm6134, %v6104, %v6119
    %v6159 = vsel %vm6135, %v6105, %v6121
    %v6160 = vsel %vm6136, %v6106, %v6123
    %v6161 = vsel %vm6137, %v6107, %v6125
    %6168 = vrot.lane.b32.xlu0 %v6156, 1
    %v6169 = vpop.permute.xlu0 %6168
    %6170 = vrot.lane.b32.xlu0 %v6157, 1
    %v6171 = vpop.permute.xlu0 %6170
    %6172 = vrot.lane.b32.xlu0 %v6158, 1
    %v6173 = vpop.permute.xlu0 %6172
    %6174 = vrot.lane.b32.xlu0 %v6159, 1
    %v6175 = vpop.permute.xlu0 %6174
    %6176 = vrot.lane.b32.xlu0 %v6160, 1
    %v6177 = vpop.permute.xlu0 %6176
    %6178 = vrot.lane.b32.xlu0 %v6161, 1
    %v6179 = vpop.permute.xlu0 %6178
    %vm6186 = vcmp.gt.f32.partialorder %v6102, %v6169
    %vm6187 = vcmp.gt.f32.partialorder %v6103, %v6171
    %vm6188 = vcmp.gt.f32.partialorder %v6104, %v6173
    %vm6189 = vcmp.gt.f32.partialorder %v6105, %v6175
    %vm6190 = vcmp.gt.f32.partialorder %v6106, %v6177
    %vm6191 = vcmp.gt.f32.partialorder %v6107, %v6179
    %6192 = vrot.lane.b32.xlu0 %v6075, 1
    %v6193 = vpop.permute.xlu0 %6192
    %6194 = vrot.lane.b32.xlu0 %v6150, 1
    %v6195 = vpop.permute.xlu0 %6194
    %6196 = vrot.lane.b32.xlu0 %v6151, 1
    %v6197 = vpop.permute.xlu0 %6196
    %6198 = vrot.lane.b32.xlu0 %v6152, 1
    %v6199 = vpop.permute.xlu0 %6198
    %6200 = vrot.lane.b32.xlu0 %v6153, 1
    %v6201 = vpop.permute.xlu0 %6200
    %6202 = vrot.lane.b32.xlu0 %v6154, 1
    %v6203 = vpop.permute.xlu0 %6202
    %6204 = vrot.lane.b32.xlu0 %v6155, 1
    %v6205 = vpop.permute.xlu0 %6204
    %v6206 = vsel %vm6186, %v6193, %v6195
    %v6207 = vsel %vm6187, %v6193, %v6197
    %v6208 = vsel %vm6188, %v6193, %v6199
    %v6209 = vsel %vm6189, %v6193, %v6201
    %v6210 = vsel %vm6190, %v6193, %v6203
    %v6211 = vsel %vm6191, %v6193, %v6205
    %v6212 = vsel %vm6186, %v6102, %v6169
    %v6213 = vsel %vm6187, %v6103, %v6171
    %v6214 = vsel %vm6188, %v6104, %v6173
    %v6215 = vsel %vm6189, %v6105, %v6175
    %v6216 = vsel %vm6190, %v6106, %v6177
    %v6217 = vsel %vm6191, %v6107, %v6179
    %6224 = vrot.lane.b32.xlu0 %v6212, 1
    %v6225 = vpop.permute.xlu0 %6224
    %6226 = vrot.lane.b32.xlu0 %v6213, 1
    %v6227 = vpop.permute.xlu0 %6226
    %6228 = vrot.lane.b32.xlu0 %v6214, 1
    %v6229 = vpop.permute.xlu0 %6228
    %6230 = vrot.lane.b32.xlu0 %v6215, 1
    %v6231 = vpop.permute.xlu0 %6230
    %6232 = vrot.lane.b32.xlu0 %v6216, 1
    %v6233 = vpop.permute.xlu0 %6232
    %6234 = vrot.lane.b32.xlu0 %v6217, 1
    %v6235 = vpop.permute.xlu0 %6234
    %vm6242 = vcmp.gt.f32.partialorder %v6102, %v6225
    %vm6243 = vcmp.gt.f32.partialorder %v6103, %v6227
    %vm6244 = vcmp.gt.f32.partialorder %v6104, %v6229
    %vm6245 = vcmp.gt.f32.partialorder %v6105, %v6231
    %vm6246 = vcmp.gt.f32.partialorder %v6106, %v6233
    %vm6247 = vcmp.gt.f32.partialorder %v6107, %v6235
    %v6248 = vadd.s32 %v5216, 4
    %6249 = vrot.lane.b32.xlu0 %v6248, 2
    %v6250 = vpop.permute.xlu0 %6249
    %6251 = vrot.lane.b32.xlu0 %v6206, 1
    %v6252 = vpop.permute.xlu0 %6251
    %6253 = vrot.lane.b32.xlu0 %v6207, 1
    %v6254 = vpop.permute.xlu0 %6253
    %6255 = vrot.lane.b32.xlu0 %v6208, 1
    %v6256 = vpop.permute.xlu0 %6255
    %6257 = vrot.lane.b32.xlu0 %v6209, 1
    %v6258 = vpop.permute.xlu0 %6257
    %6259 = vrot.lane.b32.xlu0 %v6210, 1
    %v6260 = vpop.permute.xlu0 %6259
    %6261 = vrot.lane.b32.xlu0 %v6211, 1
    %v6262 = vpop.permute.xlu0 %6261
    %v6263 = vsel %vm6242, %v6250, %v6252
    %v6264 = vsel %vm6243, %v6250, %v6254
    %v6265 = vsel %vm6244, %v6250, %v6256
    %v6266 = vsel %vm6245, %v6250, %v6258
    %v6267 = vsel %vm6246, %v6250, %v6260
    %v6268 = vsel %vm6247, %v6250, %v6262
    %v6269 = vsel %vm6242, %v6102, %v6225
    %v6270 = vsel %vm6243, %v6103, %v6227
    %v6271 = vsel %vm6244, %v6104, %v6229
    %v6272 = vsel %vm6245, %v6105, %v6231
    %v6273 = vsel %vm6246, %v6106, %v6233
    %v6274 = vsel %vm6247, %v6107, %v6235
    %6281 = vrot.lane.b32.xlu0 %v6269, 1
    %v6282 = vpop.permute.xlu0 %6281
    %6283 = vrot.lane.b32.xlu0 %v6270, 1
    %v6284 = vpop.permute.xlu0 %6283
    %6285 = vrot.lane.b32.xlu0 %v6271, 1
    %v6286 = vpop.permute.xlu0 %6285
    %6287 = vrot.lane.b32.xlu0 %v6272, 1
    %v6288 = vpop.permute.xlu0 %6287
    %6289 = vrot.lane.b32.xlu0 %v6273, 1
    %v6290 = vpop.permute.xlu0 %6289
    %6291 = vrot.lane.b32.xlu0 %v6274, 1
    %v6292 = vpop.permute.xlu0 %6291
    %vm6299 = vcmp.gt.f32.partialorder %v6102, %v6282
    %vm6300 = vcmp.gt.f32.partialorder %v6103, %v6284
    %vm6301 = vcmp.gt.f32.partialorder %v6104, %v6286
    %vm6302 = vcmp.gt.f32.partialorder %v6105, %v6288
    %vm6303 = vcmp.gt.f32.partialorder %v6106, %v6290
    %vm6304 = vcmp.gt.f32.partialorder %v6107, %v6292
    %v6305 = vadd.s32 %v5216, 5
    %6306 = vrot.lane.b32.xlu0 %v6305, 3
    %v6307 = vpop.permute.xlu0 %6306
    %6308 = vrot.lane.b32.xlu0 %v6263, 1
    %v6309 = vpop.permute.xlu0 %6308
    %6310 = vrot.lane.b32.xlu0 %v6264, 1
    %v6311 = vpop.permute.xlu0 %6310
    %6312 = vrot.lane.b32.xlu0 %v6265, 1
    %v6313 = vpop.permute.xlu0 %6312
    %6314 = vrot.lane.b32.xlu0 %v6266, 1
    %v6315 = vpop.permute.xlu0 %6314
    %6316 = vrot.lane.b32.xlu0 %v6267, 1
    %v6317 = vpop.permute.xlu0 %6316
    %6318 = vrot.lane.b32.xlu0 %v6268, 1
    %v6319 = vpop.permute.xlu0 %6318
    %v6320 = vsel %vm6299, %v6307, %v6309
    %v6321 = vsel %vm6300, %v6307, %v6311
    %v6322 = vsel %vm6301, %v6307, %v6313
    %v6323 = vsel %vm6302, %v6307, %v6315
    %v6324 = vsel %vm6303, %v6307, %v6317
    %v6325 = vsel %vm6304, %v6307, %v6319
    %v6326 = vsel %vm6299, %v6102, %v6282
    %v6327 = vsel %vm6300, %v6103, %v6284
    %v6328 = vsel %vm6301, %v6104, %v6286
    %v6329 = vsel %vm6302, %v6105, %v6288
    %v6330 = vsel %vm6303, %v6106, %v6290
    %v6331 = vsel %vm6304, %v6107, %v6292
    %6338 = vrot.lane.b32.xlu0 %v6326, 125
    %v6339 = vpop.permute.xlu0 %6338
    %6340 = vrot.lane.b32.xlu0 %v6327, 125
    %v6341 = vpop.permute.xlu0 %6340
    %6342 = vrot.lane.b32.xlu0 %v6328, 125
    %v6343 = vpop.permute.xlu0 %6342
    %6344 = vrot.lane.b32.xlu0 %v6329, 125
    %v6345 = vpop.permute.xlu0 %6344
    %6346 = vrot.lane.b32.xlu0 %v6330, 125
    %v6347 = vpop.permute.xlu0 %6346
    %6348 = vrot.lane.b32.xlu0 %v6331, 125
    %v6349 = vpop.permute.xlu0 %6348
    %6356 = vst.msk [vmem:[%s1] sm:$0xff] %vm2027, %v6339
    %6357 = vst.msk [vmem:[%s1 + $0x8] sm:$0xff] %vm2027, %v6341
    %6358 = vst.msk [vmem:[%s1 + $0x10] sm:$0xff] %vm2027, %v6343
    %6359 = vst.msk [vmem:[%s1 + $0x18] sm:$0xff] %vm2027, %v6345
    %6360 = vst.msk [vmem:[%s1 + $0x20] sm:$0xff] %vm2027, %v6347
    %6361 = vst.msk [vmem:[%s1 + $0x28] sm:$0xff] %vm2027, %v6349
    %6362 = vrot.lane.b32.xlu0 %v6320, 125
    %v6363 = vpop.permute.xlu0 %6362
    %6364 = vrot.lane.b32.xlu0 %v6321, 125
    %v6365 = vpop.permute.xlu0 %6364
    %6366 = vrot.lane.b32.xlu0 %v6322, 125
    %v6367 = vpop.permute.xlu0 %6366
    %6368 = vrot.lane.b32.xlu0 %v6323, 125
    %v6369 = vpop.permute.xlu0 %6368
    %6370 = vrot.lane.b32.xlu0 %v6324, 125
    %v6371 = vpop.permute.xlu0 %6370
    %6372 = vrot.lane.b32.xlu0 %v6325, 125
    %v6373 = vpop.permute.xlu0 %6372
    %6374 = vst.msk [vmem:[%s2] sm:$0xff] %vm2027, %v6363
    %6375 = vst.msk [vmem:[%s2 + $0x8] sm:$0xff] %vm2027, %v6365
    %6376 = vst.msk [vmem:[%s2 + $0x10] sm:$0xff] %vm2027, %v6367
    %6377 = vst.msk [vmem:[%s2 + $0x18] sm:$0xff] %vm2027, %v6369
    %6378 = vst.msk [vmem:[%s2 + $0x20] sm:$0xff] %vm2027, %v6371
    %6379 = vst.msk [vmem:[%s2 + $0x28] sm:$0xff] %vm2027, %v6373
    // Predicated region
    $region10: #{model_forward.1} parent=1 // pred_check
      _
    $region11: #{model_forward.1} parent=1 // pred_check_branch
      %6381 = sbr.rel (0) target = $region13
    $region12: #{model_forward.1} parent=1 // pred_region
      _
    $region13: #{model_forward.1} parent=1 // pred_fallthru
      _
    // Predicated region
    $region14: #{model_forward.1} parent=1 // pred_check
      _
    $region15: #{model_forward.1} parent=1 // pred_check_branch
      %6383 = sbr.rel (0) target = $region17
    $region16: #{model_forward.1} parent=1 // pred_region
      _
    $region17: #{model_forward.1} parent=1 // pred_fallthru
      _
    // Predicated region
    $region18: #{model_forward.1} parent=1 // pred_check
      _
    $region19: #{model_forward.1} parent=1 // pred_check_branch
      %6385 = sbr.rel (0) target = $region21
    $region20: #{model_forward.1} parent=1 // pred_region
      _
    $region21: #{model_forward.1} parent=1 // pred_fallthru
      _
    // Predicated region
    $region22: #{model_forward.1} parent=1 // pred_check
      _
    $region23: #{model_forward.1} parent=1 // pred_check_branch
      %6387 = sbr.rel (0) target = $region25
    $region24: #{model_forward.1} parent=1 // pred_region
      _
    $region25: #{model_forward.1} parent=1 // pred_fallthru
      _
    %6388 = vsyncpa [#allocation9], 1

</llo_original>
